<compile_context>
chip_gen: v7x
topology: tpu7x:2x2x1
jax: 0.10.0
libtpu: 0.0.40
codegen_flags: <defaults>
</compile_context>

<pallas_src>
import jax
import jax.numpy as jnp
from jax.experimental import pallas as pl
from jax.experimental.pallas import tpu as pltpu

NEG_SLOPE = 0.1       # LeakyReLU(0.1)
EPS = 1e-5            # InstanceNorm2d default eps (affine=False)
K0_PAD = 384          # 19*16 = 304 padded up to a multiple of 128


# ----------------------------------------------------------------------------
# Fused kernel: one grid step = one batch element, everything VMEM-resident.
# ----------------------------------------------------------------------------
def _lrelu(v):
    return jnp.where(v >= 0, v, NEG_SLOPE * v)


def _instnorm(v):
    # Per-channel over the spatial (row) axis; biased variance, single pass.
    mean = jnp.mean(v, axis=0, keepdims=True)
    var = jnp.mean(v * v, axis=0, keepdims=True) - mean * mean
    return (v - mean) * jax.lax.rsqrt(var + EPS)


def _fused_kernel(p_ref, x_ref, interp_ref,
                  c0w, c0b, c1w, c1b, c2w, c2b,
                  s0w, s0b, sc1w, sc1b, sh1w, sh1b,
                  fused_ref, scale_ref, shift_ref):
    f32 = jnp.float32
    bf16 = jnp.bfloat16

    # ---- condlayer ------------------------------------------------------
    h = jnp.dot(p_ref[0], c0w[...], preferred_element_type=f32) + c0b[...]
    h = _instnorm(_lrelu(h))                                        # (HW,128)
    h = jnp.dot(h.astype(bf16), c1w[...], preferred_element_type=f32) + c1b[...]
    h = _lrelu(h)                                                   # (HW,256)
    h = jnp.dot(h.astype(bf16), c2w[...], preferred_element_type=f32) + c2b[...]
    seg = _instnorm(_lrelu(h)).astype(bf16)                         # (HW,256)

    # ---- SFT heads (scale|shift conv0 fused into one matmul) -------------
    st0 = _lrelu(jnp.dot(seg, s0w[...], preferred_element_type=f32) + s0b[...])
    st0 = st0.astype(bf16)                                          # (HW,1024)
    c_half = sc1w.shape[0]                                          # 512
    scale = jnp.dot(st0[:, :c_half], sc1w[...],
                    preferred_element_type=f32) + sc1b[...]         # (HW,512)
    shift = jnp.dot(st0[:, c_half:], sh1w[...],
                    preferred_element_type=f32) + sh1b[...]         # (HW,512)

    scale_ref[0] = scale.astype(scale_ref.dtype)
    shift_ref[0] = shift.astype(shift_ref.dtype)

    # ---- bilinear upsample (align_corners=True) as one matmul + fuse ----
    ss = jnp.concatenate([scale, shift], axis=-1)                   # (HW, 2C)
    up = jnp.dot(interp_ref[...], ss, preferred_element_type=f32)   # (HWo,2C)
    C = sc1w.shape[1]
    fused_ref[0] = (x_ref[0] * (up[:, :C] + 1.0)
                    + up[:, C:]).astype(fused_ref.dtype)


# ----------------------------------------------------------------------------
# Plain-JAX glue
# ----------------------------------------------------------------------------
def bilinear_matrix(out_size, in_size):
    """Row-interpolation matrix for bilinear upsample, align_corners=True."""
    rows = jnp.arange(out_size)
    if out_size > 1:
        s = rows.astype(jnp.float32) * (in_size - 1) / (out_size - 1)
    else:
        s = jnp.zeros((out_size,), jnp.float32)
    i0 = jnp.clip(jnp.floor(s).astype(jnp.int32), 0, in_size - 1)
    i1 = jnp.minimum(i0 + 1, in_size - 1)
    frac = s - i0.astype(jnp.float32)
    W = jnp.zeros((out_size, in_size), jnp.float32)
    W = W.at[rows, i0].add(1.0 - frac)
    W = W.at[rows, i1].add(frac)
    return W


def init_params(key):
    """Deterministic synthetic parameters matching the PyTorch module shapes."""
    def conv_w(k, cout, cin, kh, kw):
        return jax.random.normal(k, (cout, cin, kh, kw), jnp.float32) * 0.05

    def bias(k, cout):
        return jax.random.normal(k, (cout,), jnp.float32) * 0.01

    ks = jax.random.split(key, 18)
    p = {}
    # condlayer: Conv2d(19,128,4,stride=4) -> 1x1 convs 128->256->256
    p['c0_w'] = conv_w(ks[0], 128, 19, 4, 4).reshape(128, 19 * 16).T   # (304,128)
    p['c0_b'] = bias(ks[1], 128)
    p['c1_w'] = conv_w(ks[2], 256, 128, 1, 1).reshape(256, 128).T
    p['c1_b'] = bias(ks[3], 256)
    p['c2_w'] = conv_w(ks[4], 256, 256, 1, 1).reshape(256, 256).T
    p['c2_b'] = bias(ks[5], 256)
    # SFT scale / shift branches (all 1x1 convs)
    p['sc0_w'] = conv_w(ks[6], 512, 256, 1, 1).reshape(512, 256).T
    p['sc0_b'] = bias(ks[7], 512)
    p['sc1_w'] = conv_w(ks[8], 512, 512, 1, 1).reshape(512, 512).T
    p['sc1_b'] = bias(ks[9], 512)
    p['sh0_w'] = conv_w(ks[10], 512, 256, 1, 1).reshape(512, 256).T
    p['sh0_b'] = bias(ks[11], 512)
    p['sh1_w'] = conv_w(ks[12], 512, 512, 1, 1).reshape(512, 512).T
    p['sh1_b'] = bias(ks[13], 512)
    return p


def forward(params, x, y):
    """x: (B, 512, Hx, Wx) NCHW;  y: (B, 19, Hy, Wy) NCHW with Hy,Wy % 4 == 0."""
    B, Cx, Hx, Wx = x.shape
    _, Cy, Hy, Wy = y.shape
    assert Cx == 512 and Cy == 19 and Hy % 4 == 0 and Wy % 4 == 0
    Ho, Wo = Hy // 4, Wy // 4
    HW = Ho * Wo          # spatial size of the conditioning feature map
    HWo = Hx * Wx         # spatial size of x (upsample target)
    K0 = Cy * 16

    # --- patches for the 4x4/stride-4 conv, K-padded to 384, bf16 ---------
    p = y.reshape(B, Cy, Ho, 4, Wo, 4).transpose(0, 2, 4, 1, 3, 5)
    patches = p.reshape(B, HW, K0)
    patches = jnp.pad(patches, ((0, 0), (0, 0), (0, K0_PAD - K0)))
    patches = patches.astype(jnp.bfloat16)

    # --- weights: bf16, K-pad c0, fuse sc0/sh0 along N --------------------
    bf16 = jnp.bfloat16
    c0w = jnp.pad(params['c0_w'], ((0, K0_PAD - K0), (0, 0))).astype(bf16)
    c0b = params['c0_b'].reshape(1, -1)
    c1w = params['c1_w'].astype(bf16)
    c1b = params['c1_b'].reshape(1, -1)
    c2w = params['c2_w'].astype(bf16)
    c2b = params['c2_b'].reshape(1, -1)
    s0w = jnp.concatenate([params['sc0_w'], params['sh0_w']], axis=1).astype(bf16)
    s0b = jnp.concatenate([params['sc0_b'], params['sh0_b']]).reshape(1, -1)
    sc1w = params['sc1_w'].astype(bf16)
    sc1b = params['sc1_b'].reshape(1, -1)
    sh1w = params['sh1_w'].astype(bf16)
    sh1b = params['sh1_b'].reshape(1, -1)

    # --- dense bilinear interpolation matrix (small at these sizes) -------
    Wh = bilinear_matrix(Hx, Ho)
    Ww = bilinear_matrix(Wx, Wo)
    interp = jnp.einsum('oh,pw->ophw', Wh, Ww).reshape(HWo, HW)      # (HWo,HW)

    x_flat = x.transpose(0, 2, 3, 1).reshape(B, HWo, Cx)             # NHWC flat

    fused_flat, scale, shift = pl.pallas_call(
        _fused_kernel,
        out_shape=(
            jax.ShapeDtypeStruct((B, HWo, Cx), jnp.float32),
            jax.ShapeDtypeStruct((B, HW, Cx), jnp.float32),
            jax.ShapeDtypeStruct((B, HW, Cx), jnp.float32),
        ),
        grid=(B,),
        in_specs=[
            pl.BlockSpec((1, HW, K0_PAD), lambda b: (b, 0, 0)),      # patches
            pl.BlockSpec((1, HWo, Cx), lambda b: (b, 0, 0)),         # x
            pl.BlockSpec((HWo, HW), lambda b: (0, 0)),               # interp
            pl.BlockSpec(c0w.shape, lambda b: (0, 0)),
            pl.BlockSpec(c0b.shape, lambda b: (0, 0)),
            pl.BlockSpec(c1w.shape, lambda b: (0, 0)),
            pl.BlockSpec(c1b.shape, lambda b: (0, 0)),
            pl.BlockSpec(c2w.shape, lambda b: (0, 0)),
            pl.BlockSpec(c2b.shape, lambda b: (0, 0)),
            pl.BlockSpec(s0w.shape, lambda b: (0, 0)),
            pl.BlockSpec(s0b.shape, lambda b: (0, 0)),
            pl.BlockSpec(sc1w.shape, lambda b: (0, 0)),
            pl.BlockSpec(sc1b.shape, lambda b: (0, 0)),
            pl.BlockSpec(sh1w.shape, lambda b: (0, 0)),
            pl.BlockSpec(sh1b.shape, lambda b: (0, 0)),
        ],
        out_specs=(
            pl.BlockSpec((1, HWo, Cx), lambda b: (b, 0, 0)),
            pl.BlockSpec((1, HW, Cx), lambda b: (b, 0, 0)),
            pl.BlockSpec((1, HW, Cx), lambda b: (b, 0, 0)),
        ),
        compiler_params=pltpu.CompilerParams(
            dimension_semantics=("parallel",),
        ),
    )(patches, x_flat, interp,
      c0w, c0b, c1w, c1b, c2w, c2b, s0w, s0b, sc1w, sc1b, sh1w, sh1b)

    fused = fused_flat.reshape(B, Hx, Wx, Cx).transpose(0, 3, 1, 2)  # NCHW
    scale_nchw = scale.reshape(B, Ho, Wo, Cx).transpose(0, 3, 1, 2)
    shift_nchw = shift.reshape(B, Ho, Wo, Cx).transpose(0, 3, 1, 2)
    return fused, scale_nchw, shift_nchw


# ----------------------------------------------------------------------------
if __name__ == "__main__":
    key = jax.random.PRNGKey(0)
    kp, kx, ky = jax.random.split(key, 3)

    params = init_params(kp)

    # x must have 512 channels (to match the SFT scale/shift); y has 19.
    x = jax.random.normal(kx, (2, 512, 8, 8), jnp.float32)    # NCHW
    y = jax.random.normal(ky, (2, 19, 16, 16), jnp.float32)   # NCHW

    fused, scale, shift = jax.jit(forward)(params, x, y)
    jax.block_until_ready((fused, scale, shift))

    assert fused.shape == (2, 512, 8, 8)
    assert scale.shape == (2, 512, 4, 4)
    assert shift.shape == (2, 512, 4, 4)
    print("KERNEL_OK")
</pallas_src>

<mosaic_0001>
module attributes {stable_mosaic.version = 11 : i64} {
  func.func @_fused_kernel(%arg0: i32, %arg1: memref<1x16x384xbf16, #tpu.memory_space<vmem>>, %arg2: memref<1x64x512xf32, #tpu.memory_space<vmem>>, %arg3: memref<64x16xf32, #tpu.memory_space<vmem>>, %arg4: memref<384x128xbf16, #tpu.memory_space<vmem>>, %arg5: memref<1x128xf32, #tpu.memory_space<vmem>>, %arg6: memref<128x256xbf16, #tpu.memory_space<vmem>>, %arg7: memref<1x256xf32, #tpu.memory_space<vmem>>, %arg8: memref<256x256xbf16, #tpu.memory_space<vmem>>, %arg9: memref<1x256xf32, #tpu.memory_space<vmem>>, %arg10: memref<256x1024xbf16, #tpu.memory_space<vmem>>, %arg11: memref<1x1024xf32, #tpu.memory_space<vmem>>, %arg12: memref<512x512xbf16, #tpu.memory_space<vmem>>, %arg13: memref<1x512xf32, #tpu.memory_space<vmem>>, %arg14: memref<512x512xbf16, #tpu.memory_space<vmem>>, %arg15: memref<1x512xf32, #tpu.memory_space<vmem>>, %arg16: memref<1x64x512xf32, #tpu.memory_space<vmem>>, %arg17: memref<1x16x512xf32, #tpu.memory_space<vmem>>, %arg18: memref<1x16x512xf32, #tpu.memory_space<vmem>>) attributes {dimension_semantics = [#tpu.dimension_semantics<parallel>], iteration_bounds = array<i64: 2>, scalar_prefetch = 0 : i64, scratch_operands = 0 : i64, tpu.core_type = #tpu.core_type<tc>, window_params = [{transform_indices = @transform_0, window_bounds = array<i64: 1, 16, 384>}, {transform_indices = @transform_1, window_bounds = array<i64: 1, 64, 512>}, {pipeline_mode = #tpu.pipeline_mode<synchronous>, transform_indices = @transform_2, window_bounds = array<i64: 64, 16>}, {pipeline_mode = #tpu.pipeline_mode<synchronous>, transform_indices = @transform_3, window_bounds = array<i64: 384, 128>}, {pipeline_mode = #tpu.pipeline_mode<synchronous>, transform_indices = @transform_4, window_bounds = array<i64: 1, 128>}, {pipeline_mode = #tpu.pipeline_mode<synchronous>, transform_indices = @transform_5, window_bounds = array<i64: 128, 256>}, {pipeline_mode = #tpu.pipeline_mode<synchronous>, transform_indices = @transform_6, window_bounds = array<i64: 1, 256>}, {pipeline_mode = #tpu.pipeline_mode<synchronous>, transform_indices = @transform_7, window_bounds = array<i64: 256, 256>}, {pipeline_mode = #tpu.pipeline_mode<synchronous>, transform_indices = @transform_8, window_bounds = array<i64: 1, 256>}, {pipeline_mode = #tpu.pipeline_mode<synchronous>, transform_indices = @transform_9, window_bounds = array<i64: 256, 1024>}, {pipeline_mode = #tpu.pipeline_mode<synchronous>, transform_indices = @transform_10, window_bounds = array<i64: 1, 1024>}, {pipeline_mode = #tpu.pipeline_mode<synchronous>, transform_indices = @transform_11, window_bounds = array<i64: 512, 512>}, {pipeline_mode = #tpu.pipeline_mode<synchronous>, transform_indices = @transform_12, window_bounds = array<i64: 1, 512>}, {pipeline_mode = #tpu.pipeline_mode<synchronous>, transform_indices = @transform_13, window_bounds = array<i64: 512, 512>}, {pipeline_mode = #tpu.pipeline_mode<synchronous>, transform_indices = @transform_14, window_bounds = array<i64: 1, 512>}, {transform_indices = @transform_15, window_bounds = array<i64: 1, 64, 512>}, {transform_indices = @transform_16, window_bounds = array<i64: 1, 16, 512>}, {transform_indices = @transform_17, window_bounds = array<i64: 1, 16, 512>}]} {
    %c0 = arith.constant 0 : index
    %c0_0 = arith.constant 0 : index
    %c0_1 = arith.constant 0 : index
    %0 = vector.load %arg1[%c0, %c0_0, %c0_1] : memref<1x16x384xbf16, #tpu.memory_space<vmem>>, vector<1x16x384xbf16>
    %1 = vector.shape_cast %0 : vector<1x16x384xbf16> to vector<16x384xbf16>
    %c0_2 = arith.constant 0 : index
    %c0_3 = arith.constant 0 : index
    %2 = vector.load %arg4[%c0_2, %c0_3] : memref<384x128xbf16, #tpu.memory_space<vmem>>, vector<384x128xbf16>
    %cst = arith.constant dense<0.000000e+00> : vector<16x128xf32>
    %3 = tpu.matmul %1, %2, %cst {dimension_numbers = #tpu.dot_dimension_numbers<[1], [0], [0], [1], [0, 0, 1, 1], [], []>} : vector<16x384xbf16>, vector<384x128xbf16>, vector<16x128xf32> -> vector<16x128xf32>
    %c0_4 = arith.constant 0 : index
    %c0_5 = arith.constant 0 : index
    %4 = vector.load %arg5[%c0_4, %c0_5] : memref<1x128xf32, #tpu.memory_space<vmem>>, vector<1x128xf32>
    %5 = vector.broadcast %4 : vector<1x128xf32> to vector<16x128xf32>
    %6 = arith.addf %3, %5 : vector<16x128xf32>
    %cst_6 = arith.constant 0.000000e+00 : f32
    %7 = vector.broadcast %cst_6 : f32 to vector<16x128xf32>
    %8 = arith.cmpf oge, %6, %7 : vector<16x128xf32>
    %cst_7 = arith.constant 1.000000e-01 : f32
    %9 = vector.broadcast %cst_7 : f32 to vector<16x128xf32>
    %10 = arith.mulf %9, %6 : vector<16x128xf32>
    %11 = arith.select %8, %6, %10 : vector<16x128xi1>, vector<16x128xf32>
    %cst_8 = arith.constant dense<0.000000e+00> : vector<128xf32>
    %12 = vector.multi_reduction <add>, %11, %cst_8 [0] : vector<16x128xf32> to vector<128xf32>
    %13 = vector.shape_cast %12 : vector<128xf32> to vector<1x128xf32>
    %cst_9 = arith.constant 1.600000e+01 : f32
    %14 = vector.broadcast %cst_9 : f32 to vector<1x128xf32>
    %15 = arith.divf %13, %14 : vector<1x128xf32>
    %16 = arith.mulf %11, %11 : vector<16x128xf32>
    %cst_10 = arith.constant dense<0.000000e+00> : vector<128xf32>
    %17 = vector.multi_reduction <add>, %16, %cst_10 [0] : vector<16x128xf32> to vector<128xf32>
    %18 = vector.shape_cast %17 : vector<128xf32> to vector<1x128xf32>
    %cst_11 = arith.constant 1.600000e+01 : f32
    %19 = vector.broadcast %cst_11 : f32 to vector<1x128xf32>
    %20 = arith.divf %18, %19 : vector<1x128xf32>
    %21 = arith.mulf %15, %15 : vector<1x128xf32>
    %22 = arith.subf %20, %21 : vector<1x128xf32>
    %23 = vector.broadcast %15 : vector<1x128xf32> to vector<16x128xf32>
    %24 = arith.subf %11, %23 : vector<16x128xf32>
    %cst_12 = arith.constant 9.99999974E-6 : f32
    %25 = vector.broadcast %cst_12 : f32 to vector<1x128xf32>
    %26 = arith.addf %22, %25 : vector<1x128xf32>
    %27 = math.rsqrt %26 : vector<1x128xf32>
    %28 = vector.broadcast %27 : vector<1x128xf32> to vector<16x128xf32>
    %29 = arith.mulf %24, %28 : vector<16x128xf32>
    %30 = arith.truncf %29 : vector<16x128xf32> to vector<16x128xbf16>
    %c0_13 = arith.constant 0 : index
    %c0_14 = arith.constant 0 : index
    %31 = vector.load %arg6[%c0_13, %c0_14] : memref<128x256xbf16, #tpu.memory_space<vmem>>, vector<128x256xbf16>
    %cst_15 = arith.constant dense<0.000000e+00> : vector<16x256xf32>
    %32 = tpu.matmul %30, %31, %cst_15 {dimension_numbers = #tpu.dot_dimension_numbers<[1], [0], [0], [1], [0, 0, 1, 1], [], []>} : vector<16x128xbf16>, vector<128x256xbf16>, vector<16x256xf32> -> vector<16x256xf32>
    %c0_16 = arith.constant 0 : index
    %c0_17 = arith.constant 0 : index
    %33 = vector.load %arg7[%c0_16, %c0_17] : memref<1x256xf32, #tpu.memory_space<vmem>>, vector<1x256xf32>
    %34 = vector.broadcast %33 : vector<1x256xf32> to vector<16x256xf32>
    %35 = arith.addf %32, %34 : vector<16x256xf32>
    %cst_18 = arith.constant 0.000000e+00 : f32
    %36 = vector.broadcast %cst_18 : f32 to vector<16x256xf32>
    %37 = arith.cmpf oge, %35, %36 : vector<16x256xf32>
    %cst_19 = arith.constant 1.000000e-01 : f32
    %38 = vector.broadcast %cst_19 : f32 to vector<16x256xf32>
    %39 = arith.mulf %38, %35 : vector<16x256xf32>
    %40 = arith.select %37, %35, %39 : vector<16x256xi1>, vector<16x256xf32>
    %41 = arith.truncf %40 : vector<16x256xf32> to vector<16x256xbf16>
    %c0_20 = arith.constant 0 : index
    %c0_21 = arith.constant 0 : index
    %42 = vector.load %arg8[%c0_20, %c0_21] : memref<256x256xbf16, #tpu.memory_space<vmem>>, vector<256x256xbf16>
    %cst_22 = arith.constant dense<0.000000e+00> : vector<16x256xf32>
    %43 = tpu.matmul %41, %42, %cst_22 {dimension_numbers = #tpu.dot_dimension_numbers<[1], [0], [0], [1], [0, 0, 1, 1], [], []>} : vector<16x256xbf16>, vector<256x256xbf16>, vector<16x256xf32> -> vector<16x256xf32>
    %c0_23 = arith.constant 0 : index
    %c0_24 = arith.constant 0 : index
    %44 = vector.load %arg9[%c0_23, %c0_24] : memref<1x256xf32, #tpu.memory_space<vmem>>, vector<1x256xf32>
    %45 = vector.broadcast %44 : vector<1x256xf32> to vector<16x256xf32>
    %46 = arith.addf %43, %45 : vector<16x256xf32>
    %cst_25 = arith.constant 0.000000e+00 : f32
    %47 = vector.broadcast %cst_25 : f32 to vector<16x256xf32>
    %48 = arith.cmpf oge, %46, %47 : vector<16x256xf32>
    %cst_26 = arith.constant 1.000000e-01 : f32
    %49 = vector.broadcast %cst_26 : f32 to vector<16x256xf32>
    %50 = arith.mulf %49, %46 : vector<16x256xf32>
    %51 = arith.select %48, %46, %50 : vector<16x256xi1>, vector<16x256xf32>
    %cst_27 = arith.constant dense<0.000000e+00> : vector<256xf32>
    %52 = vector.multi_reduction <add>, %51, %cst_27 [0] : vector<16x256xf32> to vector<256xf32>
    %53 = vector.shape_cast %52 : vector<256xf32> to vector<1x256xf32>
    %cst_28 = arith.constant 1.600000e+01 : f32
    %54 = vector.broadcast %cst_28 : f32 to vector<1x256xf32>
    %55 = arith.divf %53, %54 : vector<1x256xf32>
    %56 = arith.mulf %51, %51 : vector<16x256xf32>
    %cst_29 = arith.constant dense<0.000000e+00> : vector<256xf32>
    %57 = vector.multi_reduction <add>, %56, %cst_29 [0] : vector<16x256xf32> to vector<256xf32>
    %58 = vector.shape_cast %57 : vector<256xf32> to vector<1x256xf32>
    %cst_30 = arith.constant 1.600000e+01 : f32
    %59 = vector.broadcast %cst_30 : f32 to vector<1x256xf32>
    %60 = arith.divf %58, %59 : vector<1x256xf32>
    %61 = arith.mulf %55, %55 : vector<1x256xf32>
    %62 = arith.subf %60, %61 : vector<1x256xf32>
    %63 = vector.broadcast %55 : vector<1x256xf32> to vector<16x256xf32>
    %64 = arith.subf %51, %63 : vector<16x256xf32>
    %cst_31 = arith.constant 9.99999974E-6 : f32
    %65 = vector.broadcast %cst_31 : f32 to vector<1x256xf32>
    %66 = arith.addf %62, %65 : vector<1x256xf32>
    %67 = math.rsqrt %66 : vector<1x256xf32>
    %68 = vector.broadcast %67 : vector<1x256xf32> to vector<16x256xf32>
    %69 = arith.mulf %64, %68 : vector<16x256xf32>
    %70 = arith.truncf %69 : vector<16x256xf32> to vector<16x256xbf16>
    %c0_32 = arith.constant 0 : index
    %c0_33 = arith.constant 0 : index
    %71 = vector.load %arg10[%c0_32, %c0_33] : memref<256x1024xbf16, #tpu.memory_space<vmem>>, vector<256x1024xbf16>
    %cst_34 = arith.constant dense<0.000000e+00> : vector<16x1024xf32>
    %72 = tpu.matmul %70, %71, %cst_34 {dimension_numbers = #tpu.dot_dimension_numbers<[1], [0], [0], [1], [0, 0, 1, 1], [], []>} : vector<16x256xbf16>, vector<256x1024xbf16>, vector<16x1024xf32> -> vector<16x1024xf32>
    %c0_35 = arith.constant 0 : index
    %c0_36 = arith.constant 0 : index
    %73 = vector.load %arg11[%c0_35, %c0_36] : memref<1x1024xf32, #tpu.memory_space<vmem>>, vector<1x1024xf32>
    %74 = vector.broadcast %73 : vector<1x1024xf32> to vector<16x1024xf32>
    %75 = arith.addf %72, %74 : vector<16x1024xf32>
    %cst_37 = arith.constant 0.000000e+00 : f32
    %76 = vector.broadcast %cst_37 : f32 to vector<16x1024xf32>
    %77 = arith.cmpf oge, %75, %76 : vector<16x1024xf32>
    %cst_38 = arith.constant 1.000000e-01 : f32
    %78 = vector.broadcast %cst_38 : f32 to vector<16x1024xf32>
    %79 = arith.mulf %78, %75 : vector<16x1024xf32>
    %80 = arith.select %77, %75, %79 : vector<16x1024xi1>, vector<16x1024xf32>
    %81 = arith.truncf %80 : vector<16x1024xf32> to vector<16x1024xbf16>
    %82 = vector.extract_strided_slice %81 {offsets = [0, 0], sizes = [16, 512], strides = [1, 1]} : vector<16x1024xbf16> to vector<16x512xbf16>
    %c0_39 = arith.constant 0 : index
    %c0_40 = arith.constant 0 : index
    %83 = vector.load %arg12[%c0_39, %c0_40] : memref<512x512xbf16, #tpu.memory_space<vmem>>, vector<512x512xbf16>
    %cst_41 = arith.constant dense<0.000000e+00> : vector<16x512xf32>
    %84 = tpu.matmul %82, %83, %cst_41 {dimension_numbers = #tpu.dot_dimension_numbers<[1], [0], [0], [1], [0, 0, 1, 1], [], []>} : vector<16x512xbf16>, vector<512x512xbf16>, vector<16x512xf32> -> vector<16x512xf32>
    %c0_42 = arith.constant 0 : index
    %c0_43 = arith.constant 0 : index
    %85 = vector.load %arg13[%c0_42, %c0_43] : memref<1x512xf32, #tpu.memory_space<vmem>>, vector<1x512xf32>
    %86 = vector.broadcast %85 : vector<1x512xf32> to vector<16x512xf32>
    %87 = arith.addf %84, %86 : vector<16x512xf32>
    %88 = vector.extract_strided_slice %81 {offsets = [0, 512], sizes = [16, 512], strides = [1, 1]} : vector<16x1024xbf16> to vector<16x512xbf16>
    %c0_44 = arith.constant 0 : index
    %c0_45 = arith.constant 0 : index
    %89 = vector.load %arg14[%c0_44, %c0_45] : memref<512x512xbf16, #tpu.memory_space<vmem>>, vector<512x512xbf16>
    %cst_46 = arith.constant dense<0.000000e+00> : vector<16x512xf32>
    %90 = tpu.matmul %88, %89, %cst_46 {dimension_numbers = #tpu.dot_dimension_numbers<[1], [0], [0], [1], [0, 0, 1, 1], [], []>} : vector<16x512xbf16>, vector<512x512xbf16>, vector<16x512xf32> -> vector<16x512xf32>
    %c0_47 = arith.constant 0 : index
    %c0_48 = arith.constant 0 : index
    %91 = vector.load %arg15[%c0_47, %c0_48] : memref<1x512xf32, #tpu.memory_space<vmem>>, vector<1x512xf32>
    %92 = vector.broadcast %91 : vector<1x512xf32> to vector<16x512xf32>
    %93 = arith.addf %90, %92 : vector<16x512xf32>
    %c0_49 = arith.constant 0 : index
    %c0_50 = arith.constant 0 : index
    %c0_51 = arith.constant 0 : index
    %94 = vector.load %arg17[%c0_49, %c0_50, %c0_51] : memref<1x16x512xf32, #tpu.memory_space<vmem>>, vector<1x16x512xf32>
    %95 = vector.shape_cast %94 : vector<1x16x512xf32> to vector<16x512xf32>
    %96 = vector.shape_cast %87 : vector<16x512xf32> to vector<1x16x512xf32>
    tpu.vector_store %arg17[%c0_49, %c0_50, %c0_51], %96 {strides = array<i32>} : memref<1x16x512xf32, #tpu.memory_space<vmem>>, vector<1x16x512xf32>,
    %c0_52 = arith.constant 0 : index
    %c0_53 = arith.constant 0 : index
    %c0_54 = arith.constant 0 : index
    %97 = vector.load %arg18[%c0_52, %c0_53, %c0_54] : memref<1x16x512xf32, #tpu.memory_space<vmem>>, vector<1x16x512xf32>
    %98 = vector.shape_cast %97 : vector<1x16x512xf32> to vector<16x512xf32>
    %99 = vector.shape_cast %93 : vector<16x512xf32> to vector<1x16x512xf32>
    tpu.vector_store %arg18[%c0_52, %c0_53, %c0_54], %99 {strides = array<i32>} : memref<1x16x512xf32, #tpu.memory_space<vmem>>, vector<1x16x512xf32>,
    %100 = tpu.concatenate %87, %93 in 1 : vector<16x512xf32>, vector<16x512xf32> -> vector<16x1024xf32>
    %c0_55 = arith.constant 0 : index
    %c0_56 = arith.constant 0 : index
    %101 = vector.load %arg3[%c0_55, %c0_56] : memref<64x16xf32, #tpu.memory_space<vmem>>, vector<64x16xf32>
    %cst_57 = arith.constant dense<0.000000e+00> : vector<64x1024xf32>
    %102 = tpu.matmul %101, %100, %cst_57 {dimension_numbers = #tpu.dot_dimension_numbers<[1], [0], [0], [1], [0, 0, 1, 1], [], []>} : vector<64x16xf32>, vector<16x1024xf32>, vector<64x1024xf32> -> vector<64x1024xf32>
    %c0_58 = arith.constant 0 : index
    %c0_59 = arith.constant 0 : index
    %c0_60 = arith.constant 0 : index
    %103 = vector.load %arg2[%c0_58, %c0_59, %c0_60] : memref<1x64x512xf32, #tpu.memory_space<vmem>>, vector<1x64x512xf32>
    %104 = vector.shape_cast %103 : vector<1x64x512xf32> to vector<64x512xf32>
    %105 = vector.extract_strided_slice %102 {offsets = [0, 0], sizes = [64, 512], strides = [1, 1]} : vector<64x1024xf32> to vector<64x512xf32>
    %cst_61 = arith.constant 1.000000e+00 : f32
    %106 = vector.broadcast %cst_61 : f32 to vector<64x512xf32>
    %107 = arith.addf %105, %106 : vector<64x512xf32>
    %108 = arith.mulf %104, %107 : vector<64x512xf32>
    %109 = vector.extract_strided_slice %102 {offsets = [0, 512], sizes = [64, 512], strides = [1, 1]} : vector<64x1024xf32> to vector<64x512xf32>
    %110 = arith.addf %108, %109 : vector<64x512xf32>
    %c0_62 = arith.constant 0 : index
    %c0_63 = arith.constant 0 : index
    %c0_64 = arith.constant 0 : index
    %111 = vector.load %arg16[%c0_62, %c0_63, %c0_64] : memref<1x64x512xf32, #tpu.memory_space<vmem>>, vector<1x64x512xf32>
    %112 = vector.shape_cast %111 : vector<1x64x512xf32> to vector<64x512xf32>
    %113 = vector.shape_cast %110 : vector<64x512xf32> to vector<1x64x512xf32>
    tpu.vector_store %arg16[%c0_62, %c0_63, %c0_64], %113 {strides = array<i32>} : memref<1x64x512xf32, #tpu.memory_space<vmem>>, vector<1x64x512xf32>,
    return
  }
  func.func @transform_0(%arg0: i32) -> (i32, i32, i32) {
    %c0_i32 = arith.constant 0 : i32
    %c0_i32_0 = arith.constant 0 : i32
    %c0_i32_1 = arith.constant 0 : i32
    return %arg0, %c0_i32, %c0_i32_0 : i32, i32, i32
  }
  func.func @transform_1(%arg0: i32) -> (i32, i32, i32) {
    %c0_i32 = arith.constant 0 : i32
    %c0_i32_0 = arith.constant 0 : i32
    %c0_i32_1 = arith.constant 0 : i32
    return %arg0, %c0_i32, %c0_i32_0 : i32, i32, i32
  }
  func.func @transform_2(%arg0: i32) -> (i32, i32) {
    %c0_i32 = arith.constant 0 : i32
    %c0_i32_0 = arith.constant 0 : i32
    %c0_i32_1 = arith.constant 0 : i32
    return %c0_i32, %c0_i32_0 : i32, i32
  }
  func.func @transform_3(%arg0: i32) -> (i32, i32) {
    %c0_i32 = arith.constant 0 : i32
    %c0_i32_0 = arith.constant 0 : i32
    %c0_i32_1 = arith.constant 0 : i32
    return %c0_i32, %c0_i32_0 : i32, i32
  }
  func.func @transform_4(%arg0: i32) -> (i32, i32) {
    %c0_i32 = arith.constant 0 : i32
    %c0_i32_0 = arith.constant 0 : i32
    %c0_i32_1 = arith.constant 0 : i32
    return %c0_i32, %c0_i32_0 : i32, i32
  }
  func.func @transform_5(%arg0: i32) -> (i32, i32) {
    %c0_i32 = arith.constant 0 : i32
    %c0_i32_0 = arith.constant 0 : i32
    %c0_i32_1 = arith.constant 0 : i32
    return %c0_i32, %c0_i32_0 : i32, i32
  }
  func.func @transform_6(%arg0: i32) -> (i32, i32) {
    %c0_i32 = arith.constant 0 : i32
    %c0_i32_0 = arith.constant 0 : i32
    %c0_i32_1 = arith.constant 0 : i32
    return %c0_i32, %c0_i32_0 : i32, i32
  }
  func.func @transform_7(%arg0: i32) -> (i32, i32) {
    %c0_i32 = arith.constant 0 : i32
    %c0_i32_0 = arith.constant 0 : i32
    %c0_i32_1 = arith.constant 0 : i32
    return %c0_i32, %c0_i32_0 : i32, i32
  }
  func.func @transform_8(%arg0: i32) -> (i32, i32) {
    %c0_i32 = arith.constant 0 : i32
    %c0_i32_0 = arith.constant 0 : i32
    %c0_i32_1 = arith.constant 0 : i32
    return %c0_i32, %c0_i32_0 : i32, i32
  }
  func.func @transform_9(%arg0: i32) -> (i32, i32) {
    %c0_i32 = arith.constant 0 : i32
    %c0_i32_0 = arith.constant 0 : i32
    %c0_i32_1 = arith.constant 0 : i32
    return %c0_i32, %c0_i32_0 : i32, i32
  }
  func.func @transform_10(%arg0: i32) -> (i32, i32) {
    %c0_i32 = arith.constant 0 : i32
    %c0_i32_0 = arith.constant 0 : i32
    %c0_i32_1 = arith.constant 0 : i32
    return %c0_i32, %c0_i32_0 : i32, i32
  }
  func.func @transform_11(%arg0: i32) -> (i32, i32) {
    %c0_i32 = arith.constant 0 : i32
    %c0_i32_0 = arith.constant 0 : i32
    %c0_i32_1 = arith.constant 0 : i32
    return %c0_i32, %c0_i32_0 : i32, i32
  }
  func.func @transform_12(%arg0: i32) -> (i32, i32) {
    %c0_i32 = arith.constant 0 : i32
    %c0_i32_0 = arith.constant 0 : i32
    %c0_i32_1 = arith.constant 0 : i32
    return %c0_i32, %c0_i32_0 : i32, i32
  }
  func.func @transform_13(%arg0: i32) -> (i32, i32) {
    %c0_i32 = arith.constant 0 : i32
    %c0_i32_0 = arith.constant 0 : i32
    %c0_i32_1 = arith.constant 0 : i32
    return %c0_i32, %c0_i32_0 : i32, i32
  }
  func.func @transform_14(%arg0: i32) -> (i32, i32) {
    %c0_i32 = arith.constant 0 : i32
    %c0_i32_0 = arith.constant 0 : i32
    %c0_i32_1 = arith.constant 0 : i32
    return %c0_i32, %c0_i32_0 : i32, i32
  }
  func.func @transform_15(%arg0: i32) -> (i32, i32, i32) {
    %c0_i32 = arith.constant 0 : i32
    %c0_i32_0 = arith.constant 0 : i32
    %c0_i32_1 = arith.constant 0 : i32
    return %arg0, %c0_i32, %c0_i32_0 : i32, i32, i32
  }
  func.func @transform_16(%arg0: i32) -> (i32, i32, i32) {
    %c0_i32 = arith.constant 0 : i32
    %c0_i32_0 = arith.constant 0 : i32
    %c0_i32_1 = arith.constant 0 : i32
    return %arg0, %c0_i32, %c0_i32_0 : i32, i32, i32
  }
  func.func @transform_17(%arg0: i32) -> (i32, i32, i32) {
    %c0_i32 = arith.constant 0 : i32
    %c0_i32_0 = arith.constant 0 : i32
    %c0_i32_1 = arith.constant 0 : i32
    return %arg0, %c0_i32, %c0_i32_0 : i32, i32, i32
  }
}

</mosaic_0001>

<llo_original>
// kernel: forward.1
$region0: #{forward.1}
  #allocation0 [shape = 'u32[]', space=smem, size = 0x4, offset = 0x4, fixed_abs, tag = 'smem constant byte address 0x4 - core index']
  #allocation1 [shape = 'u32[144,128]{1,0:T(1,128)}', space=vmem, size = 0x12000, scoped, tag = 'internal scratch']
  %s0 = inlined_call_operand.vmem [shape: bf16[2,16,384], index: 0, kind: input, shape index: {}]
  %s1 = inlined_call_operand.vmem [shape: f32[2,64,512], index: 1, kind: input, shape index: {}]
  %s2 = inlined_call_operand.vmem [shape: f32[64,16], index: 2, kind: input, shape index: {}]
  %s3 = inlined_call_operand.vmem [shape: bf16[384,128], index: 3, kind: input, shape index: {}]
  %s4 = inlined_call_operand.vmem [shape: f32[1,128], index: 4, kind: input, shape index: {}]
  %s5 = inlined_call_operand.vmem [shape: bf16[128,256], index: 5, kind: input, shape index: {}]
  %s6 = inlined_call_operand.vmem [shape: f32[1,256], index: 6, kind: input, shape index: {}]
  %s7 = inlined_call_operand.vmem [shape: bf16[256,256], index: 7, kind: input, shape index: {}]
  %s8 = inlined_call_operand.vmem [shape: f32[1,256], index: 8, kind: input, shape index: {}]
  %s9 = inlined_call_operand.vmem [shape: bf16[256,1024], index: 9, kind: input, shape index: {}]
  %s10 = inlined_call_operand.vmem [shape: f32[1,1024], index: 10, kind: input, shape index: {}]
  %s11 = inlined_call_operand.vmem [shape: bf16[512,512], index: 11, kind: input, shape index: {}]
  %s12 = inlined_call_operand.vmem [shape: f32[1,512], index: 12, kind: input, shape index: {}]
  %s13 = inlined_call_operand.vmem [shape: bf16[512,512], index: 13, kind: input, shape index: {}]
  %s14 = inlined_call_operand.vmem [shape: f32[1,512], index: 14, kind: input, shape index: {}]
  %s15 = inlined_call_operand.hbm [shape: f32[2,64,512], index: 15, kind: output, shape index: {0}]
  %s16 = inlined_call_operand.vmem [shape: f32[2,16,512], index: 16, kind: output, shape index: {1}]
  %s17 = inlined_call_operand.vmem [shape: f32[2,16,512], index: 17, kind: output, shape index: {2}]
  %18 = xla_tuple %s15, %s16, %s17
  %s19 = sld [smem:[#allocation0]]
  $region109: #{forward.1} parent=0
    _
  %s21 = ssub.s32 1, %s19
  %s22 = scalar_select 0, %s21, %s19
  $region1: #{forward.1} parent=0
    #allocation2 [shape = 'u8[262144]{0}', space=vmem, size = 0x40000, scoped, tag = 'output window, operand 0']
    #allocation3 [shape = 's32[2]{0}', space=sflag, size = 0x8, scoped, tag = 'scoped memory for forward.1']
    %23 = vsyncpa [#allocation3], 0
    %s24 = scalar_lea.sflag [#allocation3], 1
    %25 = vsyncpa %s24, 0
    loop: start=0, step=1, limit=4
    $region2: #{forward.1} parent=1 // loop_pre_header
      _
    $region3: #{forward.1} parent=1 // loop_header
      %s27 = sphi 0, %s31
      %p28 = scmp.ge.s32.totalorder %s27, 4
      %s37 = sphi 0, %s39
      %s40 = sphi 0, %s37
      %s41 = sphi 0, %s40
      %s57 = sphi 0, %s41
      %s63 = sphi 0, %s65
      %s66 = sphi 0, %s63
      %s67 = sphi 0, %s66
      %s83 = sphi 0, %s67
      %s87 = sphi 0, %s87
      %s89 = sphi 0, %s87
      %s90 = sphi 0, %s89
      %s104 = sphi 0, %s90
      %s108 = sphi 0, %s108
      %s110 = sphi 0, %s108
      %s111 = sphi 0, %s110
      %s125 = sphi 0, %s111
      %s129 = sphi 0, %s129
      %s131 = sphi 0, %s129
      %s132 = sphi 0, %s131
      %s146 = sphi 0, %s132
      %s150 = sphi 0, %s150
      %s152 = sphi 0, %s150
      %s153 = sphi 0, %s152
      %s167 = sphi 0, %s153
      %s171 = sphi 0, %s171
      %s173 = sphi 0, %s171
      %s174 = sphi 0, %s173
      %s188 = sphi 0, %s174
      %s192 = sphi 0, %s192
      %s194 = sphi 0, %s192
      %s195 = sphi 0, %s194
      %s209 = sphi 0, %s195
      %s213 = sphi 0, %s213
      %s215 = sphi 0, %s213
      %s216 = sphi 0, %s215
      %s230 = sphi 0, %s216
      %s234 = sphi 0, %s234
      %s236 = sphi 0, %s234
      %s237 = sphi 0, %s236
      %s251 = sphi 0, %s237
      %s255 = sphi 0, %s255
      %s257 = sphi 0, %s255
      %s258 = sphi 0, %s257
      %s272 = sphi 0, %s258
      %s276 = sphi 0, %s276
      %s278 = sphi 0, %s276
      %s279 = sphi 0, %s278
      %s293 = sphi 0, %s279
      %s297 = sphi 0, %s297
      %s299 = sphi 0, %s297
      %s300 = sphi 0, %s299
      %s314 = sphi 0, %s300
      %s318 = sphi 0, %s318
      %s320 = sphi 0, %s318
      %s321 = sphi 0, %s320
      %s335 = sphi 0, %s321
      %s339 = sphi 0, %s339
      %s341 = sphi 0, %s339
      %s342 = sphi 0, %s341
      %s356 = sphi 0, %s342
      %s362 = sphi 0, %s364
      %s365 = sphi 0, %s362
      %s366 = sphi 0, %s365
      %s382 = sphi 0, %s366
      %s388 = sphi 0, %s390
      %s391 = sphi 0, %s388
      %s392 = sphi 0, %s391
      %s408 = sphi 0, %s392
      %s414 = sphi 0, %s416
      %s417 = sphi 0, %s414
      %s418 = sphi 0, %s417
      %s434 = sphi 0, %s418
    $region4: #{forward.1} parent=1 // loop_header_branch
      %30 = sbr.rel (%p28) target = $region8
    $region5: #{forward.1} parent=1 // loop_body
      %s32 = ssub.s32 %s27, 1
      %s33 = ssub.s32 %s27, 2
      %s34 = sadd.s32 %s27, 1
      %s35 = ssub.s32 %s27, %s34
      %p36 = scmp.eq.s32.totalorder %s35, 0
      %s38 = sadd.s32 %s37, 1
      %s39 = scalar_select %p36, %s37, %s38
      %p42 = pneg %p36
      %p43 = scmp.eq.s32.totalorder %s27, 1
      %p44 = por %p42, %p43
      %p45 = scmp.ne.s32.totalorder %s37, %s40
      %p46 = scmp.eq.s32.totalorder %s27, 0
      %p47 = por %p45, %p46
      %p48 = scmp.ne.s32.totalorder %s37, %s40
      %p49 = scmp.eq.s32.totalorder %s32, 1
      %p50 = por %p48, %p49
      %p51 = scmp.ne.s32.totalorder %s40, %s41
      %p52 = scmp.eq.s32.totalorder %s32, 0
      %p53 = por %p51, %p52
      %p54 = scmp.ne.s32.totalorder %s40, %s41
      %p55 = scmp.eq.s32.totalorder %s33, 1
      %p56 = por %p54, %p55
      %p58 = scmp.ne.s32.totalorder %s41, %s57
      %p59 = scmp.eq.s32.totalorder %s33, 0
      %p60 = por %p58, %p59
      %s61 = ssub.s32 %s27, %s34
      %p62 = scmp.eq.s32.totalorder %s61, 0
      %s64 = sadd.s32 %s63, 1
      %s65 = scalar_select %p62, %s63, %s64
      %p68 = pneg %p62
      %p69 = scmp.eq.s32.totalorder %s27, 1
      %p70 = por %p68, %p69
      %p71 = scmp.ne.s32.totalorder %s63, %s66
      %p72 = scmp.eq.s32.totalorder %s27, 0
      %p73 = por %p71, %p72
      %p74 = scmp.ne.s32.totalorder %s63, %s66
      %p75 = scmp.eq.s32.totalorder %s32, 1
      %p76 = por %p74, %p75
      %p77 = scmp.ne.s32.totalorder %s66, %s67
      %p78 = scmp.eq.s32.totalorder %s32, 0
      %p79 = por %p77, %p78
      %p80 = scmp.ne.s32.totalorder %s66, %s67
      %p81 = scmp.eq.s32.totalorder %s33, 1
      %p82 = por %p80, %p81
      %p84 = scmp.ne.s32.totalorder %s67, %s83
      %p85 = scmp.eq.s32.totalorder %s33, 0
      %p86 = por %p84, %p85
      %s88 = sadd.s32 %s87, 1
      %p91 = scmp.eq.s32.totalorder %s27, 1
      %p92 = scmp.ne.s32.totalorder %s87, %s89
      %p93 = scmp.eq.s32.totalorder %s27, 0
      %p94 = por %p92, %p93
      %p95 = scmp.ne.s32.totalorder %s87, %s89
      %p96 = scmp.eq.s32.totalorder %s32, 1
      %p97 = por %p95, %p96
      %p98 = scmp.ne.s32.totalorder %s89, %s90
      %p99 = scmp.eq.s32.totalorder %s32, 0
      %p100 = por %p98, %p99
      %p101 = scmp.ne.s32.totalorder %s89, %s90
      %p102 = scmp.eq.s32.totalorder %s33, 1
      %p103 = por %p101, %p102
      %p105 = scmp.ne.s32.totalorder %s90, %s104
      %p106 = scmp.eq.s32.totalorder %s33, 0
      %p107 = por %p105, %p106
      %s109 = sadd.s32 %s108, 1
      %p112 = scmp.eq.s32.totalorder %s27, 1
      %p113 = scmp.ne.s32.totalorder %s108, %s110
      %p114 = scmp.eq.s32.totalorder %s27, 0
      %p115 = por %p113, %p114
      %p116 = scmp.ne.s32.totalorder %s108, %s110
      %p117 = scmp.eq.s32.totalorder %s32, 1
      %p118 = por %p116, %p117
      %p119 = scmp.ne.s32.totalorder %s110, %s111
      %p120 = scmp.eq.s32.totalorder %s32, 0
      %p121 = por %p119, %p120
      %p122 = scmp.ne.s32.totalorder %s110, %s111
      %p123 = scmp.eq.s32.totalorder %s33, 1
      %p124 = por %p122, %p123
      %p126 = scmp.ne.s32.totalorder %s111, %s125
      %p127 = scmp.eq.s32.totalorder %s33, 0
      %p128 = por %p126, %p127
      %s130 = sadd.s32 %s129, 1
      %p133 = scmp.eq.s32.totalorder %s27, 1
      %p134 = scmp.ne.s32.totalorder %s129, %s131
      %p135 = scmp.eq.s32.totalorder %s27, 0
      %p136 = por %p134, %p135
      %p137 = scmp.ne.s32.totalorder %s129, %s131
      %p138 = scmp.eq.s32.totalorder %s32, 1
      %p139 = por %p137, %p138
      %p140 = scmp.ne.s32.totalorder %s131, %s132
      %p141 = scmp.eq.s32.totalorder %s32, 0
      %p142 = por %p140, %p141
      %p143 = scmp.ne.s32.totalorder %s131, %s132
      %p144 = scmp.eq.s32.totalorder %s33, 1
      %p145 = por %p143, %p144
      %p147 = scmp.ne.s32.totalorder %s132, %s146
      %p148 = scmp.eq.s32.totalorder %s33, 0
      %p149 = por %p147, %p148
      %s151 = sadd.s32 %s150, 1
      %p154 = scmp.eq.s32.totalorder %s27, 1
      %p155 = scmp.ne.s32.totalorder %s150, %s152
      %p156 = scmp.eq.s32.totalorder %s27, 0
      %p157 = por %p155, %p156
      %p158 = scmp.ne.s32.totalorder %s150, %s152
      %p159 = scmp.eq.s32.totalorder %s32, 1
      %p160 = por %p158, %p159
      %p161 = scmp.ne.s32.totalorder %s152, %s153
      %p162 = scmp.eq.s32.totalorder %s32, 0
      %p163 = por %p161, %p162
      %p164 = scmp.ne.s32.totalorder %s152, %s153
      %p165 = scmp.eq.s32.totalorder %s33, 1
      %p166 = por %p164, %p165
      %p168 = scmp.ne.s32.totalorder %s153, %s167
      %p169 = scmp.eq.s32.totalorder %s33, 0
      %p170 = por %p168, %p169
      %s172 = sadd.s32 %s171, 1
      %p175 = scmp.eq.s32.totalorder %s27, 1
      %p176 = scmp.ne.s32.totalorder %s171, %s173
      %p177 = scmp.eq.s32.totalorder %s27, 0
      %p178 = por %p176, %p177
      %p179 = scmp.ne.s32.totalorder %s171, %s173
      %p180 = scmp.eq.s32.totalorder %s32, 1
      %p181 = por %p179, %p180
      %p182 = scmp.ne.s32.totalorder %s173, %s174
      %p183 = scmp.eq.s32.totalorder %s32, 0
      %p184 = por %p182, %p183
      %p185 = scmp.ne.s32.totalorder %s173, %s174
      %p186 = scmp.eq.s32.totalorder %s33, 1
      %p187 = por %p185, %p186
      %p189 = scmp.ne.s32.totalorder %s174, %s188
      %p190 = scmp.eq.s32.totalorder %s33, 0
      %p191 = por %p189, %p190
      %s193 = sadd.s32 %s192, 1
      %p196 = scmp.eq.s32.totalorder %s27, 1
      %p197 = scmp.ne.s32.totalorder %s192, %s194
      %p198 = scmp.eq.s32.totalorder %s27, 0
      %p199 = por %p197, %p198
      %p200 = scmp.ne.s32.totalorder %s192, %s194
      %p201 = scmp.eq.s32.totalorder %s32, 1
      %p202 = por %p200, %p201
      %p203 = scmp.ne.s32.totalorder %s194, %s195
      %p204 = scmp.eq.s32.totalorder %s32, 0
      %p205 = por %p203, %p204
      %p206 = scmp.ne.s32.totalorder %s194, %s195
      %p207 = scmp.eq.s32.totalorder %s33, 1
      %p208 = por %p206, %p207
      %p210 = scmp.ne.s32.totalorder %s195, %s209
      %p211 = scmp.eq.s32.totalorder %s33, 0
      %p212 = por %p210, %p211
      %s214 = sadd.s32 %s213, 1
      %p217 = scmp.eq.s32.totalorder %s27, 1
      %p218 = scmp.ne.s32.totalorder %s213, %s215
      %p219 = scmp.eq.s32.totalorder %s27, 0
      %p220 = por %p218, %p219
      %p221 = scmp.ne.s32.totalorder %s213, %s215
      %p222 = scmp.eq.s32.totalorder %s32, 1
      %p223 = por %p221, %p222
      %p224 = scmp.ne.s32.totalorder %s215, %s216
      %p225 = scmp.eq.s32.totalorder %s32, 0
      %p226 = por %p224, %p225
      %p227 = scmp.ne.s32.totalorder %s215, %s216
      %p228 = scmp.eq.s32.totalorder %s33, 1
      %p229 = por %p227, %p228
      %p231 = scmp.ne.s32.totalorder %s216, %s230
      %p232 = scmp.eq.s32.totalorder %s33, 0
      %p233 = por %p231, %p232
      %s235 = sadd.s32 %s234, 1
      %p238 = scmp.eq.s32.totalorder %s27, 1
      %p239 = scmp.ne.s32.totalorder %s234, %s236
      %p240 = scmp.eq.s32.totalorder %s27, 0
      %p241 = por %p239, %p240
      %p242 = scmp.ne.s32.totalorder %s234, %s236
      %p243 = scmp.eq.s32.totalorder %s32, 1
      %p244 = por %p242, %p243
      %p245 = scmp.ne.s32.totalorder %s236, %s237
      %p246 = scmp.eq.s32.totalorder %s32, 0
      %p247 = por %p245, %p246
      %p248 = scmp.ne.s32.totalorder %s236, %s237
      %p249 = scmp.eq.s32.totalorder %s33, 1
      %p250 = por %p248, %p249
      %p252 = scmp.ne.s32.totalorder %s237, %s251
      %p253 = scmp.eq.s32.totalorder %s33, 0
      %p254 = por %p252, %p253
      %s256 = sadd.s32 %s255, 1
      %p259 = scmp.eq.s32.totalorder %s27, 1
      %p260 = scmp.ne.s32.totalorder %s255, %s257
      %p261 = scmp.eq.s32.totalorder %s27, 0
      %p262 = por %p260, %p261
      %p263 = scmp.ne.s32.totalorder %s255, %s257
      %p264 = scmp.eq.s32.totalorder %s32, 1
      %p265 = por %p263, %p264
      %p266 = scmp.ne.s32.totalorder %s257, %s258
      %p267 = scmp.eq.s32.totalorder %s32, 0
      %p268 = por %p266, %p267
      %p269 = scmp.ne.s32.totalorder %s257, %s258
      %p270 = scmp.eq.s32.totalorder %s33, 1
      %p271 = por %p269, %p270
      %p273 = scmp.ne.s32.totalorder %s258, %s272
      %p274 = scmp.eq.s32.totalorder %s33, 0
      %p275 = por %p273, %p274
      %s277 = sadd.s32 %s276, 1
      %p280 = scmp.eq.s32.totalorder %s27, 1
      %p281 = scmp.ne.s32.totalorder %s276, %s278
      %p282 = scmp.eq.s32.totalorder %s27, 0
      %p283 = por %p281, %p282
      %p284 = scmp.ne.s32.totalorder %s276, %s278
      %p285 = scmp.eq.s32.totalorder %s32, 1
      %p286 = por %p284, %p285
      %p287 = scmp.ne.s32.totalorder %s278, %s279
      %p288 = scmp.eq.s32.totalorder %s32, 0
      %p289 = por %p287, %p288
      %p290 = scmp.ne.s32.totalorder %s278, %s279
      %p291 = scmp.eq.s32.totalorder %s33, 1
      %p292 = por %p290, %p291
      %p294 = scmp.ne.s32.totalorder %s279, %s293
      %p295 = scmp.eq.s32.totalorder %s33, 0
      %p296 = por %p294, %p295
      %s298 = sadd.s32 %s297, 1
      %p301 = scmp.eq.s32.totalorder %s27, 1
      %p302 = scmp.ne.s32.totalorder %s297, %s299
      %p303 = scmp.eq.s32.totalorder %s27, 0
      %p304 = por %p302, %p303
      %p305 = scmp.ne.s32.totalorder %s297, %s299
      %p306 = scmp.eq.s32.totalorder %s32, 1
      %p307 = por %p305, %p306
      %p308 = scmp.ne.s32.totalorder %s299, %s300
      %p309 = scmp.eq.s32.totalorder %s32, 0
      %p310 = por %p308, %p309
      %p311 = scmp.ne.s32.totalorder %s299, %s300
      %p312 = scmp.eq.s32.totalorder %s33, 1
      %p313 = por %p311, %p312
      %p315 = scmp.ne.s32.totalorder %s300, %s314
      %p316 = scmp.eq.s32.totalorder %s33, 0
      %p317 = por %p315, %p316
      %s319 = sadd.s32 %s318, 1
      %p322 = scmp.eq.s32.totalorder %s27, 1
      %p323 = scmp.ne.s32.totalorder %s318, %s320
      %p324 = scmp.eq.s32.totalorder %s27, 0
      %p325 = por %p323, %p324
      %p326 = scmp.ne.s32.totalorder %s318, %s320
      %p327 = scmp.eq.s32.totalorder %s32, 1
      %p328 = por %p326, %p327
      %p329 = scmp.ne.s32.totalorder %s320, %s321
      %p330 = scmp.eq.s32.totalorder %s32, 0
      %p331 = por %p329, %p330
      %p332 = scmp.ne.s32.totalorder %s320, %s321
      %p333 = scmp.eq.s32.totalorder %s33, 1
      %p334 = por %p332, %p333
      %p336 = scmp.ne.s32.totalorder %s321, %s335
      %p337 = scmp.eq.s32.totalorder %s33, 0
      %p338 = por %p336, %p337
      %s340 = sadd.s32 %s339, 1
      %p343 = scmp.eq.s32.totalorder %s27, 1
      %p344 = scmp.ne.s32.totalorder %s339, %s341
      %p345 = scmp.eq.s32.totalorder %s27, 0
      %p346 = por %p344, %p345
      %p347 = scmp.ne.s32.totalorder %s339, %s341
      %p348 = scmp.eq.s32.totalorder %s32, 1
      %p349 = por %p347, %p348
      %p350 = scmp.ne.s32.totalorder %s341, %s342
      %p351 = scmp.eq.s32.totalorder %s32, 0
      %p352 = por %p350, %p351
      %p353 = scmp.ne.s32.totalorder %s341, %s342
      %p354 = scmp.eq.s32.totalorder %s33, 1
      %p355 = por %p353, %p354
      %p357 = scmp.ne.s32.totalorder %s342, %s356
      %p358 = scmp.eq.s32.totalorder %s33, 0
      %p359 = por %p357, %p358
      %s360 = ssub.s32 %s27, %s34
      %p361 = scmp.eq.s32.totalorder %s360, 0
      %s363 = sadd.s32 %s362, 1
      %s364 = scalar_select %p361, %s362, %s363
      %p367 = pneg %p361
      %p368 = scmp.eq.s32.totalorder %s27, 1
      %p369 = por %p367, %p368
      %p370 = scmp.ne.s32.totalorder %s362, %s365
      %p371 = scmp.eq.s32.totalorder %s27, 0
      %p372 = por %p370, %p371
      %p373 = scmp.ne.s32.totalorder %s362, %s365
      %p374 = scmp.eq.s32.totalorder %s32, 1
      %p375 = por %p373, %p374
      %p376 = scmp.ne.s32.totalorder %s365, %s366
      %p377 = scmp.eq.s32.totalorder %s32, 0
      %p378 = por %p376, %p377
      %p379 = scmp.ne.s32.totalorder %s365, %s366
      %p380 = scmp.eq.s32.totalorder %s33, 1
      %p381 = por %p379, %p380
      %p383 = scmp.ne.s32.totalorder %s366, %s382
      %p384 = scmp.eq.s32.totalorder %s33, 0
      %p385 = por %p383, %p384
      %s386 = ssub.s32 %s27, %s34
      %p387 = scmp.eq.s32.totalorder %s386, 0
      %s389 = sadd.s32 %s388, 1
      %s390 = scalar_select %p387, %s388, %s389
      %p393 = pneg %p387
      %p394 = scmp.eq.s32.totalorder %s27, 1
      %p395 = por %p393, %p394
      %p396 = scmp.ne.s32.totalorder %s388, %s391
      %p397 = scmp.eq.s32.totalorder %s27, 0
      %p398 = por %p396, %p397
      %p399 = scmp.ne.s32.totalorder %s388, %s391
      %p400 = scmp.eq.s32.totalorder %s32, 1
      %p401 = por %p399, %p400
      %p402 = scmp.ne.s32.totalorder %s391, %s392
      %p403 = scmp.eq.s32.totalorder %s32, 0
      %p404 = por %p402, %p403
      %p405 = scmp.ne.s32.totalorder %s391, %s392
      %p406 = scmp.eq.s32.totalorder %s33, 1
      %p407 = por %p405, %p406
      %p409 = scmp.ne.s32.totalorder %s392, %s408
      %p410 = scmp.eq.s32.totalorder %s33, 0
      %p411 = por %p409, %p410
      %s412 = ssub.s32 %s27, %s34
      %p413 = scmp.eq.s32.totalorder %s412, 0
      %s415 = sadd.s32 %s414, 1
      %s416 = scalar_select %p413, %s414, %s415
      %p419 = pneg %p413
      %p420 = scmp.eq.s32.totalorder %s27, 1
      %p421 = por %p419, %p420
      %p422 = scmp.ne.s32.totalorder %s414, %s417
      %p423 = scmp.eq.s32.totalorder %s27, 0
      %p424 = por %p422, %p423
      %p425 = scmp.ne.s32.totalorder %s414, %s417
      %p426 = scmp.eq.s32.totalorder %s32, 1
      %p427 = por %p425, %p426
      %p428 = scmp.ne.s32.totalorder %s417, %s418
      %p429 = scmp.eq.s32.totalorder %s32, 0
      %p430 = por %p428, %p429
      %p431 = scmp.ne.s32.totalorder %s417, %s418
      %p432 = scmp.eq.s32.totalorder %s33, 1
      %p433 = por %p431, %p432
      %p435 = scmp.ne.s32.totalorder %s418, %s434
      %p436 = scmp.eq.s32.totalorder %s33, 0
      %p437 = por %p435, %p436
      %p438 = scmp.le.s32.totalorder 1, %s27
      %p439 = scmp.lt.s32.totalorder %s27, 3
      %p440 = pnand %p438, %p439
      %p441 = pneg %p440
      // Predicated region
      $region9: #{forward.1} parent=5 // pred_check
        _
      $region10: #{forward.1} parent=5 // pred_check_branch
        %443 = sbr.rel (%p440) target = $region12
      $region11: #{forward.1} parent=5 // pred_region
        %s444 = ssub.s32 %s27, 1
        // Predicated region
        $region13: #{forward.1} parent=11 // pred_check
          %p445 = pneg %p100
        $region14: #{forward.1} parent=11 // pred_check_branch
          %447 = sbr.rel (%p445) target = $region16
        $region15: #{forward.1} parent=11 // pred_region
          _
        $region16: #{forward.1} parent=11 // pred_fallthru
          _
        // Predicated region
        $region17: #{forward.1} parent=11 // pred_check
          %p448 = pneg %p121
        $region18: #{forward.1} parent=11 // pred_check_branch
          %450 = sbr.rel (%p448) target = $region20
        $region19: #{forward.1} parent=11 // pred_region
          _
        $region20: #{forward.1} parent=11 // pred_fallthru
          _
        // Predicated region
        $region21: #{forward.1} parent=11 // pred_check
          %p451 = pneg %p142
        $region22: #{forward.1} parent=11 // pred_check_branch
          %453 = sbr.rel (%p451) target = $region24
        $region23: #{forward.1} parent=11 // pred_region
          _
        $region24: #{forward.1} parent=11 // pred_fallthru
          _
        // Predicated region
        $region25: #{forward.1} parent=11 // pred_check
          %p454 = pneg %p163
        $region26: #{forward.1} parent=11 // pred_check_branch
          %456 = sbr.rel (%p454) target = $region28
        $region27: #{forward.1} parent=11 // pred_region
          _
        $region28: #{forward.1} parent=11 // pred_fallthru
          _
        // Predicated region
        $region29: #{forward.1} parent=11 // pred_check
          %p457 = pneg %p184
        $region30: #{forward.1} parent=11 // pred_check_branch
          %459 = sbr.rel (%p457) target = $region32
        $region31: #{forward.1} parent=11 // pred_region
          _
        $region32: #{forward.1} parent=11 // pred_fallthru
          _
        // Predicated region
        $region33: #{forward.1} parent=11 // pred_check
          %p460 = pneg %p205
        $region34: #{forward.1} parent=11 // pred_check_branch
          %462 = sbr.rel (%p460) target = $region36
        $region35: #{forward.1} parent=11 // pred_region
          _
        $region36: #{forward.1} parent=11 // pred_fallthru
          _
        // Predicated region
        $region37: #{forward.1} parent=11 // pred_check
          %p463 = pneg %p226
        $region38: #{forward.1} parent=11 // pred_check_branch
          %465 = sbr.rel (%p463) target = $region40
        $region39: #{forward.1} parent=11 // pred_region
          _
        $region40: #{forward.1} parent=11 // pred_fallthru
          _
        // Predicated region
        $region41: #{forward.1} parent=11 // pred_check
          %p466 = pneg %p247
        $region42: #{forward.1} parent=11 // pred_check_branch
          %468 = sbr.rel (%p466) target = $region44
        $region43: #{forward.1} parent=11 // pred_region
          _
        $region44: #{forward.1} parent=11 // pred_fallthru
          _
        // Predicated region
        $region45: #{forward.1} parent=11 // pred_check
          %p469 = pneg %p268
        $region46: #{forward.1} parent=11 // pred_check_branch
          %471 = sbr.rel (%p469) target = $region48
        $region47: #{forward.1} parent=11 // pred_region
          _
        $region48: #{forward.1} parent=11 // pred_fallthru
          _
        // Predicated region
        $region49: #{forward.1} parent=11 // pred_check
          %p472 = pneg %p289
        $region50: #{forward.1} parent=11 // pred_check_branch
          %474 = sbr.rel (%p472) target = $region52
        $region51: #{forward.1} parent=11 // pred_region
          _
        $region52: #{forward.1} parent=11 // pred_fallthru
          _
        // Predicated region
        $region53: #{forward.1} parent=11 // pred_check
          %p475 = pneg %p310
        $region54: #{forward.1} parent=11 // pred_check_branch
          %477 = sbr.rel (%p475) target = $region56
        $region55: #{forward.1} parent=11 // pred_region
          _
        $region56: #{forward.1} parent=11 // pred_fallthru
          _
        // Predicated region
        $region57: #{forward.1} parent=11 // pred_check
          %p478 = pneg %p331
        $region58: #{forward.1} parent=11 // pred_check_branch
          %480 = sbr.rel (%p478) target = $region60
        $region59: #{forward.1} parent=11 // pred_region
          _
        $region60: #{forward.1} parent=11 // pred_fallthru
          _
        // Predicated region
        $region61: #{forward.1} parent=11 // pred_check
          %p481 = pneg %p352
        $region62: #{forward.1} parent=11 // pred_check_branch
          %483 = sbr.rel (%p481) target = $region64
        $region63: #{forward.1} parent=11 // pred_region
          _
        $region64: #{forward.1} parent=11 // pred_fallthru
          _
      $region12: #{forward.1} parent=5 // pred_fallthru
        _
      %p484 = scmp.lt.s32.totalorder %s27, 2
      // Predicated region
      $region65: #{forward.1} parent=5 // pred_check
        %p485 = pneg %p484
      $region66: #{forward.1} parent=5 // pred_check_branch
        %487 = sbr.rel (%p485) target = $region68
      $region67: #{forward.1} parent=5 // pred_region
        // Predicated region
        $region69: #{forward.1} parent=67 // pred_check
          %p488 = pneg %p47
        $region70: #{forward.1} parent=67 // pred_check_branch
          %490 = sbr.rel (%p488) target = $region72
        $region71: #{forward.1} parent=67 // pred_region
          %p491 = scmp.lt.s32.totalorder %s27, 1
          %s492 = scalar_select %p491, %s27, 1
          %s493 = smul.addr %s492, 6
          %s494 = smul.addr %s493, 4
          %s495 = scalar_lea.vmem %s0, %s494
        $region72: #{forward.1} parent=67 // pred_fallthru
          _
        // Predicated region
        $region73: #{forward.1} parent=67 // pred_check
          %p496 = pneg %p73
        $region74: #{forward.1} parent=67 // pred_check_branch
          %498 = sbr.rel (%p496) target = $region76
        $region75: #{forward.1} parent=67 // pred_region
          %p499 = scmp.lt.s32.totalorder %s27, 1
          %s500 = scalar_select %p499, %s27, 1
          %s501 = smul.addr %s500, 32
          %s502 = smul.addr %s501, 8
          %s503 = scalar_lea.vmem %s1, %s502
        $region76: #{forward.1} parent=67 // pred_fallthru
          _
      $region68: #{forward.1} parent=5 // pred_fallthru
        _
      %p504 = scmp.le.s32.totalorder 1, %s27
      %p505 = scmp.lt.s32.totalorder %s27, 3
      %p506 = pnand %p504, %p505
      %p507 = pneg %p506
      // Predicated region
      $region77: #{forward.1} parent=5 // pred_check
        _
      $region78: #{forward.1} parent=5 // pred_check_branch
        %509 = sbr.rel (%p506) target = $region80
      $region79: #{forward.1} parent=5 // pred_region
        %s510 = ssub.s32 %s27, 1
        %p511 = scmp.lt.s32.totalorder %s32, 1
        %s512 = scalar_select %p511, %s32, 1
        %s513 = smul.addr %s512, 6
        %s514 = smul.addr %s513, 4
        %s515 = scalar_lea.vmem %s0, %s514
        %p516 = pneg %p53
        %p517 = pneg %p50
        %p518 = scmp.lt.s32.totalorder %s32, 1
        %s519 = scalar_select %p518, %s32, 1
        %s520 = smul.addr %s519, 32
        %s521 = smul.addr %s520, 8
        %s522 = scalar_lea.vmem %s1, %s521
        %p523 = pneg %p79
        %p524 = pneg %p76
        %p525 = pneg %p100
        %p526 = pneg %p97
        %p527 = pneg %p121
        %p528 = pneg %p118
        %p529 = pneg %p142
        %p530 = pneg %p139
        %p531 = pneg %p163
        %p532 = pneg %p160
        %p533 = pneg %p184
        %p534 = pneg %p181
        %p535 = pneg %p205
        %p536 = pneg %p202
        %p537 = pneg %p226
        %p538 = pneg %p223
        %p539 = pneg %p247
        %p540 = pneg %p244
        %p541 = pneg %p268
        %p542 = pneg %p265
        %p543 = pneg %p289
        %p544 = pneg %p286
        %p545 = pneg %p310
        %p546 = pneg %p307
        %p547 = pneg %p331
        %p548 = pneg %p328
        %p549 = pneg %p352
        %p550 = pneg %p349
        %p551 = pneg %p378
        %p552 = pneg %p375
        %s553 = sand.u32 %s365, 1
        %s554 = scalar_lea.sflag [#allocation3], %s553
        %s555 = sand.u32 %s365, 1
        %s556 = smul.addr %s555, 256
        %s557 = scalar_lea.vmem [#allocation2], %s556
        %p558 = pneg %p404
        %p559 = pneg %p401
        %p560 = scmp.lt.s32.totalorder %s32, 1
        %s561 = scalar_select %p560, %s32, 1
        %s562 = smul.addr %s561, 8
        %s563 = smul.addr %s562, 8
        %s564 = scalar_lea.vmem %s16, %s563
        %p565 = pneg %p430
        %p566 = pneg %p427
        %p567 = scmp.lt.s32.totalorder %s32, 1
        %s568 = scalar_select %p567, %s32, 1
        %s569 = smul.addr %s568, 8
        %s570 = smul.addr %s569, 8
        %s571 = scalar_lea.vmem %s17, %s570
        %p572 = scmp.lt.s32.totalorder %s32, 1
        %s573 = scalar_select %p572, %s32, 1
        %s574 = smul.addr %s573, 6
        %s575 = smul.addr %s574, 4
        %s576 = scalar_lea.vmem %s0, %s575
        %p577 = scmp.lt.s32.totalorder %s32, 1
        %s578 = scalar_select %p577, %s32, 1
        %s579 = smul.addr %s578, 32
        %s580 = smul.addr %s579, 8
        %s581 = scalar_lea.vmem %s1, %s580
        %p582 = scmp.lt.s32.totalorder %s32, 1
        %s583 = scalar_select %p582, %s32, 1
        %s584 = smul.addr %s583, 8
        %s585 = smul.addr %s584, 8
        %s586 = scalar_lea.vmem %s16, %s585
        %p587 = scmp.lt.s32.totalorder %s32, 1
        %s588 = scalar_select %p587, %s32, 1
        %s589 = smul.addr %s588, 8
        %s590 = smul.addr %s589, 8
        %s591 = scalar_lea.vmem %s17, %s590
        %v593 = vld [vmem:[%s576] sm:$0xff]
        %v594 = vld [vmem:[%s576 + $0x8] sm:$0xf]
        %v595 = vld [vmem:[%s576 + $0xc] sm:$0xff]
        %v596 = vld [vmem:[%s576 + $0x14] sm:$0xf]
        %v597 = vld [vmem:[%s3] sm:$0xf]
        %v598 = vld [vmem:[%s3 + $0x4] sm:$0xf]
        %v599 = vld [vmem:[%s3 + $0x8] sm:$0xf]
        %v600 = vld [vmem:[%s3 + $0xc] sm:$0xf]
        %v601 = vld [vmem:[%s3 + $0x10] sm:$0xf]
        %v602 = vld [vmem:[%s3 + $0x14] sm:$0xf]
        %v603 = vld [vmem:[%s3 + $0x18] sm:$0xf]
        %v604 = vld [vmem:[%s3 + $0x1c] sm:$0xf]
        %v605 = vld [vmem:[%s3 + $0x20] sm:$0xf]
        %v606 = vld [vmem:[%s3 + $0x24] sm:$0xf]
        %v607 = vld [vmem:[%s3 + $0x28] sm:$0xf]
        %v608 = vld [vmem:[%s3 + $0x2c] sm:$0xf]
        %v609 = vld [vmem:[%s3 + $0x30] sm:$0xf]
        %v610 = vld [vmem:[%s3 + $0x34] sm:$0xf]
        %v611 = vld [vmem:[%s3 + $0x38] sm:$0xf]
        %v612 = vld [vmem:[%s3 + $0x3c] sm:$0xf]
        %v613 = vld [vmem:[%s3 + $0x40] sm:$0xf]
        %v614 = vld [vmem:[%s3 + $0x44] sm:$0xf]
        %v615 = vld [vmem:[%s3 + $0x48] sm:$0xf]
        %v616 = vld [vmem:[%s3 + $0x4c] sm:$0xf]
        %v617 = vld [vmem:[%s3 + $0x50] sm:$0xf]
        %v618 = vld [vmem:[%s3 + $0x54] sm:$0xf]
        %v619 = vld [vmem:[%s3 + $0x58] sm:$0xf]
        %v620 = vld [vmem:[%s3 + $0x5c] sm:$0xf]
        %v621 = vld [vmem:[%s3 + $0x60] sm:$0xf]
        %v622 = vld [vmem:[%s3 + $0x64] sm:$0xf]
        %v623 = vld [vmem:[%s3 + $0x68] sm:$0xf]
        %v624 = vld [vmem:[%s3 + $0x6c] sm:$0xf]
        %v625 = vld [vmem:[%s3 + $0x70] sm:$0xf]
        %v626 = vld [vmem:[%s3 + $0x74] sm:$0xf]
        %v627 = vld [vmem:[%s3 + $0x78] sm:$0xf]
        %v628 = vld [vmem:[%s3 + $0x7c] sm:$0xf]
        %v629 = vld [vmem:[%s3 + $0x80] sm:$0xf]
        %v630 = vld [vmem:[%s3 + $0x84] sm:$0xf]
        %v631 = vld [vmem:[%s3 + $0x88] sm:$0xf]
        %v632 = vld [vmem:[%s3 + $0x8c] sm:$0xf]
        %v633 = vld [vmem:[%s3 + $0x90] sm:$0xf]
        %v634 = vld [vmem:[%s3 + $0x94] sm:$0xf]
        %v635 = vld [vmem:[%s3 + $0x98] sm:$0xf]
        %v636 = vld [vmem:[%s3 + $0x9c] sm:$0xf]
        %v637 = vld [vmem:[%s3 + $0xa0] sm:$0xf]
        %v638 = vld [vmem:[%s3 + $0xa4] sm:$0xf]
        %v639 = vld [vmem:[%s3 + $0xa8] sm:$0xf]
        %v640 = vld [vmem:[%s3 + $0xac] sm:$0xf]
        %v641 = vld [vmem:[%s3 + $0xb0] sm:$0xf]
        %v642 = vld [vmem:[%s3 + $0xb4] sm:$0xf]
        %v643 = vld [vmem:[%s3 + $0xb8] sm:$0xf]
        %v644 = vld [vmem:[%s3 + $0xbc] sm:$0xf]
        %v645 = vld [vmem:[%s4] sm:$0x1]
        %v647 = vlaneseq
        %v648 = vshrl.u32 %v647, 7
        %v649 = vsub.s32 0, %v648
        %v650 = vrot.slane %v645, %v649
        %v656 = vunpack.c.l.b16 %v593
        %v657 = vunpack.c.h.b16 %v593
        %v658 = vunpack.c.l.b16 %v594
        %v659 = vunpack.c.l.b16 %v595
        %v660 = vunpack.c.h.b16 %v595
        %v661 = vunpack.c.l.b16 %v596
        %v662 = vpack.c.b16 %v659, %v656
        %v663 = vpack.c.b16 %v660, %v657
        %v664 = vpack.c.b16 %v661, %v658
        %v716 = vunpack.c.l.b16 %v597
        %v717 = vunpack.c.l.b16 %v598
        %v718 = vunpack.c.l.b16 %v599
        %v719 = vunpack.c.l.b16 %v600
        %v720 = vunpack.c.l.b16 %v601
        %v721 = vunpack.c.l.b16 %v602
        %v722 = vunpack.c.l.b16 %v603
        %v723 = vunpack.c.l.b16 %v604
        %v724 = vunpack.c.l.b16 %v605
        %v725 = vunpack.c.l.b16 %v606
        %v726 = vunpack.c.l.b16 %v607
        %v727 = vunpack.c.l.b16 %v608
        %v728 = vunpack.c.l.b16 %v609
        %v729 = vunpack.c.l.b16 %v610
        %v730 = vunpack.c.l.b16 %v611
        %v731 = vunpack.c.l.b16 %v612
        %v732 = vunpack.c.l.b16 %v613
        %v733 = vunpack.c.l.b16 %v614
        %v734 = vunpack.c.l.b16 %v615
        %v735 = vunpack.c.l.b16 %v616
        %v736 = vunpack.c.l.b16 %v617
        %v737 = vunpack.c.l.b16 %v618
        %v738 = vunpack.c.l.b16 %v619
        %v739 = vunpack.c.l.b16 %v620
        %v740 = vunpack.c.l.b16 %v621
        %v741 = vunpack.c.l.b16 %v622
        %v742 = vunpack.c.l.b16 %v623
        %v743 = vunpack.c.l.b16 %v624
        %v744 = vunpack.c.l.b16 %v625
        %v745 = vunpack.c.l.b16 %v626
        %v746 = vunpack.c.l.b16 %v627
        %v747 = vunpack.c.l.b16 %v628
        %v748 = vunpack.c.l.b16 %v629
        %v749 = vunpack.c.l.b16 %v630
        %v750 = vunpack.c.l.b16 %v631
        %v751 = vunpack.c.l.b16 %v632
        %v752 = vunpack.c.l.b16 %v633
        %v753 = vunpack.c.l.b16 %v634
        %v754 = vunpack.c.l.b16 %v635
        %v755 = vunpack.c.l.b16 %v636
        %v756 = vunpack.c.l.b16 %v637
        %v757 = vunpack.c.l.b16 %v638
        %v758 = vunpack.c.l.b16 %v639
        %v759 = vunpack.c.l.b16 %v640
        %v760 = vunpack.c.l.b16 %v641
        %v761 = vunpack.c.l.b16 %v642
        %v762 = vunpack.c.l.b16 %v643
        %v763 = vunpack.c.l.b16 %v644
        %v764 = vpack.c.b16 %v717, %v716
        %v765 = vpack.c.b16 %v719, %v718
        %v766 = vpack.c.b16 %v721, %v720
        %v767 = vpack.c.b16 %v723, %v722
        %v768 = vpack.c.b16 %v725, %v724
        %v769 = vpack.c.b16 %v727, %v726
        %v770 = vpack.c.b16 %v729, %v728
        %v771 = vpack.c.b16 %v731, %v730
        %v772 = vpack.c.b16 %v733, %v732
        %v773 = vpack.c.b16 %v735, %v734
        %v774 = vpack.c.b16 %v737, %v736
        %v775 = vpack.c.b16 %v739, %v738
        %v776 = vpack.c.b16 %v741, %v740
        %v777 = vpack.c.b16 %v743, %v742
        %v778 = vpack.c.b16 %v745, %v744
        %v779 = vpack.c.b16 %v747, %v746
        %v780 = vpack.c.b16 %v749, %v748
        %v781 = vpack.c.b16 %v751, %v750
        %v782 = vpack.c.b16 %v753, %v752
        %v783 = vpack.c.b16 %v755, %v754
        %v784 = vpack.c.b16 %v757, %v756
        %v785 = vpack.c.b16 %v759, %v758
        %v786 = vpack.c.b16 %v761, %v760
        %v787 = vpack.c.b16 %v763, %v762
        %812 = vmatprep.subr.bf16.mxu0 0
        %813 = vmatpush1.bf16.msra.mxu0 %v764
        %814 = vmatprep.subr.bf16.mxu0 0
        %815 = vmatpush1.bf16.msra.mxu0 %v765
        %816 = vmatprep.subr.bf16.mxu0 0
        %817 = vmatpush1.bf16.msra.mxu0 %v766
        %818 = vmatprep.subr.bf16.mxu0 0
        %819 = vmatpush1.bf16.msra.mxu0 %v767
        %820 = vmatprep.subr.bf16.mxu0 0
        %821 = vmatpush1.bf16.msra.mxu0 %v768
        %822 = vmatprep.subr.bf16.mxu0 0
        %823 = vmatpush1.bf16.msra.mxu0 %v769
        %824 = vmatprep.subr.bf16.mxu0 0
        %825 = vmatpush1.bf16.msra.mxu0 %v770
        %826 = vmatprep.subr.bf16.mxu0 0
        %827 = vmatpush1.bf16.msra.mxu0 %v771
        %828 = vmatprep.subr.bf16.mxu0 0
        %829 = vmatpush1.bf16.msra.mxu0 %v772
        %830 = vmatprep.subr.bf16.mxu0 0
        %831 = vmatpush1.bf16.msra.mxu0 %v773
        %832 = vmatprep.subr.bf16.mxu0 0
        %833 = vmatpush1.bf16.msra.mxu0 %v774
        %834 = vmatprep.subr.bf16.mxu0 0
        %835 = vmatpush1.bf16.msra.mxu0 %v775
        %836 = vmatprep.subr.bf16.mxu0 0
        %837 = vmatpush1.bf16.msra.mxu0 %v776
        %838 = vmatprep.subr.bf16.mxu0 0
        %839 = vmatpush1.bf16.msra.mxu0 %v777
        %840 = vmatprep.subr.bf16.mxu0 0
        %841 = vmatpush1.bf16.msra.mxu0 %v778
        %842 = vmatprep.subr.bf16.mxu0 0
        %843 = vmatpush1.bf16.msra.mxu0 %v779
        %844 = vmatprep.mubr.bf16.mxu0 %v663
        %845 = vmatmul.mubr.bf16.gmra.mrb[0].mxu0 %v662
        %v846 = vpop.f32.mrb[0].mxu0
        %v847 = vadd.f32 %v650, %v846
        %v848 = vpop.f32.mrb[0].mxu0
        %v849 = vpop.f32.mrb[0].mxu0
        %v850 = vadd.f32 %v650, %v849
        %v851 = vpop.f32.mrb[0].mxu0
        %852 = vdwg.mxu0
        %853 = vmatprep.subr.bf16.mxu0 0
        %854 = vmatpush1.bf16.msra.mxu0 %v780
        %855 = vmatprep.subr.bf16.mxu0 0
        %856 = vmatpush1.bf16.msra.mxu0 %v781
        %857 = vmatprep.subr.bf16.mxu0 0
        %858 = vmatpush1.bf16.msra.mxu0 %v782
        %859 = vmatprep.subr.bf16.mxu0 0
        %860 = vmatpush1.bf16.msra.mxu0 %v783
        %861 = vmatprep.subr.bf16.mxu0 0
        %862 = vmatpush1.bf16.msra.mxu0 %v784
        %863 = vmatprep.subr.bf16.mxu0 0
        %864 = vmatpush1.bf16.msra.mxu0 %v785
        %865 = vmatprep.subr.bf16.mxu0 0
        %866 = vmatpush1.bf16.msra.mxu0 %v786
        %867 = vmatprep.subr.bf16.mxu0 0
        %868 = vmatpush1.bf16.msra.mxu0 %v787
        %869 = vmatprep.subr.bf16.mxu0 0
        %870 = vmatpush1.bf16.msra.mxu0 0
        %871 = vmatprep.subr.bf16.mxu0 0
        %872 = vmatpush1.bf16.msra.mxu0 0
        %873 = vmatprep.subr.bf16.mxu0 0
        %874 = vmatpush1.bf16.msra.mxu0 0
        %875 = vmatprep.subr.bf16.mxu0 0
        %876 = vmatpush1.bf16.msra.mxu0 0
        %877 = vmatprep.subr.bf16.mxu0 0
        %878 = vmatpush1.bf16.msra.mxu0 0
        %879 = vmatprep.subr.bf16.mxu0 0
        %880 = vmatpush1.bf16.msra.mxu0 0
        %881 = vmatprep.subr.bf16.mxu0 0
        %882 = vmatpush1.bf16.msra.mxu0 0
        %883 = vmatprep.subr.bf16.mxu0 0
        %884 = vmatpush1.bf16.msra.mxu0 0
        %885 = vmatprep.mubr.bf16.mxu0 0
        %886 = vmatmul.mubr.bf16.gmra.mrb[0].mxu0 %v664
        %v887 = vpop.f32.mrb[0].mxu0
        %v888 = vadd.f32 %v847, %v887
        %v889 = vpop.f32.mrb[0].mxu0
        %v890 = vpop.f32.mrb[0].mxu0
        %v891 = vadd.f32 %v850, %v890
        %v892 = vpop.f32.mrb[0].mxu0
        %893 = vdwg.mxu0
        %vm894 = vcmp.ge.f32.partialorder %v888, 0.0
        %vm895 = vcmp.ge.f32.partialorder %v891, 0.0
        %v896 = vmul.f32 %v888, 0.1
        %v897 = vmul.f32 %v891, 0.1
        %v898 = vsel %vm894, %v888, %v896
        %v899 = vsel %vm895, %v891, %v897
        %v900 = vadd.f32 %v898, %v899
        %v901 = vrot.slane %v900, 4
        %v902 = vadd.f32 %v900, %v901
        %v903 = vrot.slane %v902, 2
        %v904 = vadd.f32 %v902, %v903
        %v905 = vrot.slane %v904, 1
        %v906 = vadd.f32 %v904, %v905
        %v907 = vrcp.pop 16.0
        %v908 = vmul.f32 %v906, %v907
        %v909 = vmul.f32 %v898, %v898
        %v910 = vmul.f32 %v899, %v899
        %v911 = vadd.f32 %v909, %v910
        %v912 = vrot.slane %v911, 4
        %v913 = vadd.f32 %v911, %v912
        %v914 = vrot.slane %v913, 2
        %v915 = vadd.f32 %v913, %v914
        %v916 = vrot.slane %v915, 1
        %v917 = vadd.f32 %v915, %v916
        %v918 = vmul.f32 %v917, %v907
        %v919 = vmul.f32 %v908, %v908
        %v920 = vsub.f32 %v918, %v919
        %v921 = vsub.f32 %v898, %v908
        %v922 = vsub.f32 %v899, %v908
        %v923 = vadd.f32 %v920, 1e-05
        %v924 = vrsqrt.pop %v923
        %v925 = vmul.f32 %v921, %v924
        %v926 = vmul.f32 %v922, %v924
        %v927 = vpack.c.bf16 %v926, %v925
        %v928 = vld [vmem:[%s5] sm:$0xff]
        %v929 = vld [vmem:[%s5 + $0x8] sm:$0xff]
        %v930 = vld [vmem:[%s5 + $0x10] sm:$0xff]
        %v931 = vld [vmem:[%s5 + $0x18] sm:$0xff]
        %v932 = vld [vmem:[%s5 + $0x20] sm:$0xff]
        %v933 = vld [vmem:[%s5 + $0x28] sm:$0xff]
        %v934 = vld [vmem:[%s5 + $0x30] sm:$0xff]
        %v935 = vld [vmem:[%s5 + $0x38] sm:$0xff]
        %v936 = vld [vmem:[%s5 + $0x40] sm:$0xff]
        %v937 = vld [vmem:[%s5 + $0x48] sm:$0xff]
        %v938 = vld [vmem:[%s5 + $0x50] sm:$0xff]
        %v939 = vld [vmem:[%s5 + $0x58] sm:$0xff]
        %v940 = vld [vmem:[%s5 + $0x60] sm:$0xff]
        %v941 = vld [vmem:[%s5 + $0x68] sm:$0xff]
        %v942 = vld [vmem:[%s5 + $0x70] sm:$0xff]
        %v943 = vld [vmem:[%s5 + $0x78] sm:$0xff]
        %v944 = vld [vmem:[%s6] sm:$0x3]
        %v946 = vlaneseq
        %v947 = vshrl.u32 %v946, 7
        %v948 = vsub.s32 0, %v947
        %v949 = vrot.slane %v944, %v948
        %v950 = vlaneseq
        %v951 = vshrl.u32 %v950, 7
        %v952 = vsub.s32 1, %v951
        %v953 = vrot.slane %v944, %v952
        %v972 = vunpack.c.l.b16 %v928
        %v973 = vunpack.c.h.b16 %v928
        %v974 = vunpack.c.l.b16 %v929
        %v975 = vunpack.c.h.b16 %v929
        %v976 = vunpack.c.l.b16 %v930
        %v977 = vunpack.c.h.b16 %v930
        %v978 = vunpack.c.l.b16 %v931
        %v979 = vunpack.c.h.b16 %v931
        %v980 = vunpack.c.l.b16 %v932
        %v981 = vunpack.c.h.b16 %v932
        %v982 = vunpack.c.l.b16 %v933
        %v983 = vunpack.c.h.b16 %v933
        %v984 = vunpack.c.l.b16 %v934
        %v985 = vunpack.c.h.b16 %v934
        %v986 = vunpack.c.l.b16 %v935
        %v987 = vunpack.c.h.b16 %v935
        %v988 = vunpack.c.l.b16 %v936
        %v989 = vunpack.c.h.b16 %v936
        %v990 = vunpack.c.l.b16 %v937
        %v991 = vunpack.c.h.b16 %v937
        %v992 = vunpack.c.l.b16 %v938
        %v993 = vunpack.c.h.b16 %v938
        %v994 = vunpack.c.l.b16 %v939
        %v995 = vunpack.c.h.b16 %v939
        %v996 = vunpack.c.l.b16 %v940
        %v997 = vunpack.c.h.b16 %v940
        %v998 = vunpack.c.l.b16 %v941
        %v999 = vunpack.c.h.b16 %v941
        %v1000 = vunpack.c.l.b16 %v942
        %v1001 = vunpack.c.h.b16 %v942
        %v1002 = vunpack.c.l.b16 %v943
        %v1003 = vunpack.c.h.b16 %v943
        %v1004 = vpack.c.b16 %v974, %v972
        %v1005 = vpack.c.b16 %v975, %v973
        %v1006 = vpack.c.b16 %v978, %v976
        %v1007 = vpack.c.b16 %v979, %v977
        %v1008 = vpack.c.b16 %v982, %v980
        %v1009 = vpack.c.b16 %v983, %v981
        %v1010 = vpack.c.b16 %v986, %v984
        %v1011 = vpack.c.b16 %v987, %v985
        %v1012 = vpack.c.b16 %v990, %v988
        %v1013 = vpack.c.b16 %v991, %v989
        %v1014 = vpack.c.b16 %v994, %v992
        %v1015 = vpack.c.b16 %v995, %v993
        %v1016 = vpack.c.b16 %v998, %v996
        %v1017 = vpack.c.b16 %v999, %v997
        %v1018 = vpack.c.b16 %v1002, %v1000
        %v1019 = vpack.c.b16 %v1003, %v1001
        %1036 = vmatprep.subr.bf16.mxu0 %v1005
        %1037 = vmatpush1.bf16.msra.mxu0 %v1004
        %1038 = vmatprep.subr.bf16.mxu0 %v1007
        %1039 = vmatpush1.bf16.msra.mxu0 %v1006
        %1040 = vmatprep.subr.bf16.mxu0 %v1009
        %1041 = vmatpush1.bf16.msra.mxu0 %v1008
        %1042 = vmatprep.subr.bf16.mxu0 %v1011
        %1043 = vmatpush1.bf16.msra.mxu0 %v1010
        %1044 = vmatprep.subr.bf16.mxu0 %v1013
        %1045 = vmatpush1.bf16.msra.mxu0 %v1012
        %1046 = vmatprep.subr.bf16.mxu0 %v1015
        %1047 = vmatpush1.bf16.msra.mxu0 %v1014
        %1048 = vmatprep.subr.bf16.mxu0 %v1017
        %1049 = vmatpush1.bf16.msra.mxu0 %v1016
        %1050 = vmatprep.subr.bf16.mxu0 %v1019
        %1051 = vmatpush1.bf16.msra.mxu0 %v1018
        %1052 = vmatprep.subr.bf16.mxu0 0
        %1053 = vmatpush1.bf16.msra.mxu0 0
        %1054 = vmatprep.subr.bf16.mxu0 0
        %1055 = vmatpush1.bf16.msra.mxu0 0
        %1056 = vmatprep.subr.bf16.mxu0 0
        %1057 = vmatpush1.bf16.msra.mxu0 0
        %1058 = vmatprep.subr.bf16.mxu0 0
        %1059 = vmatpush1.bf16.msra.mxu0 0
        %1060 = vmatprep.subr.bf16.mxu0 0
        %1061 = vmatpush1.bf16.msra.mxu0 0
        %1062 = vmatprep.subr.bf16.mxu0 0
        %1063 = vmatpush1.bf16.msra.mxu0 0
        %1064 = vmatprep.subr.bf16.mxu0 0
        %1065 = vmatpush1.bf16.msra.mxu0 0
        %1066 = vmatprep.subr.bf16.mxu0 0
        %1067 = vmatpush1.bf16.msra.mxu0 0
        %1068 = vmatprep.mubr.bf16.mxu0 0
        %1069 = vmatmul.mubr.bf16.gmra.mrb[0].mxu0 %v927
        %v1070 = vpop.f32.mrb[0].mxu0
        %v1071 = vadd.f32 %v949, %v1070
        %v1072 = vpop.f32.mrb[0].mxu0
        %v1073 = vadd.f32 %v953, %v1072
        %v1074 = vpop.f32.mrb[0].mxu0
        %v1075 = vadd.f32 %v949, %v1074
        %v1076 = vpop.f32.mrb[0].mxu0
        %v1077 = vadd.f32 %v953, %v1076
        %1078 = vdwg.mxu0
        %vm1079 = vcmp.ge.f32.partialorder %v1071, 0.0
        %vm1080 = vcmp.ge.f32.partialorder %v1073, 0.0
        %vm1081 = vcmp.ge.f32.partialorder %v1075, 0.0
        %vm1082 = vcmp.ge.f32.partialorder %v1077, 0.0
        %v1083 = vmul.f32 %v1071, 0.1
        %v1084 = vmul.f32 %v1073, 0.1
        %v1085 = vmul.f32 %v1075, 0.1
        %v1086 = vmul.f32 %v1077, 0.1
        %v1087 = vsel %vm1079, %v1071, %v1083
        %v1088 = vsel %vm1080, %v1073, %v1084
        %v1089 = vsel %vm1081, %v1075, %v1085
        %v1090 = vsel %vm1082, %v1077, %v1086
        %v1091 = vpack.c.bf16 %v1089, %v1087
        %v1092 = vpack.c.bf16 %v1090, %v1088
        %v1093 = vld [vmem:[%s7] sm:$0xff]
        %v1094 = vld [vmem:[%s7 + $0x8] sm:$0xff]
        %v1095 = vld [vmem:[%s7 + $0x10] sm:$0xff]
        %v1096 = vld [vmem:[%s7 + $0x18] sm:$0xff]
        %v1097 = vld [vmem:[%s7 + $0x20] sm:$0xff]
        %v1098 = vld [vmem:[%s7 + $0x28] sm:$0xff]
        %v1099 = vld [vmem:[%s7 + $0x30] sm:$0xff]
        %v1100 = vld [vmem:[%s7 + $0x38] sm:$0xff]
        %v1101 = vld [vmem:[%s7 + $0x40] sm:$0xff]
        %v1102 = vld [vmem:[%s7 + $0x48] sm:$0xff]
        %v1103 = vld [vmem:[%s7 + $0x50] sm:$0xff]
        %v1104 = vld [vmem:[%s7 + $0x58] sm:$0xff]
        %v1105 = vld [vmem:[%s7 + $0x60] sm:$0xff]
        %v1106 = vld [vmem:[%s7 + $0x68] sm:$0xff]
        %v1107 = vld [vmem:[%s7 + $0x70] sm:$0xff]
        %v1108 = vld [vmem:[%s7 + $0x78] sm:$0xff]
        %v1109 = vld [vmem:[%s7 + $0x80] sm:$0xff]
        %v1110 = vld [vmem:[%s7 + $0x88] sm:$0xff]
        %v1111 = vld [vmem:[%s7 + $0x90] sm:$0xff]
        %v1112 = vld [vmem:[%s7 + $0x98] sm:$0xff]
        %v1113 = vld [vmem:[%s7 + $0xa0] sm:$0xff]
        %v1114 = vld [vmem:[%s7 + $0xa8] sm:$0xff]
        %v1115 = vld [vmem:[%s7 + $0xb0] sm:$0xff]
        %v1116 = vld [vmem:[%s7 + $0xb8] sm:$0xff]
        %v1117 = vld [vmem:[%s7 + $0xc0] sm:$0xff]
        %v1118 = vld [vmem:[%s7 + $0xc8] sm:$0xff]
        %v1119 = vld [vmem:[%s7 + $0xd0] sm:$0xff]
        %v1120 = vld [vmem:[%s7 + $0xd8] sm:$0xff]
        %v1121 = vld [vmem:[%s7 + $0xe0] sm:$0xff]
        %v1122 = vld [vmem:[%s7 + $0xe8] sm:$0xff]
        %v1123 = vld [vmem:[%s7 + $0xf0] sm:$0xff]
        %v1124 = vld [vmem:[%s7 + $0xf8] sm:$0xff]
        %v1125 = vld [vmem:[%s8] sm:$0x3]
        %v1127 = vlaneseq
        %v1128 = vshrl.u32 %v1127, 7
        %v1129 = vsub.s32 0, %v1128
        %v1130 = vrot.slane %v1125, %v1129
        %v1131 = vlaneseq
        %v1132 = vshrl.u32 %v1131, 7
        %v1133 = vsub.s32 1, %v1132
        %v1134 = vrot.slane %v1125, %v1133
        %v1169 = vunpack.c.l.b16 %v1093
        %v1170 = vunpack.c.h.b16 %v1093
        %v1171 = vunpack.c.l.b16 %v1094
        %v1172 = vunpack.c.h.b16 %v1094
        %v1173 = vunpack.c.l.b16 %v1095
        %v1174 = vunpack.c.h.b16 %v1095
        %v1175 = vunpack.c.l.b16 %v1096
        %v1176 = vunpack.c.h.b16 %v1096
        %v1177 = vunpack.c.l.b16 %v1097
        %v1178 = vunpack.c.h.b16 %v1097
        %v1179 = vunpack.c.l.b16 %v1098
        %v1180 = vunpack.c.h.b16 %v1098
        %v1181 = vunpack.c.l.b16 %v1099
        %v1182 = vunpack.c.h.b16 %v1099
        %v1183 = vunpack.c.l.b16 %v1100
        %v1184 = vunpack.c.h.b16 %v1100
        %v1185 = vunpack.c.l.b16 %v1101
        %v1186 = vunpack.c.h.b16 %v1101
        %v1187 = vunpack.c.l.b16 %v1102
        %v1188 = vunpack.c.h.b16 %v1102
        %v1189 = vunpack.c.l.b16 %v1103
        %v1190 = vunpack.c.h.b16 %v1103
        %v1191 = vunpack.c.l.b16 %v1104
        %v1192 = vunpack.c.h.b16 %v1104
        %v1193 = vunpack.c.l.b16 %v1105
        %v1194 = vunpack.c.h.b16 %v1105
        %v1195 = vunpack.c.l.b16 %v1106
        %v1196 = vunpack.c.h.b16 %v1106
        %v1197 = vunpack.c.l.b16 %v1107
        %v1198 = vunpack.c.h.b16 %v1107
        %v1199 = vunpack.c.l.b16 %v1108
        %v1200 = vunpack.c.h.b16 %v1108
        %v1201 = vunpack.c.l.b16 %v1109
        %v1202 = vunpack.c.h.b16 %v1109
        %v1203 = vunpack.c.l.b16 %v1110
        %v1204 = vunpack.c.h.b16 %v1110
        %v1205 = vunpack.c.l.b16 %v1111
        %v1206 = vunpack.c.h.b16 %v1111
        %v1207 = vunpack.c.l.b16 %v1112
        %v1208 = vunpack.c.h.b16 %v1112
        %v1209 = vunpack.c.l.b16 %v1113
        %v1210 = vunpack.c.h.b16 %v1113
        %v1211 = vunpack.c.l.b16 %v1114
        %v1212 = vunpack.c.h.b16 %v1114
        %v1213 = vunpack.c.l.b16 %v1115
        %v1214 = vunpack.c.h.b16 %v1115
        %v1215 = vunpack.c.l.b16 %v1116
        %v1216 = vunpack.c.h.b16 %v1116
        %v1217 = vunpack.c.l.b16 %v1117
        %v1218 = vunpack.c.h.b16 %v1117
        %v1219 = vunpack.c.l.b16 %v1118
        %v1220 = vunpack.c.h.b16 %v1118
        %v1221 = vunpack.c.l.b16 %v1119
        %v1222 = vunpack.c.h.b16 %v1119
        %v1223 = vunpack.c.l.b16 %v1120
        %v1224 = vunpack.c.h.b16 %v1120
        %v1225 = vunpack.c.l.b16 %v1121
        %v1226 = vunpack.c.h.b16 %v1121
        %v1227 = vunpack.c.l.b16 %v1122
        %v1228 = vunpack.c.h.b16 %v1122
        %v1229 = vunpack.c.l.b16 %v1123
        %v1230 = vunpack.c.h.b16 %v1123
        %v1231 = vunpack.c.l.b16 %v1124
        %v1232 = vunpack.c.h.b16 %v1124
        %v1233 = vpack.c.b16 %v1171, %v1169
        %v1234 = vpack.c.b16 %v1172, %v1170
        %v1235 = vpack.c.b16 %v1175, %v1173
        %v1236 = vpack.c.b16 %v1176, %v1174
        %v1237 = vpack.c.b16 %v1179, %v1177
        %v1238 = vpack.c.b16 %v1180, %v1178
        %v1239 = vpack.c.b16 %v1183, %v1181
        %v1240 = vpack.c.b16 %v1184, %v1182
        %v1241 = vpack.c.b16 %v1187, %v1185
        %v1242 = vpack.c.b16 %v1188, %v1186
        %v1243 = vpack.c.b16 %v1191, %v1189
        %v1244 = vpack.c.b16 %v1192, %v1190
        %v1245 = vpack.c.b16 %v1195, %v1193
        %v1246 = vpack.c.b16 %v1196, %v1194
        %v1247 = vpack.c.b16 %v1199, %v1197
        %v1248 = vpack.c.b16 %v1200, %v1198
        %v1249 = vpack.c.b16 %v1203, %v1201
        %v1250 = vpack.c.b16 %v1204, %v1202
        %v1251 = vpack.c.b16 %v1207, %v1205
        %v1252 = vpack.c.b16 %v1208, %v1206
        %v1253 = vpack.c.b16 %v1211, %v1209
        %v1254 = vpack.c.b16 %v1212, %v1210
        %v1255 = vpack.c.b16 %v1215, %v1213
        %v1256 = vpack.c.b16 %v1216, %v1214
        %v1257 = vpack.c.b16 %v1219, %v1217
        %v1258 = vpack.c.b16 %v1220, %v1218
        %v1259 = vpack.c.b16 %v1223, %v1221
        %v1260 = vpack.c.b16 %v1224, %v1222
        %v1261 = vpack.c.b16 %v1227, %v1225
        %v1262 = vpack.c.b16 %v1228, %v1226
        %v1263 = vpack.c.b16 %v1231, %v1229
        %v1264 = vpack.c.b16 %v1232, %v1230
        %1297 = vmatprep.subr.bf16.mxu0 %v1234
        %1298 = vmatpush1.bf16.msra.mxu0 %v1233
        %1299 = vmatprep.subr.bf16.mxu0 %v1236
        %1300 = vmatpush1.bf16.msra.mxu0 %v1235
        %1301 = vmatprep.subr.bf16.mxu0 %v1238
        %1302 = vmatpush1.bf16.msra.mxu0 %v1237
        %1303 = vmatprep.subr.bf16.mxu0 %v1240
        %1304 = vmatpush1.bf16.msra.mxu0 %v1239
        %1305 = vmatprep.subr.bf16.mxu0 %v1242
        %1306 = vmatpush1.bf16.msra.mxu0 %v1241
        %1307 = vmatprep.subr.bf16.mxu0 %v1244
        %1308 = vmatpush1.bf16.msra.mxu0 %v1243
        %1309 = vmatprep.subr.bf16.mxu0 %v1246
        %1310 = vmatpush1.bf16.msra.mxu0 %v1245
        %1311 = vmatprep.subr.bf16.mxu0 %v1248
        %1312 = vmatpush1.bf16.msra.mxu0 %v1247
        %1313 = vmatprep.subr.bf16.mxu0 %v1250
        %1314 = vmatpush1.bf16.msra.mxu0 %v1249
        %1315 = vmatprep.subr.bf16.mxu0 %v1252
        %1316 = vmatpush1.bf16.msra.mxu0 %v1251
        %1317 = vmatprep.subr.bf16.mxu0 %v1254
        %1318 = vmatpush1.bf16.msra.mxu0 %v1253
        %1319 = vmatprep.subr.bf16.mxu0 %v1256
        %1320 = vmatpush1.bf16.msra.mxu0 %v1255
        %1321 = vmatprep.subr.bf16.mxu0 %v1258
        %1322 = vmatpush1.bf16.msra.mxu0 %v1257
        %1323 = vmatprep.subr.bf16.mxu0 %v1260
        %1324 = vmatpush1.bf16.msra.mxu0 %v1259
        %1325 = vmatprep.subr.bf16.mxu0 %v1262
        %1326 = vmatpush1.bf16.msra.mxu0 %v1261
        %1327 = vmatprep.subr.bf16.mxu0 %v1264
        %1328 = vmatpush1.bf16.msra.mxu0 %v1263
        %1329 = vmatprep.mubr.bf16.mxu0 %v1092
        %1330 = vmatmul.mubr.bf16.gmra.mrb[0].mxu0 %v1091
        %v1331 = vpop.f32.mrb[0].mxu0
        %v1332 = vadd.f32 %v1130, %v1331
        %v1333 = vpop.f32.mrb[0].mxu0
        %v1334 = vadd.f32 %v1134, %v1333
        %v1335 = vpop.f32.mrb[0].mxu0
        %v1336 = vadd.f32 %v1130, %v1335
        %v1337 = vpop.f32.mrb[0].mxu0
        %v1338 = vadd.f32 %v1134, %v1337
        %1339 = vdwg.mxu0
        %vm1340 = vcmp.ge.f32.partialorder %v1332, 0.0
        %vm1341 = vcmp.ge.f32.partialorder %v1334, 0.0
        %vm1342 = vcmp.ge.f32.partialorder %v1336, 0.0
        %vm1343 = vcmp.ge.f32.partialorder %v1338, 0.0
        %v1344 = vmul.f32 %v1332, 0.1
        %v1345 = vmul.f32 %v1334, 0.1
        %v1346 = vmul.f32 %v1336, 0.1
        %v1347 = vmul.f32 %v1338, 0.1
        %v1348 = vsel %vm1340, %v1332, %v1344
        %v1349 = vsel %vm1341, %v1334, %v1345
        %v1350 = vsel %vm1342, %v1336, %v1346
        %v1351 = vsel %vm1343, %v1338, %v1347
        %v1352 = vadd.f32 %v1348, %v1350
        %v1353 = vrot.slane %v1352, 4
        %v1354 = vadd.f32 %v1352, %v1353
        %v1355 = vrot.slane %v1354, 2
        %v1356 = vadd.f32 %v1354, %v1355
        %v1357 = vrot.slane %v1356, 1
        %v1358 = vadd.f32 %v1356, %v1357
        %v1359 = vadd.f32 %v1349, %v1351
        %v1360 = vrot.slane %v1359, 4
        %v1361 = vadd.f32 %v1359, %v1360
        %v1362 = vrot.slane %v1361, 2
        %v1363 = vadd.f32 %v1361, %v1362
        %v1364 = vrot.slane %v1363, 1
        %v1365 = vadd.f32 %v1363, %v1364
        %v1366 = vmul.f32 %v1358, %v907
        %v1367 = vmul.f32 %v1365, %v907
        %v1368 = vmul.f32 %v1348, %v1348
        %v1369 = vmul.f32 %v1349, %v1349
        %v1370 = vmul.f32 %v1350, %v1350
        %v1371 = vmul.f32 %v1351, %v1351
        %v1372 = vadd.f32 %v1368, %v1370
        %v1373 = vrot.slane %v1372, 4
        %v1374 = vadd.f32 %v1372, %v1373
        %v1375 = vrot.slane %v1374, 2
        %v1376 = vadd.f32 %v1374, %v1375
        %v1377 = vrot.slane %v1376, 1
        %v1378 = vadd.f32 %v1376, %v1377
        %v1379 = vadd.f32 %v1369, %v1371
        %v1380 = vrot.slane %v1379, 4
        %v1381 = vadd.f32 %v1379, %v1380
        %v1382 = vrot.slane %v1381, 2
        %v1383 = vadd.f32 %v1381, %v1382
        %v1384 = vrot.slane %v1383, 1
        %v1385 = vadd.f32 %v1383, %v1384
        %v1386 = vmul.f32 %v1378, %v907
        %v1387 = vmul.f32 %v1385, %v907
        %v1388 = vmul.f32 %v1366, %v1366
        %v1389 = vmul.f32 %v1367, %v1367
        %v1390 = vsub.f32 %v1386, %v1388
        %v1391 = vsub.f32 %v1387, %v1389
        %v1392 = vsub.f32 %v1348, %v1366
        %v1393 = vsub.f32 %v1349, %v1367
        %v1394 = vsub.f32 %v1350, %v1366
        %v1395 = vsub.f32 %v1351, %v1367
        %v1396 = vadd.f32 %v1390, 1e-05
        %v1397 = vadd.f32 %v1391, 1e-05
        %v1398 = vrsqrt.pop %v1396
        %v1399 = vrsqrt.pop %v1397
        %v1400 = vmul.f32 %v1392, %v1398
        %v1401 = vmul.f32 %v1393, %v1399
        %v1402 = vmul.f32 %v1394, %v1398
        %v1403 = vmul.f32 %v1395, %v1399
        %v1404 = vpack.c.bf16 %v1402, %v1400
        %v1405 = vpack.c.bf16 %v1403, %v1401
        %v1406 = vld [vmem:[%s9] sm:$0xff]
        %v1407 = vld [vmem:[%s9 + $0x8] sm:$0xff]
        %v1408 = vld [vmem:[%s9 + $0x10] sm:$0xff]
        %v1409 = vld [vmem:[%s9 + $0x18] sm:$0xff]
        %v1410 = vld [vmem:[%s9 + $0x20] sm:$0xff]
        %v1411 = vld [vmem:[%s9 + $0x28] sm:$0xff]
        %v1412 = vld [vmem:[%s9 + $0x30] sm:$0xff]
        %v1413 = vld [vmem:[%s9 + $0x38] sm:$0xff]
        %v1414 = vld [vmem:[%s9 + $0x40] sm:$0xff]
        %v1415 = vld [vmem:[%s9 + $0x48] sm:$0xff]
        %v1416 = vld [vmem:[%s9 + $0x50] sm:$0xff]
        %v1417 = vld [vmem:[%s9 + $0x58] sm:$0xff]
        %v1418 = vld [vmem:[%s9 + $0x60] sm:$0xff]
        %v1419 = vld [vmem:[%s9 + $0x68] sm:$0xff]
        %v1420 = vld [vmem:[%s9 + $0x70] sm:$0xff]
        %v1421 = vld [vmem:[%s9 + $0x78] sm:$0xff]
        %v1422 = vld [vmem:[%s9 + $0x80] sm:$0xff]
        %v1423 = vld [vmem:[%s9 + $0x88] sm:$0xff]
        %v1424 = vld [vmem:[%s9 + $0x90] sm:$0xff]
        %v1425 = vld [vmem:[%s9 + $0x98] sm:$0xff]
        %v1426 = vld [vmem:[%s9 + $0xa0] sm:$0xff]
        %v1427 = vld [vmem:[%s9 + $0xa8] sm:$0xff]
        %v1428 = vld [vmem:[%s9 + $0xb0] sm:$0xff]
        %v1429 = vld [vmem:[%s9 + $0xb8] sm:$0xff]
        %v1430 = vld [vmem:[%s9 + $0xc0] sm:$0xff]
        %v1431 = vld [vmem:[%s9 + $0xc8] sm:$0xff]
        %v1432 = vld [vmem:[%s9 + $0xd0] sm:$0xff]
        %v1433 = vld [vmem:[%s9 + $0xd8] sm:$0xff]
        %v1434 = vld [vmem:[%s9 + $0xe0] sm:$0xff]
        %v1435 = vld [vmem:[%s9 + $0xe8] sm:$0xff]
        %v1436 = vld [vmem:[%s9 + $0xf0] sm:$0xff]
        %v1437 = vld [vmem:[%s9 + $0xf8] sm:$0xff]
        %v1438 = vld [vmem:[%s9 + $0x100] sm:$0xff]
        %v1439 = vld [vmem:[%s9 + $0x108] sm:$0xff]
        %v1440 = vld [vmem:[%s9 + $0x110] sm:$0xff]
        %v1441 = vld [vmem:[%s9 + $0x118] sm:$0xff]
        %v1442 = vld [vmem:[%s9 + $0x120] sm:$0xff]
        %v1443 = vld [vmem:[%s9 + $0x128] sm:$0xff]
        %v1444 = vld [vmem:[%s9 + $0x130] sm:$0xff]
        %v1445 = vld [vmem:[%s9 + $0x138] sm:$0xff]
        %v1446 = vld [vmem:[%s9 + $0x140] sm:$0xff]
        %v1447 = vld [vmem:[%s9 + $0x148] sm:$0xff]
        %v1448 = vld [vmem:[%s9 + $0x150] sm:$0xff]
        %v1449 = vld [vmem:[%s9 + $0x158] sm:$0xff]
        %v1450 = vld [vmem:[%s9 + $0x160] sm:$0xff]
        %v1451 = vld [vmem:[%s9 + $0x168] sm:$0xff]
        %v1452 = vld [vmem:[%s9 + $0x170] sm:$0xff]
        %v1453 = vld [vmem:[%s9 + $0x178] sm:$0xff]
        %v1454 = vld [vmem:[%s9 + $0x180] sm:$0xff]
        %v1455 = vld [vmem:[%s9 + $0x188] sm:$0xff]
        %v1456 = vld [vmem:[%s9 + $0x190] sm:$0xff]
        %v1457 = vld [vmem:[%s9 + $0x198] sm:$0xff]
        %v1458 = vld [vmem:[%s9 + $0x1a0] sm:$0xff]
        %v1459 = vld [vmem:[%s9 + $0x1a8] sm:$0xff]
        %v1460 = vld [vmem:[%s9 + $0x1b0] sm:$0xff]
        %v1461 = vld [vmem:[%s9 + $0x1b8] sm:$0xff]
        %v1462 = vld [vmem:[%s9 + $0x1c0] sm:$0xff]
        %v1463 = vld [vmem:[%s9 + $0x1c8] sm:$0xff]
        %v1464 = vld [vmem:[%s9 + $0x1d0] sm:$0xff]
        %v1465 = vld [vmem:[%s9 + $0x1d8] sm:$0xff]
        %v1466 = vld [vmem:[%s9 + $0x1e0] sm:$0xff]
        %v1467 = vld [vmem:[%s9 + $0x1e8] sm:$0xff]
        %v1468 = vld [vmem:[%s9 + $0x1f0] sm:$0xff]
        %v1469 = vld [vmem:[%s9 + $0x1f8] sm:$0xff]
        %v1470 = vld [vmem:[%s9 + $0x200] sm:$0xff]
        %v1471 = vld [vmem:[%s9 + $0x208] sm:$0xff]
        %v1472 = vld [vmem:[%s9 + $0x210] sm:$0xff]
        %v1473 = vld [vmem:[%s9 + $0x218] sm:$0xff]
        %v1474 = vld [vmem:[%s9 + $0x220] sm:$0xff]
        %v1475 = vld [vmem:[%s9 + $0x228] sm:$0xff]
        %v1476 = vld [vmem:[%s9 + $0x230] sm:$0xff]
        %v1477 = vld [vmem:[%s9 + $0x238] sm:$0xff]
        %v1478 = vld [vmem:[%s9 + $0x240] sm:$0xff]
        %v1479 = vld [vmem:[%s9 + $0x248] sm:$0xff]
        %v1480 = vld [vmem:[%s9 + $0x250] sm:$0xff]
        %v1481 = vld [vmem:[%s9 + $0x258] sm:$0xff]
        %v1482 = vld [vmem:[%s9 + $0x260] sm:$0xff]
        %v1483 = vld [vmem:[%s9 + $0x268] sm:$0xff]
        %v1484 = vld [vmem:[%s9 + $0x270] sm:$0xff]
        %v1485 = vld [vmem:[%s9 + $0x278] sm:$0xff]
        %v1486 = vld [vmem:[%s9 + $0x280] sm:$0xff]
        %v1487 = vld [vmem:[%s9 + $0x288] sm:$0xff]
        %v1488 = vld [vmem:[%s9 + $0x290] sm:$0xff]
        %v1489 = vld [vmem:[%s9 + $0x298] sm:$0xff]
        %v1490 = vld [vmem:[%s9 + $0x2a0] sm:$0xff]
        %v1491 = vld [vmem:[%s9 + $0x2a8] sm:$0xff]
        %v1492 = vld [vmem:[%s9 + $0x2b0] sm:$0xff]
        %v1493 = vld [vmem:[%s9 + $0x2b8] sm:$0xff]
        %v1494 = vld [vmem:[%s9 + $0x2c0] sm:$0xff]
        %v1495 = vld [vmem:[%s9 + $0x2c8] sm:$0xff]
        %v1496 = vld [vmem:[%s9 + $0x2d0] sm:$0xff]
        %v1497 = vld [vmem:[%s9 + $0x2d8] sm:$0xff]
        %v1498 = vld [vmem:[%s9 + $0x2e0] sm:$0xff]
        %v1499 = vld [vmem:[%s9 + $0x2e8] sm:$0xff]
        %v1500 = vld [vmem:[%s9 + $0x2f0] sm:$0xff]
        %v1501 = vld [vmem:[%s9 + $0x2f8] sm:$0xff]
        %v1502 = vld [vmem:[%s9 + $0x300] sm:$0xff]
        %v1503 = vld [vmem:[%s9 + $0x308] sm:$0xff]
        %v1504 = vld [vmem:[%s9 + $0x310] sm:$0xff]
        %v1505 = vld [vmem:[%s9 + $0x318] sm:$0xff]
        %v1506 = vld [vmem:[%s9 + $0x320] sm:$0xff]
        %v1507 = vld [vmem:[%s9 + $0x328] sm:$0xff]
        %v1508 = vld [vmem:[%s9 + $0x330] sm:$0xff]
        %v1509 = vld [vmem:[%s9 + $0x338] sm:$0xff]
        %v1510 = vld [vmem:[%s9 + $0x340] sm:$0xff]
        %v1511 = vld [vmem:[%s9 + $0x348] sm:$0xff]
        %v1512 = vld [vmem:[%s9 + $0x350] sm:$0xff]
        %v1513 = vld [vmem:[%s9 + $0x358] sm:$0xff]
        %v1514 = vld [vmem:[%s9 + $0x360] sm:$0xff]
        %v1515 = vld [vmem:[%s9 + $0x368] sm:$0xff]
        %v1516 = vld [vmem:[%s9 + $0x370] sm:$0xff]
        %v1517 = vld [vmem:[%s9 + $0x378] sm:$0xff]
        %v1518 = vld [vmem:[%s9 + $0x380] sm:$0xff]
        %v1519 = vld [vmem:[%s9 + $0x388] sm:$0xff]
        %v1520 = vld [vmem:[%s9 + $0x390] sm:$0xff]
        %v1521 = vld [vmem:[%s9 + $0x398] sm:$0xff]
        %v1522 = vld [vmem:[%s9 + $0x3a0] sm:$0xff]
        %v1523 = vld [vmem:[%s9 + $0x3a8] sm:$0xff]
        %v1524 = vld [vmem:[%s9 + $0x3b0] sm:$0xff]
        %v1525 = vld [vmem:[%s9 + $0x3b8] sm:$0xff]
        %v1526 = vld [vmem:[%s9 + $0x3c0] sm:$0xff]
        %v1527 = vld [vmem:[%s9 + $0x3c8] sm:$0xff]
        %v1528 = vld [vmem:[%s9 + $0x3d0] sm:$0xff]
        %v1529 = vld [vmem:[%s9 + $0x3d8] sm:$0xff]
        %v1530 = vld [vmem:[%s9 + $0x3e0] sm:$0xff]
        %v1531 = vld [vmem:[%s9 + $0x3e8] sm:$0xff]
        %v1532 = vld [vmem:[%s9 + $0x3f0] sm:$0xff]
        %v1533 = vld [vmem:[%s9 + $0x3f8] sm:$0xff]
        %v1534 = vld [vmem:[%s10] sm:$0xff]
        %v1536 = vlaneseq
        %v1537 = vshrl.u32 %v1536, 7
        %v1538 = vsub.s32 0, %v1537
        %v1539 = vrot.slane %v1534, %v1538
        %v1540 = vlaneseq
        %v1541 = vshrl.u32 %v1540, 7
        %v1542 = vsub.s32 1, %v1541
        %v1543 = vrot.slane %v1534, %v1542
        %v1544 = vlaneseq
        %v1545 = vshrl.u32 %v1544, 7
        %v1546 = vsub.s32 2, %v1545
        %v1547 = vrot.slane %v1534, %v1546
        %v1548 = vlaneseq
        %v1549 = vshrl.u32 %v1548, 7
        %v1550 = vsub.s32 3, %v1549
        %v1551 = vrot.slane %v1534, %v1550
        %v1552 = vlaneseq
        %v1553 = vshrl.u32 %v1552, 7
        %v1554 = vsub.s32 4, %v1553
        %v1555 = vrot.slane %v1534, %v1554
        %v1556 = vlaneseq
        %v1557 = vshrl.u32 %v1556, 7
        %v1558 = vsub.s32 5, %v1557
        %v1559 = vrot.slane %v1534, %v1558
        %v1560 = vlaneseq
        %v1561 = vshrl.u32 %v1560, 7
        %v1562 = vsub.s32 6, %v1561
        %v1563 = vrot.slane %v1534, %v1562
        %v1564 = vlaneseq
        %v1565 = vshrl.u32 %v1564, 7
        %v1566 = vsub.s32 7, %v1565
        %v1567 = vrot.slane %v1534, %v1566
        %v1704 = vunpack.c.l.b16 %v1406
        %v1705 = vunpack.c.h.b16 %v1406
        %v1706 = vunpack.c.l.b16 %v1407
        %v1707 = vunpack.c.h.b16 %v1407
        %v1708 = vunpack.c.l.b16 %v1408
        %v1709 = vunpack.c.h.b16 %v1408
        %v1710 = vunpack.c.l.b16 %v1409
        %v1711 = vunpack.c.h.b16 %v1409
        %v1712 = vunpack.c.l.b16 %v1410
        %v1713 = vunpack.c.h.b16 %v1410
        %v1714 = vunpack.c.l.b16 %v1411
        %v1715 = vunpack.c.h.b16 %v1411
        %v1716 = vunpack.c.l.b16 %v1412
        %v1717 = vunpack.c.h.b16 %v1412
        %v1718 = vunpack.c.l.b16 %v1413
        %v1719 = vunpack.c.h.b16 %v1413
        %v1720 = vunpack.c.l.b16 %v1414
        %v1721 = vunpack.c.h.b16 %v1414
        %v1722 = vunpack.c.l.b16 %v1415
        %v1723 = vunpack.c.h.b16 %v1415
        %v1724 = vunpack.c.l.b16 %v1416
        %v1725 = vunpack.c.h.b16 %v1416
        %v1726 = vunpack.c.l.b16 %v1417
        %v1727 = vunpack.c.h.b16 %v1417
        %v1728 = vunpack.c.l.b16 %v1418
        %v1729 = vunpack.c.h.b16 %v1418
        %v1730 = vunpack.c.l.b16 %v1419
        %v1731 = vunpack.c.h.b16 %v1419
        %v1732 = vunpack.c.l.b16 %v1420
        %v1733 = vunpack.c.h.b16 %v1420
        %v1734 = vunpack.c.l.b16 %v1421
        %v1735 = vunpack.c.h.b16 %v1421
        %v1736 = vunpack.c.l.b16 %v1422
        %v1737 = vunpack.c.h.b16 %v1422
        %v1738 = vunpack.c.l.b16 %v1423
        %v1739 = vunpack.c.h.b16 %v1423
        %v1740 = vunpack.c.l.b16 %v1424
        %v1741 = vunpack.c.h.b16 %v1424
        %v1742 = vunpack.c.l.b16 %v1425
        %v1743 = vunpack.c.h.b16 %v1425
        %v1744 = vunpack.c.l.b16 %v1426
        %v1745 = vunpack.c.h.b16 %v1426
        %v1746 = vunpack.c.l.b16 %v1427
        %v1747 = vunpack.c.h.b16 %v1427
        %v1748 = vunpack.c.l.b16 %v1428
        %v1749 = vunpack.c.h.b16 %v1428
        %v1750 = vunpack.c.l.b16 %v1429
        %v1751 = vunpack.c.h.b16 %v1429
        %v1752 = vunpack.c.l.b16 %v1430
        %v1753 = vunpack.c.h.b16 %v1430
        %v1754 = vunpack.c.l.b16 %v1431
        %v1755 = vunpack.c.h.b16 %v1431
        %v1756 = vunpack.c.l.b16 %v1432
        %v1757 = vunpack.c.h.b16 %v1432
        %v1758 = vunpack.c.l.b16 %v1433
        %v1759 = vunpack.c.h.b16 %v1433
        %v1760 = vunpack.c.l.b16 %v1434
        %v1761 = vunpack.c.h.b16 %v1434
        %v1762 = vunpack.c.l.b16 %v1435
        %v1763 = vunpack.c.h.b16 %v1435
        %v1764 = vunpack.c.l.b16 %v1436
        %v1765 = vunpack.c.h.b16 %v1436
        %v1766 = vunpack.c.l.b16 %v1437
        %v1767 = vunpack.c.h.b16 %v1437
        %v1768 = vunpack.c.l.b16 %v1438
        %v1769 = vunpack.c.h.b16 %v1438
        %v1770 = vunpack.c.l.b16 %v1439
        %v1771 = vunpack.c.h.b16 %v1439
        %v1772 = vunpack.c.l.b16 %v1440
        %v1773 = vunpack.c.h.b16 %v1440
        %v1774 = vunpack.c.l.b16 %v1441
        %v1775 = vunpack.c.h.b16 %v1441
        %v1776 = vunpack.c.l.b16 %v1442
        %v1777 = vunpack.c.h.b16 %v1442
        %v1778 = vunpack.c.l.b16 %v1443
        %v1779 = vunpack.c.h.b16 %v1443
        %v1780 = vunpack.c.l.b16 %v1444
        %v1781 = vunpack.c.h.b16 %v1444
        %v1782 = vunpack.c.l.b16 %v1445
        %v1783 = vunpack.c.h.b16 %v1445
        %v1784 = vunpack.c.l.b16 %v1446
        %v1785 = vunpack.c.h.b16 %v1446
        %v1786 = vunpack.c.l.b16 %v1447
        %v1787 = vunpack.c.h.b16 %v1447
        %v1788 = vunpack.c.l.b16 %v1448
        %v1789 = vunpack.c.h.b16 %v1448
        %v1790 = vunpack.c.l.b16 %v1449
        %v1791 = vunpack.c.h.b16 %v1449
        %v1792 = vunpack.c.l.b16 %v1450
        %v1793 = vunpack.c.h.b16 %v1450
        %v1794 = vunpack.c.l.b16 %v1451
        %v1795 = vunpack.c.h.b16 %v1451
        %v1796 = vunpack.c.l.b16 %v1452
        %v1797 = vunpack.c.h.b16 %v1452
        %v1798 = vunpack.c.l.b16 %v1453
        %v1799 = vunpack.c.h.b16 %v1453
        %v1800 = vunpack.c.l.b16 %v1454
        %v1801 = vunpack.c.h.b16 %v1454
        %v1802 = vunpack.c.l.b16 %v1455
        %v1803 = vunpack.c.h.b16 %v1455
        %v1804 = vunpack.c.l.b16 %v1456
        %v1805 = vunpack.c.h.b16 %v1456
        %v1806 = vunpack.c.l.b16 %v1457
        %v1807 = vunpack.c.h.b16 %v1457
        %v1808 = vunpack.c.l.b16 %v1458
        %v1809 = vunpack.c.h.b16 %v1458
        %v1810 = vunpack.c.l.b16 %v1459
        %v1811 = vunpack.c.h.b16 %v1459
        %v1812 = vunpack.c.l.b16 %v1460
        %v1813 = vunpack.c.h.b16 %v1460
        %v1814 = vunpack.c.l.b16 %v1461
        %v1815 = vunpack.c.h.b16 %v1461
        %v1816 = vunpack.c.l.b16 %v1462
        %v1817 = vunpack.c.h.b16 %v1462
        %v1818 = vunpack.c.l.b16 %v1463
        %v1819 = vunpack.c.h.b16 %v1463
        %v1820 = vunpack.c.l.b16 %v1464
        %v1821 = vunpack.c.h.b16 %v1464
        %v1822 = vunpack.c.l.b16 %v1465
        %v1823 = vunpack.c.h.b16 %v1465
        %v1824 = vunpack.c.l.b16 %v1466
        %v1825 = vunpack.c.h.b16 %v1466
        %v1826 = vunpack.c.l.b16 %v1467
        %v1827 = vunpack.c.h.b16 %v1467
        %v1828 = vunpack.c.l.b16 %v1468
        %v1829 = vunpack.c.h.b16 %v1468
        %v1830 = vunpack.c.l.b16 %v1469
        %v1831 = vunpack.c.h.b16 %v1469
        %v1832 = vunpack.c.l.b16 %v1470
        %v1833 = vunpack.c.h.b16 %v1470
        %v1834 = vunpack.c.l.b16 %v1471
        %v1835 = vunpack.c.h.b16 %v1471
        %v1836 = vunpack.c.l.b16 %v1472
        %v1837 = vunpack.c.h.b16 %v1472
        %v1838 = vunpack.c.l.b16 %v1473
        %v1839 = vunpack.c.h.b16 %v1473
        %v1840 = vunpack.c.l.b16 %v1474
        %v1841 = vunpack.c.h.b16 %v1474
        %v1842 = vunpack.c.l.b16 %v1475
        %v1843 = vunpack.c.h.b16 %v1475
        %v1844 = vunpack.c.l.b16 %v1476
        %v1845 = vunpack.c.h.b16 %v1476
        %v1846 = vunpack.c.l.b16 %v1477
        %v1847 = vunpack.c.h.b16 %v1477
        %v1848 = vunpack.c.l.b16 %v1478
        %v1849 = vunpack.c.h.b16 %v1478
        %v1850 = vunpack.c.l.b16 %v1479
        %v1851 = vunpack.c.h.b16 %v1479
        %v1852 = vunpack.c.l.b16 %v1480
        %v1853 = vunpack.c.h.b16 %v1480
        %v1854 = vunpack.c.l.b16 %v1481
        %v1855 = vunpack.c.h.b16 %v1481
        %v1856 = vunpack.c.l.b16 %v1482
        %v1857 = vunpack.c.h.b16 %v1482
        %v1858 = vunpack.c.l.b16 %v1483
        %v1859 = vunpack.c.h.b16 %v1483
        %v1860 = vunpack.c.l.b16 %v1484
        %v1861 = vunpack.c.h.b16 %v1484
        %v1862 = vunpack.c.l.b16 %v1485
        %v1863 = vunpack.c.h.b16 %v1485
        %v1864 = vunpack.c.l.b16 %v1486
        %v1865 = vunpack.c.h.b16 %v1486
        %v1866 = vunpack.c.l.b16 %v1487
        %v1867 = vunpack.c.h.b16 %v1487
        %v1868 = vunpack.c.l.b16 %v1488
        %v1869 = vunpack.c.h.b16 %v1488
        %v1870 = vunpack.c.l.b16 %v1489
        %v1871 = vunpack.c.h.b16 %v1489
        %v1872 = vunpack.c.l.b16 %v1490
        %v1873 = vunpack.c.h.b16 %v1490
        %v1874 = vunpack.c.l.b16 %v1491
        %v1875 = vunpack.c.h.b16 %v1491
        %v1876 = vunpack.c.l.b16 %v1492
        %v1877 = vunpack.c.h.b16 %v1492
        %v1878 = vunpack.c.l.b16 %v1493
        %v1879 = vunpack.c.h.b16 %v1493
        %v1880 = vunpack.c.l.b16 %v1494
        %v1881 = vunpack.c.h.b16 %v1494
        %v1882 = vunpack.c.l.b16 %v1495
        %v1883 = vunpack.c.h.b16 %v1495
        %v1884 = vunpack.c.l.b16 %v1496
        %v1885 = vunpack.c.h.b16 %v1496
        %v1886 = vunpack.c.l.b16 %v1497
        %v1887 = vunpack.c.h.b16 %v1497
        %v1888 = vunpack.c.l.b16 %v1498
        %v1889 = vunpack.c.h.b16 %v1498
        %v1890 = vunpack.c.l.b16 %v1499
        %v1891 = vunpack.c.h.b16 %v1499
        %v1892 = vunpack.c.l.b16 %v1500
        %v1893 = vunpack.c.h.b16 %v1500
        %v1894 = vunpack.c.l.b16 %v1501
        %v1895 = vunpack.c.h.b16 %v1501
        %v1896 = vunpack.c.l.b16 %v1502
        %v1897 = vunpack.c.h.b16 %v1502
        %v1898 = vunpack.c.l.b16 %v1503
        %v1899 = vunpack.c.h.b16 %v1503
        %v1900 = vunpack.c.l.b16 %v1504
        %v1901 = vunpack.c.h.b16 %v1504
        %v1902 = vunpack.c.l.b16 %v1505
        %v1903 = vunpack.c.h.b16 %v1505
        %v1904 = vunpack.c.l.b16 %v1506
        %v1905 = vunpack.c.h.b16 %v1506
        %v1906 = vunpack.c.l.b16 %v1507
        %v1907 = vunpack.c.h.b16 %v1507
        %v1908 = vunpack.c.l.b16 %v1508
        %v1909 = vunpack.c.h.b16 %v1508
        %v1910 = vunpack.c.l.b16 %v1509
        %v1911 = vunpack.c.h.b16 %v1509
        %v1912 = vunpack.c.l.b16 %v1510
        %v1913 = vunpack.c.h.b16 %v1510
        %v1914 = vunpack.c.l.b16 %v1511
        %v1915 = vunpack.c.h.b16 %v1511
        %v1916 = vunpack.c.l.b16 %v1512
        %v1917 = vunpack.c.h.b16 %v1512
        %v1918 = vunpack.c.l.b16 %v1513
        %v1919 = vunpack.c.h.b16 %v1513
        %v1920 = vunpack.c.l.b16 %v1514
        %v1921 = vunpack.c.h.b16 %v1514
        %v1922 = vunpack.c.l.b16 %v1515
        %v1923 = vunpack.c.h.b16 %v1515
        %v1924 = vunpack.c.l.b16 %v1516
        %v1925 = vunpack.c.h.b16 %v1516
        %v1926 = vunpack.c.l.b16 %v1517
        %v1927 = vunpack.c.h.b16 %v1517
        %v1928 = vunpack.c.l.b16 %v1518
        %v1929 = vunpack.c.h.b16 %v1518
        %v1930 = vunpack.c.l.b16 %v1519
        %v1931 = vunpack.c.h.b16 %v1519
        %v1932 = vunpack.c.l.b16 %v1520
        %v1933 = vunpack.c.h.b16 %v1520
        %v1934 = vunpack.c.l.b16 %v1521
        %v1935 = vunpack.c.h.b16 %v1521
        %v1936 = vunpack.c.l.b16 %v1522
        %v1937 = vunpack.c.h.b16 %v1522
        %v1938 = vunpack.c.l.b16 %v1523
        %v1939 = vunpack.c.h.b16 %v1523
        %v1940 = vunpack.c.l.b16 %v1524
        %v1941 = vunpack.c.h.b16 %v1524
        %v1942 = vunpack.c.l.b16 %v1525
        %v1943 = vunpack.c.h.b16 %v1525
        %v1944 = vunpack.c.l.b16 %v1526
        %v1945 = vunpack.c.h.b16 %v1526
        %v1946 = vunpack.c.l.b16 %v1527
        %v1947 = vunpack.c.h.b16 %v1527
        %v1948 = vunpack.c.l.b16 %v1528
        %v1949 = vunpack.c.h.b16 %v1528
        %v1950 = vunpack.c.l.b16 %v1529
        %v1951 = vunpack.c.h.b16 %v1529
        %v1952 = vunpack.c.l.b16 %v1530
        %v1953 = vunpack.c.h.b16 %v1530
        %v1954 = vunpack.c.l.b16 %v1531
        %v1955 = vunpack.c.h.b16 %v1531
        %v1956 = vunpack.c.l.b16 %v1532
        %v1957 = vunpack.c.h.b16 %v1532
        %v1958 = vunpack.c.l.b16 %v1533
        %v1959 = vunpack.c.h.b16 %v1533
        %v1960 = vpack.c.b16 %v1712, %v1704
        %v1961 = vpack.c.b16 %v1713, %v1705
        %v1962 = vpack.c.b16 %v1714, %v1706
        %v1963 = vpack.c.b16 %v1715, %v1707
        %v1964 = vpack.c.b16 %v1716, %v1708
        %v1965 = vpack.c.b16 %v1717, %v1709
        %v1966 = vpack.c.b16 %v1718, %v1710
        %v1967 = vpack.c.b16 %v1719, %v1711
        %v1968 = vpack.c.b16 %v1728, %v1720
        %v1969 = vpack.c.b16 %v1729, %v1721
        %v1970 = vpack.c.b16 %v1730, %v1722
        %v1971 = vpack.c.b16 %v1731, %v1723
        %v1972 = vpack.c.b16 %v1732, %v1724
        %v1973 = vpack.c.b16 %v1733, %v1725
        %v1974 = vpack.c.b16 %v1734, %v1726
        %v1975 = vpack.c.b16 %v1735, %v1727
        %v1976 = vpack.c.b16 %v1744, %v1736
        %v1977 = vpack.c.b16 %v1745, %v1737
        %v1978 = vpack.c.b16 %v1746, %v1738
        %v1979 = vpack.c.b16 %v1747, %v1739
        %v1980 = vpack.c.b16 %v1748, %v1740
        %v1981 = vpack.c.b16 %v1749, %v1741
        %v1982 = vpack.c.b16 %v1750, %v1742
        %v1983 = vpack.c.b16 %v1751, %v1743
        %v1984 = vpack.c.b16 %v1760, %v1752
        %v1985 = vpack.c.b16 %v1761, %v1753
        %v1986 = vpack.c.b16 %v1762, %v1754
        %v1987 = vpack.c.b16 %v1763, %v1755
        %v1988 = vpack.c.b16 %v1764, %v1756
        %v1989 = vpack.c.b16 %v1765, %v1757
        %v1990 = vpack.c.b16 %v1766, %v1758
        %v1991 = vpack.c.b16 %v1767, %v1759
        %v1992 = vpack.c.b16 %v1776, %v1768
        %v1993 = vpack.c.b16 %v1777, %v1769
        %v1994 = vpack.c.b16 %v1778, %v1770
        %v1995 = vpack.c.b16 %v1779, %v1771
        %v1996 = vpack.c.b16 %v1780, %v1772
        %v1997 = vpack.c.b16 %v1781, %v1773
        %v1998 = vpack.c.b16 %v1782, %v1774
        %v1999 = vpack.c.b16 %v1783, %v1775
        %v2000 = vpack.c.b16 %v1792, %v1784
        %v2001 = vpack.c.b16 %v1793, %v1785
        %v2002 = vpack.c.b16 %v1794, %v1786
        %v2003 = vpack.c.b16 %v1795, %v1787
        %v2004 = vpack.c.b16 %v1796, %v1788
        %v2005 = vpack.c.b16 %v1797, %v1789
        %v2006 = vpack.c.b16 %v1798, %v1790
        %v2007 = vpack.c.b16 %v1799, %v1791
        %v2008 = vpack.c.b16 %v1808, %v1800
        %v2009 = vpack.c.b16 %v1809, %v1801
        %v2010 = vpack.c.b16 %v1810, %v1802
        %v2011 = vpack.c.b16 %v1811, %v1803
        %v2012 = vpack.c.b16 %v1812, %v1804
        %v2013 = vpack.c.b16 %v1813, %v1805
        %v2014 = vpack.c.b16 %v1814, %v1806
        %v2015 = vpack.c.b16 %v1815, %v1807
        %v2016 = vpack.c.b16 %v1824, %v1816
        %v2017 = vpack.c.b16 %v1825, %v1817
        %v2018 = vpack.c.b16 %v1826, %v1818
        %v2019 = vpack.c.b16 %v1827, %v1819
        %v2020 = vpack.c.b16 %v1828, %v1820
        %v2021 = vpack.c.b16 %v1829, %v1821
        %v2022 = vpack.c.b16 %v1830, %v1822
        %v2023 = vpack.c.b16 %v1831, %v1823
        %v2024 = vpack.c.b16 %v1840, %v1832
        %v2025 = vpack.c.b16 %v1841, %v1833
        %v2026 = vpack.c.b16 %v1842, %v1834
        %v2027 = vpack.c.b16 %v1843, %v1835
        %v2028 = vpack.c.b16 %v1844, %v1836
        %v2029 = vpack.c.b16 %v1845, %v1837
        %v2030 = vpack.c.b16 %v1846, %v1838
        %v2031 = vpack.c.b16 %v1847, %v1839
        %v2032 = vpack.c.b16 %v1856, %v1848
        %v2033 = vpack.c.b16 %v1857, %v1849
        %v2034 = vpack.c.b16 %v1858, %v1850
        %v2035 = vpack.c.b16 %v1859, %v1851
        %v2036 = vpack.c.b16 %v1860, %v1852
        %v2037 = vpack.c.b16 %v1861, %v1853
        %v2038 = vpack.c.b16 %v1862, %v1854
        %v2039 = vpack.c.b16 %v1863, %v1855
        %v2040 = vpack.c.b16 %v1872, %v1864
        %v2041 = vpack.c.b16 %v1873, %v1865
        %v2042 = vpack.c.b16 %v1874, %v1866
        %v2043 = vpack.c.b16 %v1875, %v1867
        %v2044 = vpack.c.b16 %v1876, %v1868
        %v2045 = vpack.c.b16 %v1877, %v1869
        %v2046 = vpack.c.b16 %v1878, %v1870
        %v2047 = vpack.c.b16 %v1879, %v1871
        %v2048 = vpack.c.b16 %v1888, %v1880
        %v2049 = vpack.c.b16 %v1889, %v1881
        %v2050 = vpack.c.b16 %v1890, %v1882
        %v2051 = vpack.c.b16 %v1891, %v1883
        %v2052 = vpack.c.b16 %v1892, %v1884
        %v2053 = vpack.c.b16 %v1893, %v1885
        %v2054 = vpack.c.b16 %v1894, %v1886
        %v2055 = vpack.c.b16 %v1895, %v1887
        %v2056 = vpack.c.b16 %v1904, %v1896
        %v2057 = vpack.c.b16 %v1905, %v1897
        %v2058 = vpack.c.b16 %v1906, %v1898
        %v2059 = vpack.c.b16 %v1907, %v1899
        %v2060 = vpack.c.b16 %v1908, %v1900
        %v2061 = vpack.c.b16 %v1909, %v1901
        %v2062 = vpack.c.b16 %v1910, %v1902
        %v2063 = vpack.c.b16 %v1911, %v1903
        %v2064 = vpack.c.b16 %v1920, %v1912
        %v2065 = vpack.c.b16 %v1921, %v1913
        %v2066 = vpack.c.b16 %v1922, %v1914
        %v2067 = vpack.c.b16 %v1923, %v1915
        %v2068 = vpack.c.b16 %v1924, %v1916
        %v2069 = vpack.c.b16 %v1925, %v1917
        %v2070 = vpack.c.b16 %v1926, %v1918
        %v2071 = vpack.c.b16 %v1927, %v1919
        %v2072 = vpack.c.b16 %v1936, %v1928
        %v2073 = vpack.c.b16 %v1937, %v1929
        %v2074 = vpack.c.b16 %v1938, %v1930
        %v2075 = vpack.c.b16 %v1939, %v1931
        %v2076 = vpack.c.b16 %v1940, %v1932
        %v2077 = vpack.c.b16 %v1941, %v1933
        %v2078 = vpack.c.b16 %v1942, %v1934
        %v2079 = vpack.c.b16 %v1943, %v1935
        %v2080 = vpack.c.b16 %v1952, %v1944
        %v2081 = vpack.c.b16 %v1953, %v1945
        %v2082 = vpack.c.b16 %v1954, %v1946
        %v2083 = vpack.c.b16 %v1955, %v1947
        %v2084 = vpack.c.b16 %v1956, %v1948
        %v2085 = vpack.c.b16 %v1957, %v1949
        %v2086 = vpack.c.b16 %v1958, %v1950
        %v2087 = vpack.c.b16 %v1959, %v1951
        %2216 = vmatprep.subr.bf16.mxu0 %v1961
        %2217 = vmatpush1.bf16.msra.mxu0 %v1960
        %2218 = vmatprep.subr.bf16.mxu0 %v1969
        %2219 = vmatpush1.bf16.msra.mxu0 %v1968
        %2220 = vmatprep.subr.bf16.mxu0 %v1977
        %2221 = vmatpush1.bf16.msra.mxu0 %v1976
        %2222 = vmatprep.subr.bf16.mxu0 %v1985
        %2223 = vmatpush1.bf16.msra.mxu0 %v1984
        %2224 = vmatprep.subr.bf16.mxu0 %v1993
        %2225 = vmatpush1.bf16.msra.mxu0 %v1992
        %2226 = vmatprep.subr.bf16.mxu0 %v2001
        %2227 = vmatpush1.bf16.msra.mxu0 %v2000
        %2228 = vmatprep.subr.bf16.mxu0 %v2009
        %2229 = vmatpush1.bf16.msra.mxu0 %v2008
        %2230 = vmatprep.subr.bf16.mxu0 %v2017
        %2231 = vmatpush1.bf16.msra.mxu0 %v2016
        %2232 = vmatprep.subr.bf16.mxu0 %v2025
        %2233 = vmatpush1.bf16.msra.mxu0 %v2024
        %2234 = vmatprep.subr.bf16.mxu0 %v2033
        %2235 = vmatpush1.bf16.msra.mxu0 %v2032
        %2236 = vmatprep.subr.bf16.mxu0 %v2041
        %2237 = vmatpush1.bf16.msra.mxu0 %v2040
        %2238 = vmatprep.subr.bf16.mxu0 %v2049
        %2239 = vmatpush1.bf16.msra.mxu0 %v2048
        %2240 = vmatprep.subr.bf16.mxu0 %v2057
        %2241 = vmatpush1.bf16.msra.mxu0 %v2056
        %2242 = vmatprep.subr.bf16.mxu0 %v2065
        %2243 = vmatpush1.bf16.msra.mxu0 %v2064
        %2244 = vmatprep.subr.bf16.mxu0 %v2073
        %2245 = vmatpush1.bf16.msra.mxu0 %v2072
        %2246 = vmatprep.subr.bf16.mxu0 %v2081
        %2247 = vmatpush1.bf16.msra.mxu0 %v2080
        %2248 = vmatprep.mubr.bf16.mxu0 %v1405
        %2249 = vmatmul.mubr.bf16.gmra.mrb[0].mxu0 %v1404
        %v2250 = vpop.f32.mrb[0].mxu0
        %v2251 = vadd.f32 %v1539, %v2250
        %v2252 = vpop.f32.mrb[0].mxu0
        %v2253 = vadd.f32 %v1543, %v2252
        %v2254 = vpop.f32.mrb[0].mxu0
        %v2255 = vadd.f32 %v1539, %v2254
        %v2256 = vpop.f32.mrb[0].mxu0
        %v2257 = vadd.f32 %v1543, %v2256
        %2258 = vdwg.mxu0
        %2259 = vmatprep.subr.bf16.mxu0 %v1963
        %2260 = vmatpush1.bf16.msra.mxu0 %v1962
        %2261 = vmatprep.subr.bf16.mxu0 %v1971
        %2262 = vmatpush1.bf16.msra.mxu0 %v1970
        %2263 = vmatprep.subr.bf16.mxu0 %v1979
        %2264 = vmatpush1.bf16.msra.mxu0 %v1978
        %2265 = vmatprep.subr.bf16.mxu0 %v1987
        %2266 = vmatpush1.bf16.msra.mxu0 %v1986
        %2267 = vmatprep.subr.bf16.mxu0 %v1995
        %2268 = vmatpush1.bf16.msra.mxu0 %v1994
        %2269 = vmatprep.subr.bf16.mxu0 %v2003
        %2270 = vmatpush1.bf16.msra.mxu0 %v2002
        %2271 = vmatprep.subr.bf16.mxu0 %v2011
        %2272 = vmatpush1.bf16.msra.mxu0 %v2010
        %2273 = vmatprep.subr.bf16.mxu0 %v2019
        %2274 = vmatpush1.bf16.msra.mxu0 %v2018
        %2275 = vmatprep.subr.bf16.mxu0 %v2027
        %2276 = vmatpush1.bf16.msra.mxu0 %v2026
        %2277 = vmatprep.subr.bf16.mxu0 %v2035
        %2278 = vmatpush1.bf16.msra.mxu0 %v2034
        %2279 = vmatprep.subr.bf16.mxu0 %v2043
        %2280 = vmatpush1.bf16.msra.mxu0 %v2042
        %2281 = vmatprep.subr.bf16.mxu0 %v2051
        %2282 = vmatpush1.bf16.msra.mxu0 %v2050
        %2283 = vmatprep.subr.bf16.mxu0 %v2059
        %2284 = vmatpush1.bf16.msra.mxu0 %v2058
        %2285 = vmatprep.subr.bf16.mxu0 %v2067
        %2286 = vmatpush1.bf16.msra.mxu0 %v2066
        %2287 = vmatprep.subr.bf16.mxu0 %v2075
        %2288 = vmatpush1.bf16.msra.mxu0 %v2074
        %2289 = vmatprep.subr.bf16.mxu0 %v2083
        %2290 = vmatpush1.bf16.msra.mxu0 %v2082
        %2291 = vmatprep.mubr.bf16.mxu0 %v1405
        %2292 = vmatmul.mubr.bf16.gmra.mrb[0].mxu0 %v1404
        %v2293 = vpop.f32.mrb[0].mxu0
        %v2294 = vadd.f32 %v1547, %v2293
        %v2295 = vpop.f32.mrb[0].mxu0
        %v2296 = vadd.f32 %v1551, %v2295
        %v2297 = vpop.f32.mrb[0].mxu0
        %v2298 = vadd.f32 %v1547, %v2297
        %v2299 = vpop.f32.mrb[0].mxu0
        %v2300 = vadd.f32 %v1551, %v2299
        %2301 = vdwg.mxu0
        %2302 = vmatprep.subr.bf16.mxu0 %v1965
        %2303 = vmatpush1.bf16.msra.mxu0 %v1964
        %2304 = vmatprep.subr.bf16.mxu0 %v1973
        %2305 = vmatpush1.bf16.msra.mxu0 %v1972
        %2306 = vmatprep.subr.bf16.mxu0 %v1981
        %2307 = vmatpush1.bf16.msra.mxu0 %v1980
        %2308 = vmatprep.subr.bf16.mxu0 %v1989
        %2309 = vmatpush1.bf16.msra.mxu0 %v1988
        %2310 = vmatprep.subr.bf16.mxu0 %v1997
        %2311 = vmatpush1.bf16.msra.mxu0 %v1996
        %2312 = vmatprep.subr.bf16.mxu0 %v2005
        %2313 = vmatpush1.bf16.msra.mxu0 %v2004
        %2314 = vmatprep.subr.bf16.mxu0 %v2013
        %2315 = vmatpush1.bf16.msra.mxu0 %v2012
        %2316 = vmatprep.subr.bf16.mxu0 %v2021
        %2317 = vmatpush1.bf16.msra.mxu0 %v2020
        %2318 = vmatprep.subr.bf16.mxu0 %v2029
        %2319 = vmatpush1.bf16.msra.mxu0 %v2028
        %2320 = vmatprep.subr.bf16.mxu0 %v2037
        %2321 = vmatpush1.bf16.msra.mxu0 %v2036
        %2322 = vmatprep.subr.bf16.mxu0 %v2045
        %2323 = vmatpush1.bf16.msra.mxu0 %v2044
        %2324 = vmatprep.subr.bf16.mxu0 %v2053
        %2325 = vmatpush1.bf16.msra.mxu0 %v2052
        %2326 = vmatprep.subr.bf16.mxu0 %v2061
        %2327 = vmatpush1.bf16.msra.mxu0 %v2060
        %2328 = vmatprep.subr.bf16.mxu0 %v2069
        %2329 = vmatpush1.bf16.msra.mxu0 %v2068
        %2330 = vmatprep.subr.bf16.mxu0 %v2077
        %2331 = vmatpush1.bf16.msra.mxu0 %v2076
        %2332 = vmatprep.subr.bf16.mxu0 %v2085
        %2333 = vmatpush1.bf16.msra.mxu0 %v2084
        %2334 = vmatprep.mubr.bf16.mxu0 %v1405
        %2335 = vmatmul.mubr.bf16.gmra.mrb[0].mxu0 %v1404
        %v2336 = vpop.f32.mrb[0].mxu0
        %v2337 = vadd.f32 %v1555, %v2336
        %v2338 = vpop.f32.mrb[0].mxu0
        %v2339 = vadd.f32 %v1559, %v2338
        %v2340 = vpop.f32.mrb[0].mxu0
        %v2341 = vadd.f32 %v1555, %v2340
        %v2342 = vpop.f32.mrb[0].mxu0
        %v2343 = vadd.f32 %v1559, %v2342
        %2344 = vdwg.mxu0
        %2345 = vmatprep.subr.bf16.mxu0 %v1967
        %2346 = vmatpush1.bf16.msra.mxu0 %v1966
        %2347 = vmatprep.subr.bf16.mxu0 %v1975
        %2348 = vmatpush1.bf16.msra.mxu0 %v1974
        %2349 = vmatprep.subr.bf16.mxu0 %v1983
        %2350 = vmatpush1.bf16.msra.mxu0 %v1982
        %2351 = vmatprep.subr.bf16.mxu0 %v1991
        %2352 = vmatpush1.bf16.msra.mxu0 %v1990
        %2353 = vmatprep.subr.bf16.mxu0 %v1999
        %2354 = vmatpush1.bf16.msra.mxu0 %v1998
        %2355 = vmatprep.subr.bf16.mxu0 %v2007
        %2356 = vmatpush1.bf16.msra.mxu0 %v2006
        %2357 = vmatprep.subr.bf16.mxu0 %v2015
        %2358 = vmatpush1.bf16.msra.mxu0 %v2014
        %2359 = vmatprep.subr.bf16.mxu0 %v2023
        %2360 = vmatpush1.bf16.msra.mxu0 %v2022
        %2361 = vmatprep.subr.bf16.mxu0 %v2031
        %2362 = vmatpush1.bf16.msra.mxu0 %v2030
        %2363 = vmatprep.subr.bf16.mxu0 %v2039
        %2364 = vmatpush1.bf16.msra.mxu0 %v2038
        %2365 = vmatprep.subr.bf16.mxu0 %v2047
        %2366 = vmatpush1.bf16.msra.mxu0 %v2046
        %2367 = vmatprep.subr.bf16.mxu0 %v2055
        %2368 = vmatpush1.bf16.msra.mxu0 %v2054
        %2369 = vmatprep.subr.bf16.mxu0 %v2063
        %2370 = vmatpush1.bf16.msra.mxu0 %v2062
        %2371 = vmatprep.subr.bf16.mxu0 %v2071
        %2372 = vmatpush1.bf16.msra.mxu0 %v2070
        %2373 = vmatprep.subr.bf16.mxu0 %v2079
        %2374 = vmatpush1.bf16.msra.mxu0 %v2078
        %2375 = vmatprep.subr.bf16.mxu0 %v2087
        %2376 = vmatpush1.bf16.msra.mxu0 %v2086
        %2377 = vmatprep.mubr.bf16.mxu0 %v1405
        %2378 = vmatmul.mubr.bf16.gmra.mrb[0].mxu0 %v1404
        %v2379 = vpop.f32.mrb[0].mxu0
        %v2380 = vadd.f32 %v1563, %v2379
        %v2381 = vpop.f32.mrb[0].mxu0
        %v2382 = vadd.f32 %v1567, %v2381
        %v2383 = vpop.f32.mrb[0].mxu0
        %v2384 = vadd.f32 %v1563, %v2383
        %v2385 = vpop.f32.mrb[0].mxu0
        %v2386 = vadd.f32 %v1567, %v2385
        %2387 = vdwg.mxu0
        %vm2388 = vcmp.ge.f32.partialorder %v2251, 0.0
        %vm2389 = vcmp.ge.f32.partialorder %v2253, 0.0
        %vm2390 = vcmp.ge.f32.partialorder %v2294, 0.0
        %vm2391 = vcmp.ge.f32.partialorder %v2296, 0.0
        %vm2392 = vcmp.ge.f32.partialorder %v2337, 0.0
        %vm2393 = vcmp.ge.f32.partialorder %v2339, 0.0
        %vm2394 = vcmp.ge.f32.partialorder %v2380, 0.0
        %vm2395 = vcmp.ge.f32.partialorder %v2382, 0.0
        %vm2396 = vcmp.ge.f32.partialorder %v2255, 0.0
        %vm2397 = vcmp.ge.f32.partialorder %v2257, 0.0
        %vm2398 = vcmp.ge.f32.partialorder %v2298, 0.0
        %vm2399 = vcmp.ge.f32.partialorder %v2300, 0.0
        %vm2400 = vcmp.ge.f32.partialorder %v2341, 0.0
        %vm2401 = vcmp.ge.f32.partialorder %v2343, 0.0
        %vm2402 = vcmp.ge.f32.partialorder %v2384, 0.0
        %vm2403 = vcmp.ge.f32.partialorder %v2386, 0.0
        %v2404 = vmul.f32 %v2251, 0.1
        %v2405 = vmul.f32 %v2253, 0.1
        %v2406 = vmul.f32 %v2294, 0.1
        %v2407 = vmul.f32 %v2296, 0.1
        %v2408 = vmul.f32 %v2337, 0.1
        %v2409 = vmul.f32 %v2339, 0.1
        %v2410 = vmul.f32 %v2380, 0.1
        %v2411 = vmul.f32 %v2382, 0.1
        %v2412 = vmul.f32 %v2255, 0.1
        %v2413 = vmul.f32 %v2257, 0.1
        %v2414 = vmul.f32 %v2298, 0.1
        %v2415 = vmul.f32 %v2300, 0.1
        %v2416 = vmul.f32 %v2341, 0.1
        %v2417 = vmul.f32 %v2343, 0.1
        %v2418 = vmul.f32 %v2384, 0.1
        %v2419 = vmul.f32 %v2386, 0.1
        %v2420 = vsel %vm2388, %v2251, %v2404
        %v2421 = vsel %vm2389, %v2253, %v2405
        %v2422 = vsel %vm2390, %v2294, %v2406
        %v2423 = vsel %vm2391, %v2296, %v2407
        %v2424 = vsel %vm2392, %v2337, %v2408
        %v2425 = vsel %vm2393, %v2339, %v2409
        %v2426 = vsel %vm2394, %v2380, %v2410
        %v2427 = vsel %vm2395, %v2382, %v2411
        %v2428 = vsel %vm2396, %v2255, %v2412
        %v2429 = vsel %vm2397, %v2257, %v2413
        %v2430 = vsel %vm2398, %v2298, %v2414
        %v2431 = vsel %vm2399, %v2300, %v2415
        %v2432 = vsel %vm2400, %v2341, %v2416
        %v2433 = vsel %vm2401, %v2343, %v2417
        %v2434 = vsel %vm2402, %v2384, %v2418
        %v2435 = vsel %vm2403, %v2386, %v2419
        %v2436 = vpack.c.bf16 %v2428, %v2420
        %v2437 = vpack.c.bf16 %v2429, %v2421
        %v2438 = vpack.c.bf16 %v2430, %v2422
        %v2439 = vpack.c.bf16 %v2431, %v2423
        %v2440 = vpack.c.bf16 %v2432, %v2424
        %v2441 = vpack.c.bf16 %v2433, %v2425
        %v2442 = vpack.c.bf16 %v2434, %v2426
        %v2443 = vpack.c.bf16 %v2435, %v2427
        %v2444 = vld [vmem:[%s11] sm:$0xff]
        %v2445 = vld [vmem:[%s11 + $0x8] sm:$0xff]
        %v2446 = vld [vmem:[%s11 + $0x10] sm:$0xff]
        %v2447 = vld [vmem:[%s11 + $0x18] sm:$0xff]
        %v2448 = vld [vmem:[%s11 + $0x20] sm:$0xff]
        %v2449 = vld [vmem:[%s11 + $0x28] sm:$0xff]
        %v2450 = vld [vmem:[%s11 + $0x30] sm:$0xff]
        %v2451 = vld [vmem:[%s11 + $0x38] sm:$0xff]
        %v2452 = vld [vmem:[%s11 + $0x40] sm:$0xff]
        %v2453 = vld [vmem:[%s11 + $0x48] sm:$0xff]
        %v2454 = vld [vmem:[%s11 + $0x50] sm:$0xff]
        %v2455 = vld [vmem:[%s11 + $0x58] sm:$0xff]
        %v2456 = vld [vmem:[%s11 + $0x60] sm:$0xff]
        %v2457 = vld [vmem:[%s11 + $0x68] sm:$0xff]
        %v2458 = vld [vmem:[%s11 + $0x70] sm:$0xff]
        %v2459 = vld [vmem:[%s11 + $0x78] sm:$0xff]
        %v2460 = vld [vmem:[%s11 + $0x80] sm:$0xff]
        %v2461 = vld [vmem:[%s11 + $0x88] sm:$0xff]
        %v2462 = vld [vmem:[%s11 + $0x90] sm:$0xff]
        %v2463 = vld [vmem:[%s11 + $0x98] sm:$0xff]
        %v2464 = vld [vmem:[%s11 + $0xa0] sm:$0xff]
        %v2465 = vld [vmem:[%s11 + $0xa8] sm:$0xff]
        %v2466 = vld [vmem:[%s11 + $0xb0] sm:$0xff]
        %v2467 = vld [vmem:[%s11 + $0xb8] sm:$0xff]
        %v2468 = vld [vmem:[%s11 + $0xc0] sm:$0xff]
        %v2469 = vld [vmem:[%s11 + $0xc8] sm:$0xff]
        %v2470 = vld [vmem:[%s11 + $0xd0] sm:$0xff]
        %v2471 = vld [vmem:[%s11 + $0xd8] sm:$0xff]
        %v2472 = vld [vmem:[%s11 + $0xe0] sm:$0xff]
        %v2473 = vld [vmem:[%s11 + $0xe8] sm:$0xff]
        %v2474 = vld [vmem:[%s11 + $0xf0] sm:$0xff]
        %v2475 = vld [vmem:[%s11 + $0xf8] sm:$0xff]
        %v2476 = vld [vmem:[%s11 + $0x100] sm:$0xff]
        %v2477 = vld [vmem:[%s11 + $0x108] sm:$0xff]
        %v2478 = vld [vmem:[%s11 + $0x110] sm:$0xff]
        %v2479 = vld [vmem:[%s11 + $0x118] sm:$0xff]
        %v2480 = vld [vmem:[%s11 + $0x120] sm:$0xff]
        %v2481 = vld [vmem:[%s11 + $0x128] sm:$0xff]
        %v2482 = vld [vmem:[%s11 + $0x130] sm:$0xff]
        %v2483 = vld [vmem:[%s11 + $0x138] sm:$0xff]
        %v2484 = vld [vmem:[%s11 + $0x140] sm:$0xff]
        %v2485 = vld [vmem:[%s11 + $0x148] sm:$0xff]
        %v2486 = vld [vmem:[%s11 + $0x150] sm:$0xff]
        %v2487 = vld [vmem:[%s11 + $0x158] sm:$0xff]
        %v2488 = vld [vmem:[%s11 + $0x160] sm:$0xff]
        %v2489 = vld [vmem:[%s11 + $0x168] sm:$0xff]
        %v2490 = vld [vmem:[%s11 + $0x170] sm:$0xff]
        %v2491 = vld [vmem:[%s11 + $0x178] sm:$0xff]
        %v2492 = vld [vmem:[%s11 + $0x180] sm:$0xff]
        %v2493 = vld [vmem:[%s11 + $0x188] sm:$0xff]
        %v2494 = vld [vmem:[%s11 + $0x190] sm:$0xff]
        %v2495 = vld [vmem:[%s11 + $0x198] sm:$0xff]
        %v2496 = vld [vmem:[%s11 + $0x1a0] sm:$0xff]
        %v2497 = vld [vmem:[%s11 + $0x1a8] sm:$0xff]
        %v2498 = vld [vmem:[%s11 + $0x1b0] sm:$0xff]
        %v2499 = vld [vmem:[%s11 + $0x1b8] sm:$0xff]
        %v2500 = vld [vmem:[%s11 + $0x1c0] sm:$0xff]
        %v2501 = vld [vmem:[%s11 + $0x1c8] sm:$0xff]
        %v2502 = vld [vmem:[%s11 + $0x1d0] sm:$0xff]
        %v2503 = vld [vmem:[%s11 + $0x1d8] sm:$0xff]
        %v2504 = vld [vmem:[%s11 + $0x1e0] sm:$0xff]
        %v2505 = vld [vmem:[%s11 + $0x1e8] sm:$0xff]
        %v2506 = vld [vmem:[%s11 + $0x1f0] sm:$0xff]
        %v2507 = vld [vmem:[%s11 + $0x1f8] sm:$0xff]
        %v2508 = vld [vmem:[%s11 + $0x200] sm:$0xff]
        %v2509 = vld [vmem:[%s11 + $0x208] sm:$0xff]
        %v2510 = vld [vmem:[%s11 + $0x210] sm:$0xff]
        %v2511 = vld [vmem:[%s11 + $0x218] sm:$0xff]
        %v2512 = vld [vmem:[%s11 + $0x220] sm:$0xff]
        %v2513 = vld [vmem:[%s11 + $0x228] sm:$0xff]
        %v2514 = vld [vmem:[%s11 + $0x230] sm:$0xff]
        %v2515 = vld [vmem:[%s11 + $0x238] sm:$0xff]
        %v2516 = vld [vmem:[%s11 + $0x240] sm:$0xff]
        %v2517 = vld [vmem:[%s11 + $0x248] sm:$0xff]
        %v2518 = vld [vmem:[%s11 + $0x250] sm:$0xff]
        %v2519 = vld [vmem:[%s11 + $0x258] sm:$0xff]
        %v2520 = vld [vmem:[%s11 + $0x260] sm:$0xff]
        %v2521 = vld [vmem:[%s11 + $0x268] sm:$0xff]
        %v2522 = vld [vmem:[%s11 + $0x270] sm:$0xff]
        %v2523 = vld [vmem:[%s11 + $0x278] sm:$0xff]
        %v2524 = vld [vmem:[%s11 + $0x280] sm:$0xff]
        %v2525 = vld [vmem:[%s11 + $0x288] sm:$0xff]
        %v2526 = vld [vmem:[%s11 + $0x290] sm:$0xff]
        %v2527 = vld [vmem:[%s11 + $0x298] sm:$0xff]
        %v2528 = vld [vmem:[%s11 + $0x2a0] sm:$0xff]
        %v2529 = vld [vmem:[%s11 + $0x2a8] sm:$0xff]
        %v2530 = vld [vmem:[%s11 + $0x2b0] sm:$0xff]
        %v2531 = vld [vmem:[%s11 + $0x2b8] sm:$0xff]
        %v2532 = vld [vmem:[%s11 + $0x2c0] sm:$0xff]
        %v2533 = vld [vmem:[%s11 + $0x2c8] sm:$0xff]
        %v2534 = vld [vmem:[%s11 + $0x2d0] sm:$0xff]
        %v2535 = vld [vmem:[%s11 + $0x2d8] sm:$0xff]
        %v2536 = vld [vmem:[%s11 + $0x2e0] sm:$0xff]
        %v2537 = vld [vmem:[%s11 + $0x2e8] sm:$0xff]
        %v2538 = vld [vmem:[%s11 + $0x2f0] sm:$0xff]
        %v2539 = vld [vmem:[%s11 + $0x2f8] sm:$0xff]
        %v2540 = vld [vmem:[%s11 + $0x300] sm:$0xff]
        %v2541 = vld [vmem:[%s11 + $0x308] sm:$0xff]
        %v2542 = vld [vmem:[%s11 + $0x310] sm:$0xff]
        %v2543 = vld [vmem:[%s11 + $0x318] sm:$0xff]
        %v2544 = vld [vmem:[%s11 + $0x320] sm:$0xff]
        %v2545 = vld [vmem:[%s11 + $0x328] sm:$0xff]
        %v2546 = vld [vmem:[%s11 + $0x330] sm:$0xff]
        %v2547 = vld [vmem:[%s11 + $0x338] sm:$0xff]
        %v2548 = vld [vmem:[%s11 + $0x340] sm:$0xff]
        %v2549 = vld [vmem:[%s11 + $0x348] sm:$0xff]
        %v2550 = vld [vmem:[%s11 + $0x350] sm:$0xff]
        %v2551 = vld [vmem:[%s11 + $0x358] sm:$0xff]
        %v2552 = vld [vmem:[%s11 + $0x360] sm:$0xff]
        %v2553 = vld [vmem:[%s11 + $0x368] sm:$0xff]
        %v2554 = vld [vmem:[%s11 + $0x370] sm:$0xff]
        %v2555 = vld [vmem:[%s11 + $0x378] sm:$0xff]
        %v2556 = vld [vmem:[%s11 + $0x380] sm:$0xff]
        %v2557 = vld [vmem:[%s11 + $0x388] sm:$0xff]
        %v2558 = vld [vmem:[%s11 + $0x390] sm:$0xff]
        %v2559 = vld [vmem:[%s11 + $0x398] sm:$0xff]
        %v2560 = vld [vmem:[%s11 + $0x3a0] sm:$0xff]
        %v2561 = vld [vmem:[%s11 + $0x3a8] sm:$0xff]
        %v2562 = vld [vmem:[%s11 + $0x3b0] sm:$0xff]
        %v2563 = vld [vmem:[%s11 + $0x3b8] sm:$0xff]
        %v2564 = vld [vmem:[%s11 + $0x3c0] sm:$0xff]
        %v2565 = vld [vmem:[%s11 + $0x3c8] sm:$0xff]
        %v2566 = vld [vmem:[%s11 + $0x3d0] sm:$0xff]
        %v2567 = vld [vmem:[%s11 + $0x3d8] sm:$0xff]
        %v2568 = vld [vmem:[%s11 + $0x3e0] sm:$0xff]
        %v2569 = vld [vmem:[%s11 + $0x3e8] sm:$0xff]
        %v2570 = vld [vmem:[%s11 + $0x3f0] sm:$0xff]
        %v2571 = vld [vmem:[%s11 + $0x3f8] sm:$0xff]
        %v2572 = vld [vmem:[%s12] sm:$0xf]
        %v2574 = vlaneseq
        %v2575 = vshrl.u32 %v2574, 7
        %v2576 = vsub.s32 0, %v2575
        %v2577 = vrot.slane %v2572, %v2576
        %v2578 = vlaneseq
        %v2579 = vshrl.u32 %v2578, 7
        %v2580 = vsub.s32 1, %v2579
        %v2581 = vrot.slane %v2572, %v2580
        %v2582 = vlaneseq
        %v2583 = vshrl.u32 %v2582, 7
        %v2584 = vsub.s32 2, %v2583
        %v2585 = vrot.slane %v2572, %v2584
        %v2586 = vlaneseq
        %v2587 = vshrl.u32 %v2586, 7
        %v2588 = vsub.s32 3, %v2587
        %v2589 = vrot.slane %v2572, %v2588
        %v2722 = vunpack.c.l.b16 %v2444
        %v2723 = vunpack.c.h.b16 %v2444
        %v2724 = vunpack.c.l.b16 %v2445
        %v2725 = vunpack.c.h.b16 %v2445
        %v2726 = vunpack.c.l.b16 %v2446
        %v2727 = vunpack.c.h.b16 %v2446
        %v2728 = vunpack.c.l.b16 %v2447
        %v2729 = vunpack.c.h.b16 %v2447
        %v2730 = vunpack.c.l.b16 %v2448
        %v2731 = vunpack.c.h.b16 %v2448
        %v2732 = vunpack.c.l.b16 %v2449
        %v2733 = vunpack.c.h.b16 %v2449
        %v2734 = vunpack.c.l.b16 %v2450
        %v2735 = vunpack.c.h.b16 %v2450
        %v2736 = vunpack.c.l.b16 %v2451
        %v2737 = vunpack.c.h.b16 %v2451
        %v2738 = vunpack.c.l.b16 %v2452
        %v2739 = vunpack.c.h.b16 %v2452
        %v2740 = vunpack.c.l.b16 %v2453
        %v2741 = vunpack.c.h.b16 %v2453
        %v2742 = vunpack.c.l.b16 %v2454
        %v2743 = vunpack.c.h.b16 %v2454
        %v2744 = vunpack.c.l.b16 %v2455
        %v2745 = vunpack.c.h.b16 %v2455
        %v2746 = vunpack.c.l.b16 %v2456
        %v2747 = vunpack.c.h.b16 %v2456
        %v2748 = vunpack.c.l.b16 %v2457
        %v2749 = vunpack.c.h.b16 %v2457
        %v2750 = vunpack.c.l.b16 %v2458
        %v2751 = vunpack.c.h.b16 %v2458
        %v2752 = vunpack.c.l.b16 %v2459
        %v2753 = vunpack.c.h.b16 %v2459
        %v2754 = vunpack.c.l.b16 %v2460
        %v2755 = vunpack.c.h.b16 %v2460
        %v2756 = vunpack.c.l.b16 %v2461
        %v2757 = vunpack.c.h.b16 %v2461
        %v2758 = vunpack.c.l.b16 %v2462
        %v2759 = vunpack.c.h.b16 %v2462
        %v2760 = vunpack.c.l.b16 %v2463
        %v2761 = vunpack.c.h.b16 %v2463
        %v2762 = vunpack.c.l.b16 %v2464
        %v2763 = vunpack.c.h.b16 %v2464
        %v2764 = vunpack.c.l.b16 %v2465
        %v2765 = vunpack.c.h.b16 %v2465
        %v2766 = vunpack.c.l.b16 %v2466
        %v2767 = vunpack.c.h.b16 %v2466
        %v2768 = vunpack.c.l.b16 %v2467
        %v2769 = vunpack.c.h.b16 %v2467
        %v2770 = vunpack.c.l.b16 %v2468
        %v2771 = vunpack.c.h.b16 %v2468
        %v2772 = vunpack.c.l.b16 %v2469
        %v2773 = vunpack.c.h.b16 %v2469
        %v2774 = vunpack.c.l.b16 %v2470
        %v2775 = vunpack.c.h.b16 %v2470
        %v2776 = vunpack.c.l.b16 %v2471
        %v2777 = vunpack.c.h.b16 %v2471
        %v2778 = vunpack.c.l.b16 %v2472
        %v2779 = vunpack.c.h.b16 %v2472
        %v2780 = vunpack.c.l.b16 %v2473
        %v2781 = vunpack.c.h.b16 %v2473
        %v2782 = vunpack.c.l.b16 %v2474
        %v2783 = vunpack.c.h.b16 %v2474
        %v2784 = vunpack.c.l.b16 %v2475
        %v2785 = vunpack.c.h.b16 %v2475
        %v2786 = vunpack.c.l.b16 %v2476
        %v2787 = vunpack.c.h.b16 %v2476
        %v2788 = vunpack.c.l.b16 %v2477
        %v2789 = vunpack.c.h.b16 %v2477
        %v2790 = vunpack.c.l.b16 %v2478
        %v2791 = vunpack.c.h.b16 %v2478
        %v2792 = vunpack.c.l.b16 %v2479
        %v2793 = vunpack.c.h.b16 %v2479
        %v2794 = vunpack.c.l.b16 %v2480
        %v2795 = vunpack.c.h.b16 %v2480
        %v2796 = vunpack.c.l.b16 %v2481
        %v2797 = vunpack.c.h.b16 %v2481
        %v2798 = vunpack.c.l.b16 %v2482
        %v2799 = vunpack.c.h.b16 %v2482
        %v2800 = vunpack.c.l.b16 %v2483
        %v2801 = vunpack.c.h.b16 %v2483
        %v2802 = vunpack.c.l.b16 %v2484
        %v2803 = vunpack.c.h.b16 %v2484
        %v2804 = vunpack.c.l.b16 %v2485
        %v2805 = vunpack.c.h.b16 %v2485
        %v2806 = vunpack.c.l.b16 %v2486
        %v2807 = vunpack.c.h.b16 %v2486
        %v2808 = vunpack.c.l.b16 %v2487
        %v2809 = vunpack.c.h.b16 %v2487
        %v2810 = vunpack.c.l.b16 %v2488
        %v2811 = vunpack.c.h.b16 %v2488
        %v2812 = vunpack.c.l.b16 %v2489
        %v2813 = vunpack.c.h.b16 %v2489
        %v2814 = vunpack.c.l.b16 %v2490
        %v2815 = vunpack.c.h.b16 %v2490
        %v2816 = vunpack.c.l.b16 %v2491
        %v2817 = vunpack.c.h.b16 %v2491
        %v2818 = vunpack.c.l.b16 %v2492
        %v2819 = vunpack.c.h.b16 %v2492
        %v2820 = vunpack.c.l.b16 %v2493
        %v2821 = vunpack.c.h.b16 %v2493
        %v2822 = vunpack.c.l.b16 %v2494
        %v2823 = vunpack.c.h.b16 %v2494
        %v2824 = vunpack.c.l.b16 %v2495
        %v2825 = vunpack.c.h.b16 %v2495
        %v2826 = vunpack.c.l.b16 %v2496
        %v2827 = vunpack.c.h.b16 %v2496
        %v2828 = vunpack.c.l.b16 %v2497
        %v2829 = vunpack.c.h.b16 %v2497
        %v2830 = vunpack.c.l.b16 %v2498
        %v2831 = vunpack.c.h.b16 %v2498
        %v2832 = vunpack.c.l.b16 %v2499
        %v2833 = vunpack.c.h.b16 %v2499
        %v2834 = vunpack.c.l.b16 %v2500
        %v2835 = vunpack.c.h.b16 %v2500
        %v2836 = vunpack.c.l.b16 %v2501
        %v2837 = vunpack.c.h.b16 %v2501
        %v2838 = vunpack.c.l.b16 %v2502
        %v2839 = vunpack.c.h.b16 %v2502
        %v2840 = vunpack.c.l.b16 %v2503
        %v2841 = vunpack.c.h.b16 %v2503
        %v2842 = vunpack.c.l.b16 %v2504
        %v2843 = vunpack.c.h.b16 %v2504
        %v2844 = vunpack.c.l.b16 %v2505
        %v2845 = vunpack.c.h.b16 %v2505
        %v2846 = vunpack.c.l.b16 %v2506
        %v2847 = vunpack.c.h.b16 %v2506
        %v2848 = vunpack.c.l.b16 %v2507
        %v2849 = vunpack.c.h.b16 %v2507
        %v2850 = vunpack.c.l.b16 %v2508
        %v2851 = vunpack.c.h.b16 %v2508
        %v2852 = vunpack.c.l.b16 %v2509
        %v2853 = vunpack.c.h.b16 %v2509
        %v2854 = vunpack.c.l.b16 %v2510
        %v2855 = vunpack.c.h.b16 %v2510
        %v2856 = vunpack.c.l.b16 %v2511
        %v2857 = vunpack.c.h.b16 %v2511
        %v2858 = vunpack.c.l.b16 %v2512
        %v2859 = vunpack.c.h.b16 %v2512
        %v2860 = vunpack.c.l.b16 %v2513
        %v2861 = vunpack.c.h.b16 %v2513
        %v2862 = vunpack.c.l.b16 %v2514
        %v2863 = vunpack.c.h.b16 %v2514
        %v2864 = vunpack.c.l.b16 %v2515
        %v2865 = vunpack.c.h.b16 %v2515
        %v2866 = vunpack.c.l.b16 %v2516
        %v2867 = vunpack.c.h.b16 %v2516
        %v2868 = vunpack.c.l.b16 %v2517
        %v2869 = vunpack.c.h.b16 %v2517
        %v2870 = vunpack.c.l.b16 %v2518
        %v2871 = vunpack.c.h.b16 %v2518
        %v2872 = vunpack.c.l.b16 %v2519
        %v2873 = vunpack.c.h.b16 %v2519
        %v2874 = vunpack.c.l.b16 %v2520
        %v2875 = vunpack.c.h.b16 %v2520
        %v2876 = vunpack.c.l.b16 %v2521
        %v2877 = vunpack.c.h.b16 %v2521
        %v2878 = vunpack.c.l.b16 %v2522
        %v2879 = vunpack.c.h.b16 %v2522
        %v2880 = vunpack.c.l.b16 %v2523
        %v2881 = vunpack.c.h.b16 %v2523
        %v2882 = vunpack.c.l.b16 %v2524
        %v2883 = vunpack.c.h.b16 %v2524
        %v2884 = vunpack.c.l.b16 %v2525
        %v2885 = vunpack.c.h.b16 %v2525
        %v2886 = vunpack.c.l.b16 %v2526
        %v2887 = vunpack.c.h.b16 %v2526
        %v2888 = vunpack.c.l.b16 %v2527
        %v2889 = vunpack.c.h.b16 %v2527
        %v2890 = vunpack.c.l.b16 %v2528
        %v2891 = vunpack.c.h.b16 %v2528
        %v2892 = vunpack.c.l.b16 %v2529
        %v2893 = vunpack.c.h.b16 %v2529
        %v2894 = vunpack.c.l.b16 %v2530
        %v2895 = vunpack.c.h.b16 %v2530
        %v2896 = vunpack.c.l.b16 %v2531
        %v2897 = vunpack.c.h.b16 %v2531
        %v2898 = vunpack.c.l.b16 %v2532
        %v2899 = vunpack.c.h.b16 %v2532
        %v2900 = vunpack.c.l.b16 %v2533
        %v2901 = vunpack.c.h.b16 %v2533
        %v2902 = vunpack.c.l.b16 %v2534
        %v2903 = vunpack.c.h.b16 %v2534
        %v2904 = vunpack.c.l.b16 %v2535
        %v2905 = vunpack.c.h.b16 %v2535
        %v2906 = vunpack.c.l.b16 %v2536
        %v2907 = vunpack.c.h.b16 %v2536
        %v2908 = vunpack.c.l.b16 %v2537
        %v2909 = vunpack.c.h.b16 %v2537
        %v2910 = vunpack.c.l.b16 %v2538
        %v2911 = vunpack.c.h.b16 %v2538
        %v2912 = vunpack.c.l.b16 %v2539
        %v2913 = vunpack.c.h.b16 %v2539
        %v2914 = vunpack.c.l.b16 %v2540
        %v2915 = vunpack.c.h.b16 %v2540
        %v2916 = vunpack.c.l.b16 %v2541
        %v2917 = vunpack.c.h.b16 %v2541
        %v2918 = vunpack.c.l.b16 %v2542
        %v2919 = vunpack.c.h.b16 %v2542
        %v2920 = vunpack.c.l.b16 %v2543
        %v2921 = vunpack.c.h.b16 %v2543
        %v2922 = vunpack.c.l.b16 %v2544
        %v2923 = vunpack.c.h.b16 %v2544
        %v2924 = vunpack.c.l.b16 %v2545
        %v2925 = vunpack.c.h.b16 %v2545
        %v2926 = vunpack.c.l.b16 %v2546
        %v2927 = vunpack.c.h.b16 %v2546
        %v2928 = vunpack.c.l.b16 %v2547
        %v2929 = vunpack.c.h.b16 %v2547
        %v2930 = vunpack.c.l.b16 %v2548
        %v2931 = vunpack.c.h.b16 %v2548
        %v2932 = vunpack.c.l.b16 %v2549
        %v2933 = vunpack.c.h.b16 %v2549
        %v2934 = vunpack.c.l.b16 %v2550
        %v2935 = vunpack.c.h.b16 %v2550
        %v2936 = vunpack.c.l.b16 %v2551
        %v2937 = vunpack.c.h.b16 %v2551
        %v2938 = vunpack.c.l.b16 %v2552
        %v2939 = vunpack.c.h.b16 %v2552
        %v2940 = vunpack.c.l.b16 %v2553
        %v2941 = vunpack.c.h.b16 %v2553
        %v2942 = vunpack.c.l.b16 %v2554
        %v2943 = vunpack.c.h.b16 %v2554
        %v2944 = vunpack.c.l.b16 %v2555
        %v2945 = vunpack.c.h.b16 %v2555
        %v2946 = vunpack.c.l.b16 %v2556
        %v2947 = vunpack.c.h.b16 %v2556
        %v2948 = vunpack.c.l.b16 %v2557
        %v2949 = vunpack.c.h.b16 %v2557
        %v2950 = vunpack.c.l.b16 %v2558
        %v2951 = vunpack.c.h.b16 %v2558
        %v2952 = vunpack.c.l.b16 %v2559
        %v2953 = vunpack.c.h.b16 %v2559
        %v2954 = vunpack.c.l.b16 %v2560
        %v2955 = vunpack.c.h.b16 %v2560
        %v2956 = vunpack.c.l.b16 %v2561
        %v2957 = vunpack.c.h.b16 %v2561
        %v2958 = vunpack.c.l.b16 %v2562
        %v2959 = vunpack.c.h.b16 %v2562
        %v2960 = vunpack.c.l.b16 %v2563
        %v2961 = vunpack.c.h.b16 %v2563
        %v2962 = vunpack.c.l.b16 %v2564
        %v2963 = vunpack.c.h.b16 %v2564
        %v2964 = vunpack.c.l.b16 %v2565
        %v2965 = vunpack.c.h.b16 %v2565
        %v2966 = vunpack.c.l.b16 %v2566
        %v2967 = vunpack.c.h.b16 %v2566
        %v2968 = vunpack.c.l.b16 %v2567
        %v2969 = vunpack.c.h.b16 %v2567
        %v2970 = vunpack.c.l.b16 %v2568
        %v2971 = vunpack.c.h.b16 %v2568
        %v2972 = vunpack.c.l.b16 %v2569
        %v2973 = vunpack.c.h.b16 %v2569
        %v2974 = vunpack.c.l.b16 %v2570
        %v2975 = vunpack.c.h.b16 %v2570
        %v2976 = vunpack.c.l.b16 %v2571
        %v2977 = vunpack.c.h.b16 %v2571
        %v2978 = vpack.c.b16 %v2726, %v2722
        %v2979 = vpack.c.b16 %v2727, %v2723
        %v2980 = vpack.c.b16 %v2728, %v2724
        %v2981 = vpack.c.b16 %v2729, %v2725
        %v2982 = vpack.c.b16 %v2734, %v2730
        %v2983 = vpack.c.b16 %v2735, %v2731
        %v2984 = vpack.c.b16 %v2736, %v2732
        %v2985 = vpack.c.b16 %v2737, %v2733
        %v2986 = vpack.c.b16 %v2742, %v2738
        %v2987 = vpack.c.b16 %v2743, %v2739
        %v2988 = vpack.c.b16 %v2744, %v2740
        %v2989 = vpack.c.b16 %v2745, %v2741
        %v2990 = vpack.c.b16 %v2750, %v2746
        %v2991 = vpack.c.b16 %v2751, %v2747
        %v2992 = vpack.c.b16 %v2752, %v2748
        %v2993 = vpack.c.b16 %v2753, %v2749
        %v2994 = vpack.c.b16 %v2758, %v2754
        %v2995 = vpack.c.b16 %v2759, %v2755
        %v2996 = vpack.c.b16 %v2760, %v2756
        %v2997 = vpack.c.b16 %v2761, %v2757
        %v2998 = vpack.c.b16 %v2766, %v2762
        %v2999 = vpack.c.b16 %v2767, %v2763
        %v3000 = vpack.c.b16 %v2768, %v2764
        %v3001 = vpack.c.b16 %v2769, %v2765
        %v3002 = vpack.c.b16 %v2774, %v2770
        %v3003 = vpack.c.b16 %v2775, %v2771
        %v3004 = vpack.c.b16 %v2776, %v2772
        %v3005 = vpack.c.b16 %v2777, %v2773
        %v3006 = vpack.c.b16 %v2782, %v2778
        %v3007 = vpack.c.b16 %v2783, %v2779
        %v3008 = vpack.c.b16 %v2784, %v2780
        %v3009 = vpack.c.b16 %v2785, %v2781
        %v3010 = vpack.c.b16 %v2790, %v2786
        %v3011 = vpack.c.b16 %v2791, %v2787
        %v3012 = vpack.c.b16 %v2792, %v2788
        %v3013 = vpack.c.b16 %v2793, %v2789
        %v3014 = vpack.c.b16 %v2798, %v2794
        %v3015 = vpack.c.b16 %v2799, %v2795
        %v3016 = vpack.c.b16 %v2800, %v2796
        %v3017 = vpack.c.b16 %v2801, %v2797
        %v3018 = vpack.c.b16 %v2806, %v2802
        %v3019 = vpack.c.b16 %v2807, %v2803
        %v3020 = vpack.c.b16 %v2808, %v2804
        %v3021 = vpack.c.b16 %v2809, %v2805
        %v3022 = vpack.c.b16 %v2814, %v2810
        %v3023 = vpack.c.b16 %v2815, %v2811
        %v3024 = vpack.c.b16 %v2816, %v2812
        %v3025 = vpack.c.b16 %v2817, %v2813
        %v3026 = vpack.c.b16 %v2822, %v2818
        %v3027 = vpack.c.b16 %v2823, %v2819
        %v3028 = vpack.c.b16 %v2824, %v2820
        %v3029 = vpack.c.b16 %v2825, %v2821
        %v3030 = vpack.c.b16 %v2830, %v2826
        %v3031 = vpack.c.b16 %v2831, %v2827
        %v3032 = vpack.c.b16 %v2832, %v2828
        %v3033 = vpack.c.b16 %v2833, %v2829
        %v3034 = vpack.c.b16 %v2838, %v2834
        %v3035 = vpack.c.b16 %v2839, %v2835
        %v3036 = vpack.c.b16 %v2840, %v2836
        %v3037 = vpack.c.b16 %v2841, %v2837
        %v3038 = vpack.c.b16 %v2846, %v2842
        %v3039 = vpack.c.b16 %v2847, %v2843
        %v3040 = vpack.c.b16 %v2848, %v2844
        %v3041 = vpack.c.b16 %v2849, %v2845
        %v3042 = vpack.c.b16 %v2854, %v2850
        %v3043 = vpack.c.b16 %v2855, %v2851
        %v3044 = vpack.c.b16 %v2856, %v2852
        %v3045 = vpack.c.b16 %v2857, %v2853
        %v3046 = vpack.c.b16 %v2862, %v2858
        %v3047 = vpack.c.b16 %v2863, %v2859
        %v3048 = vpack.c.b16 %v2864, %v2860
        %v3049 = vpack.c.b16 %v2865, %v2861
        %v3050 = vpack.c.b16 %v2870, %v2866
        %v3051 = vpack.c.b16 %v2871, %v2867
        %v3052 = vpack.c.b16 %v2872, %v2868
        %v3053 = vpack.c.b16 %v2873, %v2869
        %v3054 = vpack.c.b16 %v2878, %v2874
        %v3055 = vpack.c.b16 %v2879, %v2875
        %v3056 = vpack.c.b16 %v2880, %v2876
        %v3057 = vpack.c.b16 %v2881, %v2877
        %v3058 = vpack.c.b16 %v2886, %v2882
        %v3059 = vpack.c.b16 %v2887, %v2883
        %v3060 = vpack.c.b16 %v2888, %v2884
        %v3061 = vpack.c.b16 %v2889, %v2885
        %v3062 = vpack.c.b16 %v2894, %v2890
        %v3063 = vpack.c.b16 %v2895, %v2891
        %v3064 = vpack.c.b16 %v2896, %v2892
        %v3065 = vpack.c.b16 %v2897, %v2893
        %v3066 = vpack.c.b16 %v2902, %v2898
        %v3067 = vpack.c.b16 %v2903, %v2899
        %v3068 = vpack.c.b16 %v2904, %v2900
        %v3069 = vpack.c.b16 %v2905, %v2901
        %v3070 = vpack.c.b16 %v2910, %v2906
        %v3071 = vpack.c.b16 %v2911, %v2907
        %v3072 = vpack.c.b16 %v2912, %v2908
        %v3073 = vpack.c.b16 %v2913, %v2909
        %v3074 = vpack.c.b16 %v2918, %v2914
        %v3075 = vpack.c.b16 %v2919, %v2915
        %v3076 = vpack.c.b16 %v2920, %v2916
        %v3077 = vpack.c.b16 %v2921, %v2917
        %v3078 = vpack.c.b16 %v2926, %v2922
        %v3079 = vpack.c.b16 %v2927, %v2923
        %v3080 = vpack.c.b16 %v2928, %v2924
        %v3081 = vpack.c.b16 %v2929, %v2925
        %v3082 = vpack.c.b16 %v2934, %v2930
        %v3083 = vpack.c.b16 %v2935, %v2931
        %v3084 = vpack.c.b16 %v2936, %v2932
        %v3085 = vpack.c.b16 %v2937, %v2933
        %v3086 = vpack.c.b16 %v2942, %v2938
        %v3087 = vpack.c.b16 %v2943, %v2939
        %v3088 = vpack.c.b16 %v2944, %v2940
        %v3089 = vpack.c.b16 %v2945, %v2941
        %v3090 = vpack.c.b16 %v2950, %v2946
        %v3091 = vpack.c.b16 %v2951, %v2947
        %v3092 = vpack.c.b16 %v2952, %v2948
        %v3093 = vpack.c.b16 %v2953, %v2949
        %v3094 = vpack.c.b16 %v2958, %v2954
        %v3095 = vpack.c.b16 %v2959, %v2955
        %v3096 = vpack.c.b16 %v2960, %v2956
        %v3097 = vpack.c.b16 %v2961, %v2957
        %v3098 = vpack.c.b16 %v2966, %v2962
        %v3099 = vpack.c.b16 %v2967, %v2963
        %v3100 = vpack.c.b16 %v2968, %v2964
        %v3101 = vpack.c.b16 %v2969, %v2965
        %v3102 = vpack.c.b16 %v2974, %v2970
        %v3103 = vpack.c.b16 %v2975, %v2971
        %v3104 = vpack.c.b16 %v2976, %v2972
        %v3105 = vpack.c.b16 %v2977, %v2973
        %3234 = vmatprep.subr.bf16.mxu0 %v2979
        %3235 = vmatpush1.bf16.msra.mxu0 %v2978
        %3236 = vmatprep.subr.bf16.mxu0 %v2983
        %3237 = vmatpush1.bf16.msra.mxu0 %v2982
        %3238 = vmatprep.subr.bf16.mxu0 %v2987
        %3239 = vmatpush1.bf16.msra.mxu0 %v2986
        %3240 = vmatprep.subr.bf16.mxu0 %v2991
        %3241 = vmatpush1.bf16.msra.mxu0 %v2990
        %3242 = vmatprep.subr.bf16.mxu0 %v2995
        %3243 = vmatpush1.bf16.msra.mxu0 %v2994
        %3244 = vmatprep.subr.bf16.mxu0 %v2999
        %3245 = vmatpush1.bf16.msra.mxu0 %v2998
        %3246 = vmatprep.subr.bf16.mxu0 %v3003
        %3247 = vmatpush1.bf16.msra.mxu0 %v3002
        %3248 = vmatprep.subr.bf16.mxu0 %v3007
        %3249 = vmatpush1.bf16.msra.mxu0 %v3006
        %3250 = vmatprep.subr.bf16.mxu0 %v3011
        %3251 = vmatpush1.bf16.msra.mxu0 %v3010
        %3252 = vmatprep.subr.bf16.mxu0 %v3015
        %3253 = vmatpush1.bf16.msra.mxu0 %v3014
        %3254 = vmatprep.subr.bf16.mxu0 %v3019
        %3255 = vmatpush1.bf16.msra.mxu0 %v3018
        %3256 = vmatprep.subr.bf16.mxu0 %v3023
        %3257 = vmatpush1.bf16.msra.mxu0 %v3022
        %3258 = vmatprep.subr.bf16.mxu0 %v3027
        %3259 = vmatpush1.bf16.msra.mxu0 %v3026
        %3260 = vmatprep.subr.bf16.mxu0 %v3031
        %3261 = vmatpush1.bf16.msra.mxu0 %v3030
        %3262 = vmatprep.subr.bf16.mxu0 %v3035
        %3263 = vmatpush1.bf16.msra.mxu0 %v3034
        %3264 = vmatprep.subr.bf16.mxu0 %v3039
        %3265 = vmatpush1.bf16.msra.mxu0 %v3038
        %3266 = vmatprep.mubr.bf16.mxu0 %v2437
        %3267 = vmatmul.mubr.bf16.gmra.mrb[0].mxu0 %v2436
        %v3268 = vpop.f32.mrb[0].mxu0
        %v3269 = vadd.f32 %v2577, %v3268
        %v3270 = vpop.f32.mrb[0].mxu0
        %v3271 = vadd.f32 %v2581, %v3270
        %v3272 = vpop.f32.mrb[0].mxu0
        %v3273 = vadd.f32 %v2577, %v3272
        %v3274 = vpop.f32.mrb[0].mxu0
        %v3275 = vadd.f32 %v2581, %v3274
        %3276 = vdwg.mxu0
        %3277 = vmatprep.subr.bf16.mxu0 %v3043
        %3278 = vmatpush1.bf16.msra.mxu0 %v3042
        %3279 = vmatprep.subr.bf16.mxu0 %v3047
        %3280 = vmatpush1.bf16.msra.mxu0 %v3046
        %3281 = vmatprep.subr.bf16.mxu0 %v3051
        %3282 = vmatpush1.bf16.msra.mxu0 %v3050
        %3283 = vmatprep.subr.bf16.mxu0 %v3055
        %3284 = vmatpush1.bf16.msra.mxu0 %v3054
        %3285 = vmatprep.subr.bf16.mxu0 %v3059
        %3286 = vmatpush1.bf16.msra.mxu0 %v3058
        %3287 = vmatprep.subr.bf16.mxu0 %v3063
        %3288 = vmatpush1.bf16.msra.mxu0 %v3062
        %3289 = vmatprep.subr.bf16.mxu0 %v3067
        %3290 = vmatpush1.bf16.msra.mxu0 %v3066
        %3291 = vmatprep.subr.bf16.mxu0 %v3071
        %3292 = vmatpush1.bf16.msra.mxu0 %v3070
        %3293 = vmatprep.subr.bf16.mxu0 %v3075
        %3294 = vmatpush1.bf16.msra.mxu0 %v3074
        %3295 = vmatprep.subr.bf16.mxu0 %v3079
        %3296 = vmatpush1.bf16.msra.mxu0 %v3078
        %3297 = vmatprep.subr.bf16.mxu0 %v3083
        %3298 = vmatpush1.bf16.msra.mxu0 %v3082
        %3299 = vmatprep.subr.bf16.mxu0 %v3087
        %3300 = vmatpush1.bf16.msra.mxu0 %v3086
        %3301 = vmatprep.subr.bf16.mxu0 %v3091
        %3302 = vmatpush1.bf16.msra.mxu0 %v3090
        %3303 = vmatprep.subr.bf16.mxu0 %v3095
        %3304 = vmatpush1.bf16.msra.mxu0 %v3094
        %3305 = vmatprep.subr.bf16.mxu0 %v3099
        %3306 = vmatpush1.bf16.msra.mxu0 %v3098
        %3307 = vmatprep.subr.bf16.mxu0 %v3103
        %3308 = vmatpush1.bf16.msra.mxu0 %v3102
        %3309 = vmatprep.mubr.bf16.mxu0 %v2439
        %3310 = vmatmul.mubr.bf16.gmra.mrb[0].mxu0 %v2438
        %v3311 = vpop.f32.mrb[0].mxu0
        %v3312 = vadd.f32 %v3269, %v3311
        %v3313 = vpop.f32.mrb[0].mxu0
        %v3314 = vadd.f32 %v3271, %v3313
        %v3315 = vpop.f32.mrb[0].mxu0
        %v3316 = vadd.f32 %v3273, %v3315
        %v3317 = vpop.f32.mrb[0].mxu0
        %v3318 = vadd.f32 %v3275, %v3317
        %3319 = vdwg.mxu0
        %3320 = vmatprep.subr.bf16.mxu0 %v2981
        %3321 = vmatpush1.bf16.msra.mxu0 %v2980
        %3322 = vmatprep.subr.bf16.mxu0 %v2985
        %3323 = vmatpush1.bf16.msra.mxu0 %v2984
        %3324 = vmatprep.subr.bf16.mxu0 %v2989
        %3325 = vmatpush1.bf16.msra.mxu0 %v2988
        %3326 = vmatprep.subr.bf16.mxu0 %v2993
        %3327 = vmatpush1.bf16.msra.mxu0 %v2992
        %3328 = vmatprep.subr.bf16.mxu0 %v2997
        %3329 = vmatpush1.bf16.msra.mxu0 %v2996
        %3330 = vmatprep.subr.bf16.mxu0 %v3001
        %3331 = vmatpush1.bf16.msra.mxu0 %v3000
        %3332 = vmatprep.subr.bf16.mxu0 %v3005
        %3333 = vmatpush1.bf16.msra.mxu0 %v3004
        %3334 = vmatprep.subr.bf16.mxu0 %v3009
        %3335 = vmatpush1.bf16.msra.mxu0 %v3008
        %3336 = vmatprep.subr.bf16.mxu0 %v3013
        %3337 = vmatpush1.bf16.msra.mxu0 %v3012
        %3338 = vmatprep.subr.bf16.mxu0 %v3017
        %3339 = vmatpush1.bf16.msra.mxu0 %v3016
        %3340 = vmatprep.subr.bf16.mxu0 %v3021
        %3341 = vmatpush1.bf16.msra.mxu0 %v3020
        %3342 = vmatprep.subr.bf16.mxu0 %v3025
        %3343 = vmatpush1.bf16.msra.mxu0 %v3024
        %3344 = vmatprep.subr.bf16.mxu0 %v3029
        %3345 = vmatpush1.bf16.msra.mxu0 %v3028
        %3346 = vmatprep.subr.bf16.mxu0 %v3033
        %3347 = vmatpush1.bf16.msra.mxu0 %v3032
        %3348 = vmatprep.subr.bf16.mxu0 %v3037
        %3349 = vmatpush1.bf16.msra.mxu0 %v3036
        %3350 = vmatprep.subr.bf16.mxu0 %v3041
        %3351 = vmatpush1.bf16.msra.mxu0 %v3040
        %3352 = vmatprep.mubr.bf16.mxu0 %v2437
        %3353 = vmatmul.mubr.bf16.gmra.mrb[0].mxu0 %v2436
        %v3354 = vpop.f32.mrb[0].mxu0
        %v3355 = vadd.f32 %v2585, %v3354
        %v3356 = vpop.f32.mrb[0].mxu0
        %v3357 = vadd.f32 %v2589, %v3356
        %v3358 = vpop.f32.mrb[0].mxu0
        %v3359 = vadd.f32 %v2585, %v3358
        %v3360 = vpop.f32.mrb[0].mxu0
        %v3361 = vadd.f32 %v2589, %v3360
        %3362 = vdwg.mxu0
        %3363 = vmatprep.subr.bf16.mxu0 %v3045
        %3364 = vmatpush1.bf16.msra.mxu0 %v3044
        %3365 = vmatprep.subr.bf16.mxu0 %v3049
        %3366 = vmatpush1.bf16.msra.mxu0 %v3048
        %3367 = vmatprep.subr.bf16.mxu0 %v3053
        %3368 = vmatpush1.bf16.msra.mxu0 %v3052
        %3369 = vmatprep.subr.bf16.mxu0 %v3057
        %3370 = vmatpush1.bf16.msra.mxu0 %v3056
        %3371 = vmatprep.subr.bf16.mxu0 %v3061
        %3372 = vmatpush1.bf16.msra.mxu0 %v3060
        %3373 = vmatprep.subr.bf16.mxu0 %v3065
        %3374 = vmatpush1.bf16.msra.mxu0 %v3064
        %3375 = vmatprep.subr.bf16.mxu0 %v3069
        %3376 = vmatpush1.bf16.msra.mxu0 %v3068
        %3377 = vmatprep.subr.bf16.mxu0 %v3073
        %3378 = vmatpush1.bf16.msra.mxu0 %v3072
        %3379 = vmatprep.subr.bf16.mxu0 %v3077
        %3380 = vmatpush1.bf16.msra.mxu0 %v3076
        %3381 = vmatprep.subr.bf16.mxu0 %v3081
        %3382 = vmatpush1.bf16.msra.mxu0 %v3080
        %3383 = vmatprep.subr.bf16.mxu0 %v3085
        %3384 = vmatpush1.bf16.msra.mxu0 %v3084
        %3385 = vmatprep.subr.bf16.mxu0 %v3089
        %3386 = vmatpush1.bf16.msra.mxu0 %v3088
        %3387 = vmatprep.subr.bf16.mxu0 %v3093
        %3388 = vmatpush1.bf16.msra.mxu0 %v3092
        %3389 = vmatprep.subr.bf16.mxu0 %v3097
        %3390 = vmatpush1.bf16.msra.mxu0 %v3096
        %3391 = vmatprep.subr.bf16.mxu0 %v3101
        %3392 = vmatpush1.bf16.msra.mxu0 %v3100
        %3393 = vmatprep.subr.bf16.mxu0 %v3105
        %3394 = vmatpush1.bf16.msra.mxu0 %v3104
        %3395 = vmatprep.mubr.bf16.mxu0 %v2439
        %3396 = vmatmul.mubr.bf16.gmra.mrb[0].mxu0 %v2438
        %v3397 = vpop.f32.mrb[0].mxu0
        %v3398 = vadd.f32 %v3355, %v3397
        %v3399 = vpop.f32.mrb[0].mxu0
        %v3400 = vadd.f32 %v3357, %v3399
        %v3401 = vpop.f32.mrb[0].mxu0
        %v3402 = vadd.f32 %v3359, %v3401
        %v3403 = vpop.f32.mrb[0].mxu0
        %v3404 = vadd.f32 %v3361, %v3403
        %3405 = vdwg.mxu0
        %v3406 = vld [vmem:[%s13] sm:$0xff]
        %v3407 = vld [vmem:[%s13 + $0x8] sm:$0xff]
        %v3408 = vld [vmem:[%s13 + $0x10] sm:$0xff]
        %v3409 = vld [vmem:[%s13 + $0x18] sm:$0xff]
        %v3410 = vld [vmem:[%s13 + $0x20] sm:$0xff]
        %v3411 = vld [vmem:[%s13 + $0x28] sm:$0xff]
        %v3412 = vld [vmem:[%s13 + $0x30] sm:$0xff]
        %v3413 = vld [vmem:[%s13 + $0x38] sm:$0xff]
        %v3414 = vld [vmem:[%s13 + $0x40] sm:$0xff]
        %v3415 = vld [vmem:[%s13 + $0x48] sm:$0xff]
        %v3416 = vld [vmem:[%s13 + $0x50] sm:$0xff]
        %v3417 = vld [vmem:[%s13 + $0x58] sm:$0xff]
        %v3418 = vld [vmem:[%s13 + $0x60] sm:$0xff]
        %v3419 = vld [vmem:[%s13 + $0x68] sm:$0xff]
        %v3420 = vld [vmem:[%s13 + $0x70] sm:$0xff]
        %v3421 = vld [vmem:[%s13 + $0x78] sm:$0xff]
        %v3422 = vld [vmem:[%s13 + $0x80] sm:$0xff]
        %v3423 = vld [vmem:[%s13 + $0x88] sm:$0xff]
        %v3424 = vld [vmem:[%s13 + $0x90] sm:$0xff]
        %v3425 = vld [vmem:[%s13 + $0x98] sm:$0xff]
        %v3426 = vld [vmem:[%s13 + $0xa0] sm:$0xff]
        %v3427 = vld [vmem:[%s13 + $0xa8] sm:$0xff]
        %v3428 = vld [vmem:[%s13 + $0xb0] sm:$0xff]
        %v3429 = vld [vmem:[%s13 + $0xb8] sm:$0xff]
        %v3430 = vld [vmem:[%s13 + $0xc0] sm:$0xff]
        %v3431 = vld [vmem:[%s13 + $0xc8] sm:$0xff]
        %v3432 = vld [vmem:[%s13 + $0xd0] sm:$0xff]
        %v3433 = vld [vmem:[%s13 + $0xd8] sm:$0xff]
        %v3434 = vld [vmem:[%s13 + $0xe0] sm:$0xff]
        %v3435 = vld [vmem:[%s13 + $0xe8] sm:$0xff]
        %v3436 = vld [vmem:[%s13 + $0xf0] sm:$0xff]
        %v3437 = vld [vmem:[%s13 + $0xf8] sm:$0xff]
        %v3438 = vld [vmem:[%s13 + $0x100] sm:$0xff]
        %v3439 = vld [vmem:[%s13 + $0x108] sm:$0xff]
        %v3440 = vld [vmem:[%s13 + $0x110] sm:$0xff]
        %v3441 = vld [vmem:[%s13 + $0x118] sm:$0xff]
        %v3442 = vld [vmem:[%s13 + $0x120] sm:$0xff]
        %v3443 = vld [vmem:[%s13 + $0x128] sm:$0xff]
        %v3444 = vld [vmem:[%s13 + $0x130] sm:$0xff]
        %v3445 = vld [vmem:[%s13 + $0x138] sm:$0xff]
        %v3446 = vld [vmem:[%s13 + $0x140] sm:$0xff]
        %v3447 = vld [vmem:[%s13 + $0x148] sm:$0xff]
        %v3448 = vld [vmem:[%s13 + $0x150] sm:$0xff]
        %v3449 = vld [vmem:[%s13 + $0x158] sm:$0xff]
        %v3450 = vld [vmem:[%s13 + $0x160] sm:$0xff]
        %v3451 = vld [vmem:[%s13 + $0x168] sm:$0xff]
        %v3452 = vld [vmem:[%s13 + $0x170] sm:$0xff]
        %v3453 = vld [vmem:[%s13 + $0x178] sm:$0xff]
        %v3454 = vld [vmem:[%s13 + $0x180] sm:$0xff]
        %v3455 = vld [vmem:[%s13 + $0x188] sm:$0xff]
        %v3456 = vld [vmem:[%s13 + $0x190] sm:$0xff]
        %v3457 = vld [vmem:[%s13 + $0x198] sm:$0xff]
        %v3458 = vld [vmem:[%s13 + $0x1a0] sm:$0xff]
        %v3459 = vld [vmem:[%s13 + $0x1a8] sm:$0xff]
        %v3460 = vld [vmem:[%s13 + $0x1b0] sm:$0xff]
        %v3461 = vld [vmem:[%s13 + $0x1b8] sm:$0xff]
        %v3462 = vld [vmem:[%s13 + $0x1c0] sm:$0xff]
        %v3463 = vld [vmem:[%s13 + $0x1c8] sm:$0xff]
        %v3464 = vld [vmem:[%s13 + $0x1d0] sm:$0xff]
        %v3465 = vld [vmem:[%s13 + $0x1d8] sm:$0xff]
        %v3466 = vld [vmem:[%s13 + $0x1e0] sm:$0xff]
        %v3467 = vld [vmem:[%s13 + $0x1e8] sm:$0xff]
        %v3468 = vld [vmem:[%s13 + $0x1f0] sm:$0xff]
        %v3469 = vld [vmem:[%s13 + $0x1f8] sm:$0xff]
        %v3470 = vld [vmem:[%s13 + $0x200] sm:$0xff]
        %v3471 = vld [vmem:[%s13 + $0x208] sm:$0xff]
        %v3472 = vld [vmem:[%s13 + $0x210] sm:$0xff]
        %v3473 = vld [vmem:[%s13 + $0x218] sm:$0xff]
        %v3474 = vld [vmem:[%s13 + $0x220] sm:$0xff]
        %v3475 = vld [vmem:[%s13 + $0x228] sm:$0xff]
        %v3476 = vld [vmem:[%s13 + $0x230] sm:$0xff]
        %v3477 = vld [vmem:[%s13 + $0x238] sm:$0xff]
        %v3478 = vld [vmem:[%s13 + $0x240] sm:$0xff]
        %v3479 = vld [vmem:[%s13 + $0x248] sm:$0xff]
        %v3480 = vld [vmem:[%s13 + $0x250] sm:$0xff]
        %v3481 = vld [vmem:[%s13 + $0x258] sm:$0xff]
        %v3482 = vld [vmem:[%s13 + $0x260] sm:$0xff]
        %v3483 = vld [vmem:[%s13 + $0x268] sm:$0xff]
        %v3484 = vld [vmem:[%s13 + $0x270] sm:$0xff]
        %v3485 = vld [vmem:[%s13 + $0x278] sm:$0xff]
        %v3486 = vld [vmem:[%s13 + $0x280] sm:$0xff]
        %v3487 = vld [vmem:[%s13 + $0x288] sm:$0xff]
        %v3488 = vld [vmem:[%s13 + $0x290] sm:$0xff]
        %v3489 = vld [vmem:[%s13 + $0x298] sm:$0xff]
        %v3490 = vld [vmem:[%s13 + $0x2a0] sm:$0xff]
        %v3491 = vld [vmem:[%s13 + $0x2a8] sm:$0xff]
        %v3492 = vld [vmem:[%s13 + $0x2b0] sm:$0xff]
        %v3493 = vld [vmem:[%s13 + $0x2b8] sm:$0xff]
        %v3494 = vld [vmem:[%s13 + $0x2c0] sm:$0xff]
        %v3495 = vld [vmem:[%s13 + $0x2c8] sm:$0xff]
        %v3496 = vld [vmem:[%s13 + $0x2d0] sm:$0xff]
        %v3497 = vld [vmem:[%s13 + $0x2d8] sm:$0xff]
        %v3498 = vld [vmem:[%s13 + $0x2e0] sm:$0xff]
        %v3499 = vld [vmem:[%s13 + $0x2e8] sm:$0xff]
        %v3500 = vld [vmem:[%s13 + $0x2f0] sm:$0xff]
        %v3501 = vld [vmem:[%s13 + $0x2f8] sm:$0xff]
        %v3502 = vld [vmem:[%s13 + $0x300] sm:$0xff]
        %v3503 = vld [vmem:[%s13 + $0x308] sm:$0xff]
        %v3504 = vld [vmem:[%s13 + $0x310] sm:$0xff]
        %v3505 = vld [vmem:[%s13 + $0x318] sm:$0xff]
        %v3506 = vld [vmem:[%s13 + $0x320] sm:$0xff]
        %v3507 = vld [vmem:[%s13 + $0x328] sm:$0xff]
        %v3508 = vld [vmem:[%s13 + $0x330] sm:$0xff]
        %v3509 = vld [vmem:[%s13 + $0x338] sm:$0xff]
        %v3510 = vld [vmem:[%s13 + $0x340] sm:$0xff]
        %v3511 = vld [vmem:[%s13 + $0x348] sm:$0xff]
        %v3512 = vld [vmem:[%s13 + $0x350] sm:$0xff]
        %v3513 = vld [vmem:[%s13 + $0x358] sm:$0xff]
        %v3514 = vld [vmem:[%s13 + $0x360] sm:$0xff]
        %v3515 = vld [vmem:[%s13 + $0x368] sm:$0xff]
        %v3516 = vld [vmem:[%s13 + $0x370] sm:$0xff]
        %v3517 = vld [vmem:[%s13 + $0x378] sm:$0xff]
        %v3518 = vld [vmem:[%s13 + $0x380] sm:$0xff]
        %v3519 = vld [vmem:[%s13 + $0x388] sm:$0xff]
        %v3520 = vld [vmem:[%s13 + $0x390] sm:$0xff]
        %v3521 = vld [vmem:[%s13 + $0x398] sm:$0xff]
        %v3522 = vld [vmem:[%s13 + $0x3a0] sm:$0xff]
        %v3523 = vld [vmem:[%s13 + $0x3a8] sm:$0xff]
        %v3524 = vld [vmem:[%s13 + $0x3b0] sm:$0xff]
        %v3525 = vld [vmem:[%s13 + $0x3b8] sm:$0xff]
        %v3526 = vld [vmem:[%s13 + $0x3c0] sm:$0xff]
        %v3527 = vld [vmem:[%s13 + $0x3c8] sm:$0xff]
        %v3528 = vld [vmem:[%s13 + $0x3d0] sm:$0xff]
        %v3529 = vld [vmem:[%s13 + $0x3d8] sm:$0xff]
        %v3530 = vld [vmem:[%s13 + $0x3e0] sm:$0xff]
        %v3531 = vld [vmem:[%s13 + $0x3e8] sm:$0xff]
        %v3532 = vld [vmem:[%s13 + $0x3f0] sm:$0xff]
        %v3533 = vld [vmem:[%s13 + $0x3f8] sm:$0xff]
        %v3534 = vld [vmem:[%s14] sm:$0xf]
        %v3536 = vlaneseq
        %v3537 = vshrl.u32 %v3536, 7
        %v3538 = vsub.s32 0, %v3537
        %v3539 = vrot.slane %v3534, %v3538
        %v3540 = vlaneseq
        %v3541 = vshrl.u32 %v3540, 7
        %v3542 = vsub.s32 1, %v3541
        %v3543 = vrot.slane %v3534, %v3542
        %v3544 = vlaneseq
        %v3545 = vshrl.u32 %v3544, 7
        %v3546 = vsub.s32 2, %v3545
        %v3547 = vrot.slane %v3534, %v3546
        %v3548 = vlaneseq
        %v3549 = vshrl.u32 %v3548, 7
        %v3550 = vsub.s32 3, %v3549
        %v3551 = vrot.slane %v3534, %v3550
        %v3684 = vunpack.c.l.b16 %v3406
        %v3685 = vunpack.c.h.b16 %v3406
        %v3686 = vunpack.c.l.b16 %v3407
        %v3687 = vunpack.c.h.b16 %v3407
        %v3688 = vunpack.c.l.b16 %v3408
        %v3689 = vunpack.c.h.b16 %v3408
        %v3690 = vunpack.c.l.b16 %v3409
        %v3691 = vunpack.c.h.b16 %v3409
        %v3692 = vunpack.c.l.b16 %v3410
        %v3693 = vunpack.c.h.b16 %v3410
        %v3694 = vunpack.c.l.b16 %v3411
        %v3695 = vunpack.c.h.b16 %v3411
        %v3696 = vunpack.c.l.b16 %v3412
        %v3697 = vunpack.c.h.b16 %v3412
        %v3698 = vunpack.c.l.b16 %v3413
        %v3699 = vunpack.c.h.b16 %v3413
        %v3700 = vunpack.c.l.b16 %v3414
        %v3701 = vunpack.c.h.b16 %v3414
        %v3702 = vunpack.c.l.b16 %v3415
        %v3703 = vunpack.c.h.b16 %v3415
        %v3704 = vunpack.c.l.b16 %v3416
        %v3705 = vunpack.c.h.b16 %v3416
        %v3706 = vunpack.c.l.b16 %v3417
        %v3707 = vunpack.c.h.b16 %v3417
        %v3708 = vunpack.c.l.b16 %v3418
        %v3709 = vunpack.c.h.b16 %v3418
        %v3710 = vunpack.c.l.b16 %v3419
        %v3711 = vunpack.c.h.b16 %v3419
        %v3712 = vunpack.c.l.b16 %v3420
        %v3713 = vunpack.c.h.b16 %v3420
        %v3714 = vunpack.c.l.b16 %v3421
        %v3715 = vunpack.c.h.b16 %v3421
        %v3716 = vunpack.c.l.b16 %v3422
        %v3717 = vunpack.c.h.b16 %v3422
        %v3718 = vunpack.c.l.b16 %v3423
        %v3719 = vunpack.c.h.b16 %v3423
        %v3720 = vunpack.c.l.b16 %v3424
        %v3721 = vunpack.c.h.b16 %v3424
        %v3722 = vunpack.c.l.b16 %v3425
        %v3723 = vunpack.c.h.b16 %v3425
        %v3724 = vunpack.c.l.b16 %v3426
        %v3725 = vunpack.c.h.b16 %v3426
        %v3726 = vunpack.c.l.b16 %v3427
        %v3727 = vunpack.c.h.b16 %v3427
        %v3728 = vunpack.c.l.b16 %v3428
        %v3729 = vunpack.c.h.b16 %v3428
        %v3730 = vunpack.c.l.b16 %v3429
        %v3731 = vunpack.c.h.b16 %v3429
        %v3732 = vunpack.c.l.b16 %v3430
        %v3733 = vunpack.c.h.b16 %v3430
        %v3734 = vunpack.c.l.b16 %v3431
        %v3735 = vunpack.c.h.b16 %v3431
        %v3736 = vunpack.c.l.b16 %v3432
        %v3737 = vunpack.c.h.b16 %v3432
        %v3738 = vunpack.c.l.b16 %v3433
        %v3739 = vunpack.c.h.b16 %v3433
        %v3740 = vunpack.c.l.b16 %v3434
        %v3741 = vunpack.c.h.b16 %v3434
        %v3742 = vunpack.c.l.b16 %v3435
        %v3743 = vunpack.c.h.b16 %v3435
        %v3744 = vunpack.c.l.b16 %v3436
        %v3745 = vunpack.c.h.b16 %v3436
        %v3746 = vunpack.c.l.b16 %v3437
        %v3747 = vunpack.c.h.b16 %v3437
        %v3748 = vunpack.c.l.b16 %v3438
        %v3749 = vunpack.c.h.b16 %v3438
        %v3750 = vunpack.c.l.b16 %v3439
        %v3751 = vunpack.c.h.b16 %v3439
        %v3752 = vunpack.c.l.b16 %v3440
        %v3753 = vunpack.c.h.b16 %v3440
        %v3754 = vunpack.c.l.b16 %v3441
        %v3755 = vunpack.c.h.b16 %v3441
        %v3756 = vunpack.c.l.b16 %v3442
        %v3757 = vunpack.c.h.b16 %v3442
        %v3758 = vunpack.c.l.b16 %v3443
        %v3759 = vunpack.c.h.b16 %v3443
        %v3760 = vunpack.c.l.b16 %v3444
        %v3761 = vunpack.c.h.b16 %v3444
        %v3762 = vunpack.c.l.b16 %v3445
        %v3763 = vunpack.c.h.b16 %v3445
        %v3764 = vunpack.c.l.b16 %v3446
        %v3765 = vunpack.c.h.b16 %v3446
        %v3766 = vunpack.c.l.b16 %v3447
        %v3767 = vunpack.c.h.b16 %v3447
        %v3768 = vunpack.c.l.b16 %v3448
        %v3769 = vunpack.c.h.b16 %v3448
        %v3770 = vunpack.c.l.b16 %v3449
        %v3771 = vunpack.c.h.b16 %v3449
        %v3772 = vunpack.c.l.b16 %v3450
        %v3773 = vunpack.c.h.b16 %v3450
        %v3774 = vunpack.c.l.b16 %v3451
        %v3775 = vunpack.c.h.b16 %v3451
        %v3776 = vunpack.c.l.b16 %v3452
        %v3777 = vunpack.c.h.b16 %v3452
        %v3778 = vunpack.c.l.b16 %v3453
        %v3779 = vunpack.c.h.b16 %v3453
        %v3780 = vunpack.c.l.b16 %v3454
        %v3781 = vunpack.c.h.b16 %v3454
        %v3782 = vunpack.c.l.b16 %v3455
        %v3783 = vunpack.c.h.b16 %v3455
        %v3784 = vunpack.c.l.b16 %v3456
        %v3785 = vunpack.c.h.b16 %v3456
        %v3786 = vunpack.c.l.b16 %v3457
        %v3787 = vunpack.c.h.b16 %v3457
        %v3788 = vunpack.c.l.b16 %v3458
        %v3789 = vunpack.c.h.b16 %v3458
        %v3790 = vunpack.c.l.b16 %v3459
        %v3791 = vunpack.c.h.b16 %v3459
        %v3792 = vunpack.c.l.b16 %v3460
        %v3793 = vunpack.c.h.b16 %v3460
        %v3794 = vunpack.c.l.b16 %v3461
        %v3795 = vunpack.c.h.b16 %v3461
        %v3796 = vunpack.c.l.b16 %v3462
        %v3797 = vunpack.c.h.b16 %v3462
        %v3798 = vunpack.c.l.b16 %v3463
        %v3799 = vunpack.c.h.b16 %v3463
        %v3800 = vunpack.c.l.b16 %v3464
        %v3801 = vunpack.c.h.b16 %v3464
        %v3802 = vunpack.c.l.b16 %v3465
        %v3803 = vunpack.c.h.b16 %v3465
        %v3804 = vunpack.c.l.b16 %v3466
        %v3805 = vunpack.c.h.b16 %v3466
        %v3806 = vunpack.c.l.b16 %v3467
        %v3807 = vunpack.c.h.b16 %v3467
        %v3808 = vunpack.c.l.b16 %v3468
        %v3809 = vunpack.c.h.b16 %v3468
        %v3810 = vunpack.c.l.b16 %v3469
        %v3811 = vunpack.c.h.b16 %v3469
        %v3812 = vunpack.c.l.b16 %v3470
        %v3813 = vunpack.c.h.b16 %v3470
        %v3814 = vunpack.c.l.b16 %v3471
        %v3815 = vunpack.c.h.b16 %v3471
        %v3816 = vunpack.c.l.b16 %v3472
        %v3817 = vunpack.c.h.b16 %v3472
        %v3818 = vunpack.c.l.b16 %v3473
        %v3819 = vunpack.c.h.b16 %v3473
        %v3820 = vunpack.c.l.b16 %v3474
        %v3821 = vunpack.c.h.b16 %v3474
        %v3822 = vunpack.c.l.b16 %v3475
        %v3823 = vunpack.c.h.b16 %v3475
        %v3824 = vunpack.c.l.b16 %v3476
        %v3825 = vunpack.c.h.b16 %v3476
        %v3826 = vunpack.c.l.b16 %v3477
        %v3827 = vunpack.c.h.b16 %v3477
        %v3828 = vunpack.c.l.b16 %v3478
        %v3829 = vunpack.c.h.b16 %v3478
        %v3830 = vunpack.c.l.b16 %v3479
        %v3831 = vunpack.c.h.b16 %v3479
        %v3832 = vunpack.c.l.b16 %v3480
        %v3833 = vunpack.c.h.b16 %v3480
        %v3834 = vunpack.c.l.b16 %v3481
        %v3835 = vunpack.c.h.b16 %v3481
        %v3836 = vunpack.c.l.b16 %v3482
        %v3837 = vunpack.c.h.b16 %v3482
        %v3838 = vunpack.c.l.b16 %v3483
        %v3839 = vunpack.c.h.b16 %v3483
        %v3840 = vunpack.c.l.b16 %v3484
        %v3841 = vunpack.c.h.b16 %v3484
        %v3842 = vunpack.c.l.b16 %v3485
        %v3843 = vunpack.c.h.b16 %v3485
        %v3844 = vunpack.c.l.b16 %v3486
        %v3845 = vunpack.c.h.b16 %v3486
        %v3846 = vunpack.c.l.b16 %v3487
        %v3847 = vunpack.c.h.b16 %v3487
        %v3848 = vunpack.c.l.b16 %v3488
        %v3849 = vunpack.c.h.b16 %v3488
        %v3850 = vunpack.c.l.b16 %v3489
        %v3851 = vunpack.c.h.b16 %v3489
        %v3852 = vunpack.c.l.b16 %v3490
        %v3853 = vunpack.c.h.b16 %v3490
        %v3854 = vunpack.c.l.b16 %v3491
        %v3855 = vunpack.c.h.b16 %v3491
        %v3856 = vunpack.c.l.b16 %v3492
        %v3857 = vunpack.c.h.b16 %v3492
        %v3858 = vunpack.c.l.b16 %v3493
        %v3859 = vunpack.c.h.b16 %v3493
        %v3860 = vunpack.c.l.b16 %v3494
        %v3861 = vunpack.c.h.b16 %v3494
        %v3862 = vunpack.c.l.b16 %v3495
        %v3863 = vunpack.c.h.b16 %v3495
        %v3864 = vunpack.c.l.b16 %v3496
        %v3865 = vunpack.c.h.b16 %v3496
        %v3866 = vunpack.c.l.b16 %v3497
        %v3867 = vunpack.c.h.b16 %v3497
        %v3868 = vunpack.c.l.b16 %v3498
        %v3869 = vunpack.c.h.b16 %v3498
        %v3870 = vunpack.c.l.b16 %v3499
        %v3871 = vunpack.c.h.b16 %v3499
        %v3872 = vunpack.c.l.b16 %v3500
        %v3873 = vunpack.c.h.b16 %v3500
        %v3874 = vunpack.c.l.b16 %v3501
        %v3875 = vunpack.c.h.b16 %v3501
        %v3876 = vunpack.c.l.b16 %v3502
        %v3877 = vunpack.c.h.b16 %v3502
        %v3878 = vunpack.c.l.b16 %v3503
        %v3879 = vunpack.c.h.b16 %v3503
        %v3880 = vunpack.c.l.b16 %v3504
        %v3881 = vunpack.c.h.b16 %v3504
        %v3882 = vunpack.c.l.b16 %v3505
        %v3883 = vunpack.c.h.b16 %v3505
        %v3884 = vunpack.c.l.b16 %v3506
        %v3885 = vunpack.c.h.b16 %v3506
        %v3886 = vunpack.c.l.b16 %v3507
        %v3887 = vunpack.c.h.b16 %v3507
        %v3888 = vunpack.c.l.b16 %v3508
        %v3889 = vunpack.c.h.b16 %v3508
        %v3890 = vunpack.c.l.b16 %v3509
        %v3891 = vunpack.c.h.b16 %v3509
        %v3892 = vunpack.c.l.b16 %v3510
        %v3893 = vunpack.c.h.b16 %v3510
        %v3894 = vunpack.c.l.b16 %v3511
        %v3895 = vunpack.c.h.b16 %v3511
        %v3896 = vunpack.c.l.b16 %v3512
        %v3897 = vunpack.c.h.b16 %v3512
        %v3898 = vunpack.c.l.b16 %v3513
        %v3899 = vunpack.c.h.b16 %v3513
        %v3900 = vunpack.c.l.b16 %v3514
        %v3901 = vunpack.c.h.b16 %v3514
        %v3902 = vunpack.c.l.b16 %v3515
        %v3903 = vunpack.c.h.b16 %v3515
        %v3904 = vunpack.c.l.b16 %v3516
        %v3905 = vunpack.c.h.b16 %v3516
        %v3906 = vunpack.c.l.b16 %v3517
        %v3907 = vunpack.c.h.b16 %v3517
        %v3908 = vunpack.c.l.b16 %v3518
        %v3909 = vunpack.c.h.b16 %v3518
        %v3910 = vunpack.c.l.b16 %v3519
        %v3911 = vunpack.c.h.b16 %v3519
        %v3912 = vunpack.c.l.b16 %v3520
        %v3913 = vunpack.c.h.b16 %v3520
        %v3914 = vunpack.c.l.b16 %v3521
        %v3915 = vunpack.c.h.b16 %v3521
        %v3916 = vunpack.c.l.b16 %v3522
        %v3917 = vunpack.c.h.b16 %v3522
        %v3918 = vunpack.c.l.b16 %v3523
        %v3919 = vunpack.c.h.b16 %v3523
        %v3920 = vunpack.c.l.b16 %v3524
        %v3921 = vunpack.c.h.b16 %v3524
        %v3922 = vunpack.c.l.b16 %v3525
        %v3923 = vunpack.c.h.b16 %v3525
        %v3924 = vunpack.c.l.b16 %v3526
        %v3925 = vunpack.c.h.b16 %v3526
        %v3926 = vunpack.c.l.b16 %v3527
        %v3927 = vunpack.c.h.b16 %v3527
        %v3928 = vunpack.c.l.b16 %v3528
        %v3929 = vunpack.c.h.b16 %v3528
        %v3930 = vunpack.c.l.b16 %v3529
        %v3931 = vunpack.c.h.b16 %v3529
        %v3932 = vunpack.c.l.b16 %v3530
        %v3933 = vunpack.c.h.b16 %v3530
        %v3934 = vunpack.c.l.b16 %v3531
        %v3935 = vunpack.c.h.b16 %v3531
        %v3936 = vunpack.c.l.b16 %v3532
        %v3937 = vunpack.c.h.b16 %v3532
        %v3938 = vunpack.c.l.b16 %v3533
        %v3939 = vunpack.c.h.b16 %v3533
        %v3940 = vpack.c.b16 %v3688, %v3684
        %v3941 = vpack.c.b16 %v3689, %v3685
        %v3942 = vpack.c.b16 %v3690, %v3686
        %v3943 = vpack.c.b16 %v3691, %v3687
        %v3944 = vpack.c.b16 %v3696, %v3692
        %v3945 = vpack.c.b16 %v3697, %v3693
        %v3946 = vpack.c.b16 %v3698, %v3694
        %v3947 = vpack.c.b16 %v3699, %v3695
        %v3948 = vpack.c.b16 %v3704, %v3700
        %v3949 = vpack.c.b16 %v3705, %v3701
        %v3950 = vpack.c.b16 %v3706, %v3702
        %v3951 = vpack.c.b16 %v3707, %v3703
        %v3952 = vpack.c.b16 %v3712, %v3708
        %v3953 = vpack.c.b16 %v3713, %v3709
        %v3954 = vpack.c.b16 %v3714, %v3710
        %v3955 = vpack.c.b16 %v3715, %v3711
        %v3956 = vpack.c.b16 %v3720, %v3716
        %v3957 = vpack.c.b16 %v3721, %v3717
        %v3958 = vpack.c.b16 %v3722, %v3718
        %v3959 = vpack.c.b16 %v3723, %v3719
        %v3960 = vpack.c.b16 %v3728, %v3724
        %v3961 = vpack.c.b16 %v3729, %v3725
        %v3962 = vpack.c.b16 %v3730, %v3726
        %v3963 = vpack.c.b16 %v3731, %v3727
        %v3964 = vpack.c.b16 %v3736, %v3732
        %v3965 = vpack.c.b16 %v3737, %v3733
        %v3966 = vpack.c.b16 %v3738, %v3734
        %v3967 = vpack.c.b16 %v3739, %v3735
        %v3968 = vpack.c.b16 %v3744, %v3740
        %v3969 = vpack.c.b16 %v3745, %v3741
        %v3970 = vpack.c.b16 %v3746, %v3742
        %v3971 = vpack.c.b16 %v3747, %v3743
        %v3972 = vpack.c.b16 %v3752, %v3748
        %v3973 = vpack.c.b16 %v3753, %v3749
        %v3974 = vpack.c.b16 %v3754, %v3750
        %v3975 = vpack.c.b16 %v3755, %v3751
        %v3976 = vpack.c.b16 %v3760, %v3756
        %v3977 = vpack.c.b16 %v3761, %v3757
        %v3978 = vpack.c.b16 %v3762, %v3758
        %v3979 = vpack.c.b16 %v3763, %v3759
        %v3980 = vpack.c.b16 %v3768, %v3764
        %v3981 = vpack.c.b16 %v3769, %v3765
        %v3982 = vpack.c.b16 %v3770, %v3766
        %v3983 = vpack.c.b16 %v3771, %v3767
        %v3984 = vpack.c.b16 %v3776, %v3772
        %v3985 = vpack.c.b16 %v3777, %v3773
        %v3986 = vpack.c.b16 %v3778, %v3774
        %v3987 = vpack.c.b16 %v3779, %v3775
        %v3988 = vpack.c.b16 %v3784, %v3780
        %v3989 = vpack.c.b16 %v3785, %v3781
        %v3990 = vpack.c.b16 %v3786, %v3782
        %v3991 = vpack.c.b16 %v3787, %v3783
        %v3992 = vpack.c.b16 %v3792, %v3788
        %v3993 = vpack.c.b16 %v3793, %v3789
        %v3994 = vpack.c.b16 %v3794, %v3790
        %v3995 = vpack.c.b16 %v3795, %v3791
        %v3996 = vpack.c.b16 %v3800, %v3796
        %v3997 = vpack.c.b16 %v3801, %v3797
        %v3998 = vpack.c.b16 %v3802, %v3798
        %v3999 = vpack.c.b16 %v3803, %v3799
        %v4000 = vpack.c.b16 %v3808, %v3804
        %v4001 = vpack.c.b16 %v3809, %v3805
        %v4002 = vpack.c.b16 %v3810, %v3806
        %v4003 = vpack.c.b16 %v3811, %v3807
        %v4004 = vpack.c.b16 %v3816, %v3812
        %v4005 = vpack.c.b16 %v3817, %v3813
        %v4006 = vpack.c.b16 %v3818, %v3814
        %v4007 = vpack.c.b16 %v3819, %v3815
        %v4008 = vpack.c.b16 %v3824, %v3820
        %v4009 = vpack.c.b16 %v3825, %v3821
        %v4010 = vpack.c.b16 %v3826, %v3822
        %v4011 = vpack.c.b16 %v3827, %v3823
        %v4012 = vpack.c.b16 %v3832, %v3828
        %v4013 = vpack.c.b16 %v3833, %v3829
        %v4014 = vpack.c.b16 %v3834, %v3830
        %v4015 = vpack.c.b16 %v3835, %v3831
        %v4016 = vpack.c.b16 %v3840, %v3836
        %v4017 = vpack.c.b16 %v3841, %v3837
        %v4018 = vpack.c.b16 %v3842, %v3838
        %v4019 = vpack.c.b16 %v3843, %v3839
        %v4020 = vpack.c.b16 %v3848, %v3844
        %v4021 = vpack.c.b16 %v3849, %v3845
        %v4022 = vpack.c.b16 %v3850, %v3846
        %v4023 = vpack.c.b16 %v3851, %v3847
        %v4024 = vpack.c.b16 %v3856, %v3852
        %v4025 = vpack.c.b16 %v3857, %v3853
        %v4026 = vpack.c.b16 %v3858, %v3854
        %v4027 = vpack.c.b16 %v3859, %v3855
        %v4028 = vpack.c.b16 %v3864, %v3860
        %v4029 = vpack.c.b16 %v3865, %v3861
        %v4030 = vpack.c.b16 %v3866, %v3862
        %v4031 = vpack.c.b16 %v3867, %v3863
        %v4032 = vpack.c.b16 %v3872, %v3868
        %v4033 = vpack.c.b16 %v3873, %v3869
        %v4034 = vpack.c.b16 %v3874, %v3870
        %v4035 = vpack.c.b16 %v3875, %v3871
        %v4036 = vpack.c.b16 %v3880, %v3876
        %v4037 = vpack.c.b16 %v3881, %v3877
        %v4038 = vpack.c.b16 %v3882, %v3878
        %v4039 = vpack.c.b16 %v3883, %v3879
        %v4040 = vpack.c.b16 %v3888, %v3884
        %v4041 = vpack.c.b16 %v3889, %v3885
        %v4042 = vpack.c.b16 %v3890, %v3886
        %v4043 = vpack.c.b16 %v3891, %v3887
        %v4044 = vpack.c.b16 %v3896, %v3892
        %v4045 = vpack.c.b16 %v3897, %v3893
        %v4046 = vpack.c.b16 %v3898, %v3894
        %v4047 = vpack.c.b16 %v3899, %v3895
        %v4048 = vpack.c.b16 %v3904, %v3900
        %v4049 = vpack.c.b16 %v3905, %v3901
        %v4050 = vpack.c.b16 %v3906, %v3902
        %v4051 = vpack.c.b16 %v3907, %v3903
        %v4052 = vpack.c.b16 %v3912, %v3908
        %v4053 = vpack.c.b16 %v3913, %v3909
        %v4054 = vpack.c.b16 %v3914, %v3910
        %v4055 = vpack.c.b16 %v3915, %v3911
        %v4056 = vpack.c.b16 %v3920, %v3916
        %v4057 = vpack.c.b16 %v3921, %v3917
        %v4058 = vpack.c.b16 %v3922, %v3918
        %v4059 = vpack.c.b16 %v3923, %v3919
        %v4060 = vpack.c.b16 %v3928, %v3924
        %v4061 = vpack.c.b16 %v3929, %v3925
        %v4062 = vpack.c.b16 %v3930, %v3926
        %v4063 = vpack.c.b16 %v3931, %v3927
        %v4064 = vpack.c.b16 %v3936, %v3932
        %v4065 = vpack.c.b16 %v3937, %v3933
        %v4066 = vpack.c.b16 %v3938, %v3934
        %v4067 = vpack.c.b16 %v3939, %v3935
        %4196 = vmatprep.subr.bf16.mxu0 %v3941
        %4197 = vmatpush1.bf16.msra.mxu0 %v3940
        %4198 = vmatprep.subr.bf16.mxu0 %v3945
        %4199 = vmatpush1.bf16.msra.mxu0 %v3944
        %4200 = vmatprep.subr.bf16.mxu0 %v3949
        %4201 = vmatpush1.bf16.msra.mxu0 %v3948
        %4202 = vmatprep.subr.bf16.mxu0 %v3953
        %4203 = vmatpush1.bf16.msra.mxu0 %v3952
        %4204 = vmatprep.subr.bf16.mxu0 %v3957
        %4205 = vmatpush1.bf16.msra.mxu0 %v3956
        %4206 = vmatprep.subr.bf16.mxu0 %v3961
        %4207 = vmatpush1.bf16.msra.mxu0 %v3960
        %4208 = vmatprep.subr.bf16.mxu0 %v3965
        %4209 = vmatpush1.bf16.msra.mxu0 %v3964
        %4210 = vmatprep.subr.bf16.mxu0 %v3969
        %4211 = vmatpush1.bf16.msra.mxu0 %v3968
        %4212 = vmatprep.subr.bf16.mxu0 %v3973
        %4213 = vmatpush1.bf16.msra.mxu0 %v3972
        %4214 = vmatprep.subr.bf16.mxu0 %v3977
        %4215 = vmatpush1.bf16.msra.mxu0 %v3976
        %4216 = vmatprep.subr.bf16.mxu0 %v3981
        %4217 = vmatpush1.bf16.msra.mxu0 %v3980
        %4218 = vmatprep.subr.bf16.mxu0 %v3985
        %4219 = vmatpush1.bf16.msra.mxu0 %v3984
        %4220 = vmatprep.subr.bf16.mxu0 %v3989
        %4221 = vmatpush1.bf16.msra.mxu0 %v3988
        %4222 = vmatprep.subr.bf16.mxu0 %v3993
        %4223 = vmatpush1.bf16.msra.mxu0 %v3992
        %4224 = vmatprep.subr.bf16.mxu0 %v3997
        %4225 = vmatpush1.bf16.msra.mxu0 %v3996
        %4226 = vmatprep.subr.bf16.mxu0 %v4001
        %4227 = vmatpush1.bf16.msra.mxu0 %v4000
        %4228 = vmatprep.mubr.bf16.mxu0 %v2441
        %4229 = vmatmul.mubr.bf16.gmra.mrb[0].mxu0 %v2440
        %v4230 = vpop.f32.mrb[0].mxu0
        %v4231 = vadd.f32 %v3539, %v4230
        %v4232 = vpop.f32.mrb[0].mxu0
        %v4233 = vadd.f32 %v3543, %v4232
        %v4234 = vpop.f32.mrb[0].mxu0
        %v4235 = vadd.f32 %v3539, %v4234
        %v4236 = vpop.f32.mrb[0].mxu0
        %v4237 = vadd.f32 %v3543, %v4236
        %4238 = vdwg.mxu0
        %4239 = vmatprep.subr.bf16.mxu0 %v4005
        %4240 = vmatpush1.bf16.msra.mxu0 %v4004
        %4241 = vmatprep.subr.bf16.mxu0 %v4009
        %4242 = vmatpush1.bf16.msra.mxu0 %v4008
        %4243 = vmatprep.subr.bf16.mxu0 %v4013
        %4244 = vmatpush1.bf16.msra.mxu0 %v4012
        %4245 = vmatprep.subr.bf16.mxu0 %v4017
        %4246 = vmatpush1.bf16.msra.mxu0 %v4016
        %4247 = vmatprep.subr.bf16.mxu0 %v4021
        %4248 = vmatpush1.bf16.msra.mxu0 %v4020
        %4249 = vmatprep.subr.bf16.mxu0 %v4025
        %4250 = vmatpush1.bf16.msra.mxu0 %v4024
        %4251 = vmatprep.subr.bf16.mxu0 %v4029
        %4252 = vmatpush1.bf16.msra.mxu0 %v4028
        %4253 = vmatprep.subr.bf16.mxu0 %v4033
        %4254 = vmatpush1.bf16.msra.mxu0 %v4032
        %4255 = vmatprep.subr.bf16.mxu0 %v4037
        %4256 = vmatpush1.bf16.msra.mxu0 %v4036
        %4257 = vmatprep.subr.bf16.mxu0 %v4041
        %4258 = vmatpush1.bf16.msra.mxu0 %v4040
        %4259 = vmatprep.subr.bf16.mxu0 %v4045
        %4260 = vmatpush1.bf16.msra.mxu0 %v4044
        %4261 = vmatprep.subr.bf16.mxu0 %v4049
        %4262 = vmatpush1.bf16.msra.mxu0 %v4048
        %4263 = vmatprep.subr.bf16.mxu0 %v4053
        %4264 = vmatpush1.bf16.msra.mxu0 %v4052
        %4265 = vmatprep.subr.bf16.mxu0 %v4057
        %4266 = vmatpush1.bf16.msra.mxu0 %v4056
        %4267 = vmatprep.subr.bf16.mxu0 %v4061
        %4268 = vmatpush1.bf16.msra.mxu0 %v4060
        %4269 = vmatprep.subr.bf16.mxu0 %v4065
        %4270 = vmatpush1.bf16.msra.mxu0 %v4064
        %4271 = vmatprep.mubr.bf16.mxu0 %v2443
        %4272 = vmatmul.mubr.bf16.gmra.mrb[0].mxu0 %v2442
        %v4273 = vpop.f32.mrb[0].mxu0
        %v4274 = vadd.f32 %v4231, %v4273
        %v4275 = vpop.f32.mrb[0].mxu0
        %v4276 = vadd.f32 %v4233, %v4275
        %v4277 = vpop.f32.mrb[0].mxu0
        %v4278 = vadd.f32 %v4235, %v4277
        %v4279 = vpop.f32.mrb[0].mxu0
        %v4280 = vadd.f32 %v4237, %v4279
        %4281 = vdwg.mxu0
        %4282 = vmatprep.subr.bf16.mxu0 %v3943
        %4283 = vmatpush1.bf16.msra.mxu0 %v3942
        %4284 = vmatprep.subr.bf16.mxu0 %v3947
        %4285 = vmatpush1.bf16.msra.mxu0 %v3946
        %4286 = vmatprep.subr.bf16.mxu0 %v3951
        %4287 = vmatpush1.bf16.msra.mxu0 %v3950
        %4288 = vmatprep.subr.bf16.mxu0 %v3955
        %4289 = vmatpush1.bf16.msra.mxu0 %v3954
        %4290 = vmatprep.subr.bf16.mxu0 %v3959
        %4291 = vmatpush1.bf16.msra.mxu0 %v3958
        %4292 = vmatprep.subr.bf16.mxu0 %v3963
        %4293 = vmatpush1.bf16.msra.mxu0 %v3962
        %4294 = vmatprep.subr.bf16.mxu0 %v3967
        %4295 = vmatpush1.bf16.msra.mxu0 %v3966
        %4296 = vmatprep.subr.bf16.mxu0 %v3971
        %4297 = vmatpush1.bf16.msra.mxu0 %v3970
        %4298 = vmatprep.subr.bf16.mxu0 %v3975
        %4299 = vmatpush1.bf16.msra.mxu0 %v3974
        %4300 = vmatprep.subr.bf16.mxu0 %v3979
        %4301 = vmatpush1.bf16.msra.mxu0 %v3978
        %4302 = vmatprep.subr.bf16.mxu0 %v3983
        %4303 = vmatpush1.bf16.msra.mxu0 %v3982
        %4304 = vmatprep.subr.bf16.mxu0 %v3987
        %4305 = vmatpush1.bf16.msra.mxu0 %v3986
        %4306 = vmatprep.subr.bf16.mxu0 %v3991
        %4307 = vmatpush1.bf16.msra.mxu0 %v3990
        %4308 = vmatprep.subr.bf16.mxu0 %v3995
        %4309 = vmatpush1.bf16.msra.mxu0 %v3994
        %4310 = vmatprep.subr.bf16.mxu0 %v3999
        %4311 = vmatpush1.bf16.msra.mxu0 %v3998
        %4312 = vmatprep.subr.bf16.mxu0 %v4003
        %4313 = vmatpush1.bf16.msra.mxu0 %v4002
        %4314 = vmatprep.mubr.bf16.mxu0 %v2441
        %4315 = vmatmul.mubr.bf16.gmra.mrb[0].mxu0 %v2440
        %v4316 = vpop.f32.mrb[0].mxu0
        %v4317 = vadd.f32 %v3547, %v4316
        %v4318 = vpop.f32.mrb[0].mxu0
        %v4319 = vadd.f32 %v3551, %v4318
        %v4320 = vpop.f32.mrb[0].mxu0
        %v4321 = vadd.f32 %v3547, %v4320
        %v4322 = vpop.f32.mrb[0].mxu0
        %v4323 = vadd.f32 %v3551, %v4322
        %4324 = vdwg.mxu0
        %4325 = vmatprep.subr.bf16.mxu0 %v4007
        %4326 = vmatpush1.bf16.msra.mxu0 %v4006
        %4327 = vmatprep.subr.bf16.mxu0 %v4011
        %4328 = vmatpush1.bf16.msra.mxu0 %v4010
        %4329 = vmatprep.subr.bf16.mxu0 %v4015
        %4330 = vmatpush1.bf16.msra.mxu0 %v4014
        %4331 = vmatprep.subr.bf16.mxu0 %v4019
        %4332 = vmatpush1.bf16.msra.mxu0 %v4018
        %4333 = vmatprep.subr.bf16.mxu0 %v4023
        %4334 = vmatpush1.bf16.msra.mxu0 %v4022
        %4335 = vmatprep.subr.bf16.mxu0 %v4027
        %4336 = vmatpush1.bf16.msra.mxu0 %v4026
        %4337 = vmatprep.subr.bf16.mxu0 %v4031
        %4338 = vmatpush1.bf16.msra.mxu0 %v4030
        %4339 = vmatprep.subr.bf16.mxu0 %v4035
        %4340 = vmatpush1.bf16.msra.mxu0 %v4034
        %4341 = vmatprep.subr.bf16.mxu0 %v4039
        %4342 = vmatpush1.bf16.msra.mxu0 %v4038
        %4343 = vmatprep.subr.bf16.mxu0 %v4043
        %4344 = vmatpush1.bf16.msra.mxu0 %v4042
        %4345 = vmatprep.subr.bf16.mxu0 %v4047
        %4346 = vmatpush1.bf16.msra.mxu0 %v4046
        %4347 = vmatprep.subr.bf16.mxu0 %v4051
        %4348 = vmatpush1.bf16.msra.mxu0 %v4050
        %4349 = vmatprep.subr.bf16.mxu0 %v4055
        %4350 = vmatpush1.bf16.msra.mxu0 %v4054
        %4351 = vmatprep.subr.bf16.mxu0 %v4059
        %4352 = vmatpush1.bf16.msra.mxu0 %v4058
        %4353 = vmatprep.subr.bf16.mxu0 %v4063
        %4354 = vmatpush1.bf16.msra.mxu0 %v4062
        %4355 = vmatprep.subr.bf16.mxu0 %v4067
        %4356 = vmatpush1.bf16.msra.mxu0 %v4066
        %4357 = vmatprep.mubr.bf16.mxu0 %v2443
        %4358 = vmatmul.mubr.bf16.gmra.mrb[0].mxu0 %v2442
        %v4359 = vpop.f32.mrb[0].mxu0
        %v4360 = vadd.f32 %v4317, %v4359
        %v4361 = vpop.f32.mrb[0].mxu0
        %v4362 = vadd.f32 %v4319, %v4361
        %v4363 = vpop.f32.mrb[0].mxu0
        %v4364 = vadd.f32 %v4321, %v4363
        %v4365 = vpop.f32.mrb[0].mxu0
        %v4366 = vadd.f32 %v4323, %v4365
        %4367 = vdwg.mxu0
        %4368 = vst [vmem:[%s586] sm:$0xff] %v3312
        %4369 = vst [vmem:[%s586 + $0x8] sm:$0xff] %v3314
        %4370 = vst [vmem:[%s586 + $0x10] sm:$0xff] %v3398
        %4371 = vst [vmem:[%s586 + $0x18] sm:$0xff] %v3400
        %4372 = vst [vmem:[%s586 + $0x20] sm:$0xff] %v3316
        %4373 = vst [vmem:[%s586 + $0x28] sm:$0xff] %v3318
        %4374 = vst [vmem:[%s586 + $0x30] sm:$0xff] %v3402
        %4375 = vst [vmem:[%s586 + $0x38] sm:$0xff] %v3404
        %4376 = vst [vmem:[%s591] sm:$0xff] %v4274
        %4377 = vst [vmem:[%s591 + $0x8] sm:$0xff] %v4276
        %4378 = vst [vmem:[%s591 + $0x10] sm:$0xff] %v4360
        %4379 = vst [vmem:[%s591 + $0x18] sm:$0xff] %v4362
        %4380 = vst [vmem:[%s591 + $0x20] sm:$0xff] %v4278
        %4381 = vst [vmem:[%s591 + $0x28] sm:$0xff] %v4280
        %4382 = vst [vmem:[%s591 + $0x30] sm:$0xff] %v4364
        %4383 = vst [vmem:[%s591 + $0x38] sm:$0xff] %v4366
        %v4384 = vld [vmem:[%s2] sm:$0xff]
        %v4385 = vld [vmem:[%s2 + $0x8] sm:$0xff]
        %v4386 = vld [vmem:[%s2 + $0x10] sm:$0xff]
        %v4387 = vld [vmem:[%s2 + $0x18] sm:$0xff]
        %v4388 = vld [vmem:[%s2 + $0x20] sm:$0xff]
        %v4389 = vld [vmem:[%s2 + $0x28] sm:$0xff]
        %v4390 = vld [vmem:[%s2 + $0x30] sm:$0xff]
        %v4391 = vld [vmem:[%s2 + $0x38] sm:$0xff]
        %vm4392 = vcmask 130048
        %v4394 = vsel %vm4392, %v4384, 0
        %v4397 = vsel %vm4392, %v4385, 0
        %v4400 = vsel %vm4392, %v4386, 0
        %v4403 = vsel %vm4392, %v4387, 0
        %v4406 = vsel %vm4392, %v4388, 0
        %v4409 = vsel %vm4392, %v4389, 0
        %v4412 = vsel %vm4392, %v4390, 0
        %v4415 = vsel %vm4392, %v4391, 0
        %4417 = vmatprep.subr.mxu0 %v3314
        %4418 = vmatpush1.msra.mxu0 %v3312
        %4419 = vmatprep.subr.mxu0 %v3318
        %4420 = vmatpush1.msra.mxu0 %v3316
        %4421 = vmatprep.subr.mxu0 0.0
        %4422 = vmatpush1.msra.mxu0 0.0
        %4423 = vmatprep.subr.mxu0 0.0
        %4424 = vmatpush1.msra.mxu0 0.0
        %4425 = vmatprep.subr.mxu0 0.0
        %4426 = vmatpush1.msra.mxu0 0.0
        %4427 = vmatprep.subr.mxu0 0.0
        %4428 = vmatpush1.msra.mxu0 0.0
        %4429 = vmatprep.subr.mxu0 0.0
        %4430 = vmatpush1.msra.mxu0 0.0
        %4431 = vmatprep.subr.mxu0 0.0
        %4432 = vmatpush1.msra.mxu0 0.0
        %4433 = vmatprep.subr.mxu0 0.0
        %4434 = vmatpush1.msra.mxu0 0.0
        %4435 = vmatprep.subr.mxu0 0.0
        %4436 = vmatpush1.msra.mxu0 0.0
        %4437 = vmatprep.subr.mxu0 0.0
        %4438 = vmatpush1.msra.mxu0 0.0
        %4439 = vmatprep.subr.mxu0 0.0
        %4440 = vmatpush1.msra.mxu0 0.0
        %4441 = vmatprep.subr.mxu0 0.0
        %4442 = vmatpush1.msra.mxu0 0.0
        %4443 = vmatprep.subr.mxu0 0.0
        %4444 = vmatpush1.msra.mxu0 0.0
        %4445 = vmatprep.subr.mxu0 0.0
        %4446 = vmatpush1.msra.mxu0 0.0
        %4447 = vmatprep.subr.mxu0 0.0
        %4448 = vmatpush1.msra.mxu0 0.0
        %4449 = vmatprep.subr.mxu0 0.0
        %4450 = vmatpush1.msra.mxu0 0.0
        %4451 = vmatprep.subr.mxu0 0.0
        %4452 = vmatpush1.msra.mxu0 0.0
        %4453 = vmatprep.subr.mxu0 0.0
        %4454 = vmatpush1.msra.mxu0 0.0
        %4455 = vmatprep.subr.mxu0 0.0
        %4456 = vmatpush1.msra.mxu0 0.0
        %4457 = vmatprep.subr.mxu0 0.0
        %4458 = vmatpush1.msra.mxu0 0.0
        %4459 = vmatprep.subr.mxu0 0.0
        %4460 = vmatpush1.msra.mxu0 0.0
        %4461 = vmatprep.subr.mxu0 0.0
        %4462 = vmatpush1.msra.mxu0 0.0
        %4463 = vmatprep.subr.mxu0 0.0
        %4464 = vmatpush1.msra.mxu0 0.0
        %4465 = vmatprep.subr.mxu0 0.0
        %4466 = vmatpush1.msra.mxu0 0.0
        %4467 = vmatprep.subr.mxu0 0.0
        %4468 = vmatpush1.msra.mxu0 0.0
        %4469 = vmatprep.subr.mxu0 0.0
        %4470 = vmatpush1.msra.mxu0 0.0
        %4471 = vmatprep.subr.mxu0 0.0
        %4472 = vmatpush1.msra.mxu0 0.0
        %4473 = vmatprep.subr.mxu0 0.0
        %4474 = vmatpush1.msra.mxu0 0.0
        %4475 = vmatprep.subr.mxu0 0.0
        %4476 = vmatpush1.msra.mxu0 0.0
        %4477 = vmatprep.subr.mxu0 0.0
        %4478 = vmatpush1.msra.mxu0 0.0
        %4479 = vmatprep.subr.mxu0 0.0
        %4480 = vmatpush1.msra.mxu0 0.0
        %4481 = vmatprep.mubr.f32.mxu0 0.0
        %4482 = vmatmul.mubr.f32.gmra.mrb[0].mxu0 %v4394
        %v4483 = vpop.f32.mrb[0].mxu0
        %v4484 = vadd.f32 0.0, %v4483
        %v4485 = vpop.f32.mrb[0].mxu0
        %v4486 = vadd.f32 0.0, %v4485
        %4487 = vmatprep.mubr.f32.mxu0 0.0
        %4488 = vmatmul.mubr.f32.gmra.mrb[0].mxu0 %v4397
        %v4489 = vpop.f32.mrb[0].mxu0
        %v4490 = vadd.f32 0.0, %v4489
        %v4491 = vpop.f32.mrb[0].mxu0
        %v4492 = vadd.f32 0.0, %v4491
        %4493 = vmatprep.mubr.f32.mxu0 0.0
        %4494 = vmatmul.mubr.f32.gmra.mrb[0].mxu0 %v4400
        %v4495 = vpop.f32.mrb[0].mxu0
        %v4496 = vadd.f32 0.0, %v4495
        %v4497 = vpop.f32.mrb[0].mxu0
        %v4498 = vadd.f32 0.0, %v4497
        %4499 = vmatprep.mubr.f32.mxu0 0.0
        %4500 = vmatmul.mubr.f32.gmra.mrb[0].mxu0 %v4403
        %v4501 = vpop.f32.mrb[0].mxu0
        %v4502 = vadd.f32 0.0, %v4501
        %v4503 = vpop.f32.mrb[0].mxu0
        %v4504 = vadd.f32 0.0, %v4503
        %4505 = vmatprep.mubr.f32.mxu0 0.0
        %4506 = vmatmul.mubr.f32.gmra.mrb[0].mxu0 %v4406
        %v4507 = vpop.f32.mrb[0].mxu0
        %v4508 = vadd.f32 0.0, %v4507
        %v4509 = vpop.f32.mrb[0].mxu0
        %v4510 = vadd.f32 0.0, %v4509
        %4511 = vmatprep.mubr.f32.mxu0 0.0
        %4512 = vmatmul.mubr.f32.gmra.mrb[0].mxu0 %v4409
        %v4513 = vpop.f32.mrb[0].mxu0
        %v4514 = vadd.f32 0.0, %v4513
        %v4515 = vpop.f32.mrb[0].mxu0
        %v4516 = vadd.f32 0.0, %v4515
        %4517 = vmatprep.mubr.f32.mxu0 0.0
        %4518 = vmatmul.mubr.f32.gmra.mrb[0].mxu0 %v4412
        %v4519 = vpop.f32.mrb[0].mxu0
        %v4520 = vadd.f32 0.0, %v4519
        %v4521 = vpop.f32.mrb[0].mxu0
        %v4522 = vadd.f32 0.0, %v4521
        %4523 = vmatprep.mubr.f32.mxu0 0.0
        %4524 = vmatmul.mubr.f32.gmra.mrb[0].mxu0 %v4415
        %v4525 = vpop.f32.mrb[0].mxu0
        %v4526 = vadd.f32 0.0, %v4525
        %v4527 = vpop.f32.mrb[0].mxu0
        %v4528 = vadd.f32 0.0, %v4527
        %4529 = vdwg.mxu0
        %4530 = vmatprep.subr.mxu0 %v3400
        %4531 = vmatpush1.msra.mxu0 %v3398
        %4532 = vmatprep.subr.mxu0 %v3404
        %4533 = vmatpush1.msra.mxu0 %v3402
        %4534 = vmatprep.subr.mxu0 0.0
        %4535 = vmatpush1.msra.mxu0 0.0
        %4536 = vmatprep.subr.mxu0 0.0
        %4537 = vmatpush1.msra.mxu0 0.0
        %4538 = vmatprep.subr.mxu0 0.0
        %4539 = vmatpush1.msra.mxu0 0.0
        %4540 = vmatprep.subr.mxu0 0.0
        %4541 = vmatpush1.msra.mxu0 0.0
        %4542 = vmatprep.subr.mxu0 0.0
        %4543 = vmatpush1.msra.mxu0 0.0
        %4544 = vmatprep.subr.mxu0 0.0
        %4545 = vmatpush1.msra.mxu0 0.0
        %4546 = vmatprep.subr.mxu0 0.0
        %4547 = vmatpush1.msra.mxu0 0.0
        %4548 = vmatprep.subr.mxu0 0.0
        %4549 = vmatpush1.msra.mxu0 0.0
        %4550 = vmatprep.subr.mxu0 0.0
        %4551 = vmatpush1.msra.mxu0 0.0
        %4552 = vmatprep.subr.mxu0 0.0
        %4553 = vmatpush1.msra.mxu0 0.0
        %4554 = vmatprep.subr.mxu0 0.0
        %4555 = vmatpush1.msra.mxu0 0.0
        %4556 = vmatprep.subr.mxu0 0.0
        %4557 = vmatpush1.msra.mxu0 0.0
        %4558 = vmatprep.subr.mxu0 0.0
        %4559 = vmatpush1.msra.mxu0 0.0
        %4560 = vmatprep.subr.mxu0 0.0
        %4561 = vmatpush1.msra.mxu0 0.0
        %4562 = vmatprep.subr.mxu0 0.0
        %4563 = vmatpush1.msra.mxu0 0.0
        %4564 = vmatprep.subr.mxu0 0.0
        %4565 = vmatpush1.msra.mxu0 0.0
        %4566 = vmatprep.subr.mxu0 0.0
        %4567 = vmatpush1.msra.mxu0 0.0
        %4568 = vmatprep.subr.mxu0 0.0
        %4569 = vmatpush1.msra.mxu0 0.0
        %4570 = vmatprep.subr.mxu0 0.0
        %4571 = vmatpush1.msra.mxu0 0.0
        %4572 = vmatprep.subr.mxu0 0.0
        %4573 = vmatpush1.msra.mxu0 0.0
        %4574 = vmatprep.subr.mxu0 0.0
        %4575 = vmatpush1.msra.mxu0 0.0
        %4576 = vmatprep.subr.mxu0 0.0
        %4577 = vmatpush1.msra.mxu0 0.0
        %4578 = vmatprep.subr.mxu0 0.0
        %4579 = vmatpush1.msra.mxu0 0.0
        %4580 = vmatprep.subr.mxu0 0.0
        %4581 = vmatpush1.msra.mxu0 0.0
        %4582 = vmatprep.subr.mxu0 0.0
        %4583 = vmatpush1.msra.mxu0 0.0
        %4584 = vmatprep.subr.mxu0 0.0
        %4585 = vmatpush1.msra.mxu0 0.0
        %4586 = vmatprep.subr.mxu0 0.0
        %4587 = vmatpush1.msra.mxu0 0.0
        %4588 = vmatprep.subr.mxu0 0.0
        %4589 = vmatpush1.msra.mxu0 0.0
        %4590 = vmatprep.subr.mxu0 0.0
        %4591 = vmatpush1.msra.mxu0 0.0
        %4592 = vmatprep.subr.mxu0 0.0
        %4593 = vmatpush1.msra.mxu0 0.0
        %4594 = vmatprep.mubr.f32.mxu0 0.0
        %4595 = vmatmul.mubr.f32.gmra.mrb[0].mxu0 %v4394
        %v4596 = vpop.f32.mrb[0].mxu0
        %v4597 = vadd.f32 0.0, %v4596
        %v4598 = vpop.f32.mrb[0].mxu0
        %v4599 = vadd.f32 0.0, %v4598
        %4600 = vmatprep.mubr.f32.mxu0 0.0
        %4601 = vmatmul.mubr.f32.gmra.mrb[0].mxu0 %v4397
        %v4602 = vpop.f32.mrb[0].mxu0
        %v4603 = vadd.f32 0.0, %v4602
        %v4604 = vpop.f32.mrb[0].mxu0
        %v4605 = vadd.f32 0.0, %v4604
        %4606 = vmatprep.mubr.f32.mxu0 0.0
        %4607 = vmatmul.mubr.f32.gmra.mrb[0].mxu0 %v4400
        %v4608 = vpop.f32.mrb[0].mxu0
        %v4609 = vadd.f32 0.0, %v4608
        %v4610 = vpop.f32.mrb[0].mxu0
        %v4611 = vadd.f32 0.0, %v4610
        %4612 = vmatprep.mubr.f32.mxu0 0.0
        %4613 = vmatmul.mubr.f32.gmra.mrb[0].mxu0 %v4403
        %v4614 = vpop.f32.mrb[0].mxu0
        %v4615 = vadd.f32 0.0, %v4614
        %v4616 = vpop.f32.mrb[0].mxu0
        %v4617 = vadd.f32 0.0, %v4616
        %4618 = vmatprep.mubr.f32.mxu0 0.0
        %4619 = vmatmul.mubr.f32.gmra.mrb[0].mxu0 %v4406
        %v4620 = vpop.f32.mrb[0].mxu0
        %v4621 = vadd.f32 0.0, %v4620
        %v4622 = vpop.f32.mrb[0].mxu0
        %v4623 = vadd.f32 0.0, %v4622
        %4624 = vmatprep.mubr.f32.mxu0 0.0
        %4625 = vmatmul.mubr.f32.gmra.mrb[0].mxu0 %v4409
        %v4626 = vpop.f32.mrb[0].mxu0
        %v4627 = vadd.f32 0.0, %v4626
        %v4628 = vpop.f32.mrb[0].mxu0
        %v4629 = vadd.f32 0.0, %v4628
        %4630 = vmatprep.mubr.f32.mxu0 0.0
        %4631 = vmatmul.mubr.f32.gmra.mrb[0].mxu0 %v4412
        %v4632 = vpop.f32.mrb[0].mxu0
        %v4633 = vadd.f32 0.0, %v4632
        %v4634 = vpop.f32.mrb[0].mxu0
        %v4635 = vadd.f32 0.0, %v4634
        %4636 = vmatprep.mubr.f32.mxu0 0.0
        %4637 = vmatmul.mubr.f32.gmra.mrb[0].mxu0 %v4415
        %v4638 = vpop.f32.mrb[0].mxu0
        %v4639 = vadd.f32 0.0, %v4638
        %v4640 = vpop.f32.mrb[0].mxu0
        %v4641 = vadd.f32 0.0, %v4640
        %4642 = vdwg.mxu0
        %4643 = vmatprep.subr.mxu0 %v4276
        %4644 = vmatpush1.msra.mxu0 %v4274
        %4645 = vmatprep.subr.mxu0 %v4280
        %4646 = vmatpush1.msra.mxu0 %v4278
        %4647 = vmatprep.subr.mxu0 0.0
        %4648 = vmatpush1.msra.mxu0 0.0
        %4649 = vmatprep.subr.mxu0 0.0
        %4650 = vmatpush1.msra.mxu0 0.0
        %4651 = vmatprep.subr.mxu0 0.0
        %4652 = vmatpush1.msra.mxu0 0.0
        %4653 = vmatprep.subr.mxu0 0.0
        %4654 = vmatpush1.msra.mxu0 0.0
        %4655 = vmatprep.subr.mxu0 0.0
        %4656 = vmatpush1.msra.mxu0 0.0
        %4657 = vmatprep.subr.mxu0 0.0
        %4658 = vmatpush1.msra.mxu0 0.0
        %4659 = vmatprep.subr.mxu0 0.0
        %4660 = vmatpush1.msra.mxu0 0.0
        %4661 = vmatprep.subr.mxu0 0.0
        %4662 = vmatpush1.msra.mxu0 0.0
        %4663 = vmatprep.subr.mxu0 0.0
        %4664 = vmatpush1.msra.mxu0 0.0
        %4665 = vmatprep.subr.mxu0 0.0
        %4666 = vmatpush1.msra.mxu0 0.0
        %4667 = vmatprep.subr.mxu0 0.0
        %4668 = vmatpush1.msra.mxu0 0.0
        %4669 = vmatprep.subr.mxu0 0.0
        %4670 = vmatpush1.msra.mxu0 0.0
        %4671 = vmatprep.subr.mxu0 0.0
        %4672 = vmatpush1.msra.mxu0 0.0
        %4673 = vmatprep.subr.mxu0 0.0
        %4674 = vmatpush1.msra.mxu0 0.0
        %4675 = vmatprep.subr.mxu0 0.0
        %4676 = vmatpush1.msra.mxu0 0.0
        %4677 = vmatprep.subr.mxu0 0.0
        %4678 = vmatpush1.msra.mxu0 0.0
        %4679 = vmatprep.subr.mxu0 0.0
        %4680 = vmatpush1.msra.mxu0 0.0
        %4681 = vmatprep.subr.mxu0 0.0
        %4682 = vmatpush1.msra.mxu0 0.0
        %4683 = vmatprep.subr.mxu0 0.0
        %4684 = vmatpush1.msra.mxu0 0.0
        %4685 = vmatprep.subr.mxu0 0.0
        %4686 = vmatpush1.msra.mxu0 0.0
        %4687 = vmatprep.subr.mxu0 0.0
        %4688 = vmatpush1.msra.mxu0 0.0
        %4689 = vmatprep.subr.mxu0 0.0
        %4690 = vmatpush1.msra.mxu0 0.0
        %4691 = vmatprep.subr.mxu0 0.0
        %4692 = vmatpush1.msra.mxu0 0.0
        %4693 = vmatprep.subr.mxu0 0.0
        %4694 = vmatpush1.msra.mxu0 0.0
        %4695 = vmatprep.subr.mxu0 0.0
        %4696 = vmatpush1.msra.mxu0 0.0
        %4697 = vmatprep.subr.mxu0 0.0
        %4698 = vmatpush1.msra.mxu0 0.0
        %4699 = vmatprep.subr.mxu0 0.0
        %4700 = vmatpush1.msra.mxu0 0.0
        %4701 = vmatprep.subr.mxu0 0.0
        %4702 = vmatpush1.msra.mxu0 0.0
        %4703 = vmatprep.subr.mxu0 0.0
        %4704 = vmatpush1.msra.mxu0 0.0
        %4705 = vmatprep.subr.mxu0 0.0
        %4706 = vmatpush1.msra.mxu0 0.0
        %4707 = vmatprep.mubr.f32.mxu0 0.0
        %4708 = vmatmul.mubr.f32.gmra.mrb[0].mxu0 %v4394
        %v4709 = vpop.f32.mrb[0].mxu0
        %v4710 = vadd.f32 0.0, %v4709
        %v4711 = vpop.f32.mrb[0].mxu0
        %v4712 = vadd.f32 0.0, %v4711
        %4713 = vmatprep.mubr.f32.mxu0 0.0
        %4714 = vmatmul.mubr.f32.gmra.mrb[0].mxu0 %v4397
        %v4715 = vpop.f32.mrb[0].mxu0
        %v4716 = vadd.f32 0.0, %v4715
        %v4717 = vpop.f32.mrb[0].mxu0
        %v4718 = vadd.f32 0.0, %v4717
        %4719 = vmatprep.mubr.f32.mxu0 0.0
        %4720 = vmatmul.mubr.f32.gmra.mrb[0].mxu0 %v4400
        %v4721 = vpop.f32.mrb[0].mxu0
        %v4722 = vadd.f32 0.0, %v4721
        %v4723 = vpop.f32.mrb[0].mxu0
        %v4724 = vadd.f32 0.0, %v4723
        %4725 = vmatprep.mubr.f32.mxu0 0.0
        %4726 = vmatmul.mubr.f32.gmra.mrb[0].mxu0 %v4403
        %v4727 = vpop.f32.mrb[0].mxu0
        %v4728 = vadd.f32 0.0, %v4727
        %v4729 = vpop.f32.mrb[0].mxu0
        %v4730 = vadd.f32 0.0, %v4729
        %4731 = vmatprep.mubr.f32.mxu0 0.0
        %4732 = vmatmul.mubr.f32.gmra.mrb[0].mxu0 %v4406
        %v4733 = vpop.f32.mrb[0].mxu0
        %v4734 = vadd.f32 0.0, %v4733
        %v4735 = vpop.f32.mrb[0].mxu0
        %v4736 = vadd.f32 0.0, %v4735
        %4737 = vmatprep.mubr.f32.mxu0 0.0
        %4738 = vmatmul.mubr.f32.gmra.mrb[0].mxu0 %v4409
        %v4739 = vpop.f32.mrb[0].mxu0
        %v4740 = vadd.f32 0.0, %v4739
        %v4741 = vpop.f32.mrb[0].mxu0
        %v4742 = vadd.f32 0.0, %v4741
        %4743 = vmatprep.mubr.f32.mxu0 0.0
        %4744 = vmatmul.mubr.f32.gmra.mrb[0].mxu0 %v4412
        %v4745 = vpop.f32.mrb[0].mxu0
        %v4746 = vadd.f32 0.0, %v4745
        %v4747 = vpop.f32.mrb[0].mxu0
        %v4748 = vadd.f32 0.0, %v4747
        %4749 = vmatprep.mubr.f32.mxu0 0.0
        %4750 = vmatmul.mubr.f32.gmra.mrb[0].mxu0 %v4415
        %v4751 = vpop.f32.mrb[0].mxu0
        %v4752 = vadd.f32 0.0, %v4751
        %v4753 = vpop.f32.mrb[0].mxu0
        %v4754 = vadd.f32 0.0, %v4753
        %4755 = vdwg.mxu0
        %4756 = vmatprep.subr.mxu0 %v4362
        %4757 = vmatpush1.msra.mxu0 %v4360
        %4758 = vmatprep.subr.mxu0 %v4366
        %4759 = vmatpush1.msra.mxu0 %v4364
        %4760 = vmatprep.subr.mxu0 0.0
        %4761 = vmatpush1.msra.mxu0 0.0
        %4762 = vmatprep.subr.mxu0 0.0
        %4763 = vmatpush1.msra.mxu0 0.0
        %4764 = vmatprep.subr.mxu0 0.0
        %4765 = vmatpush1.msra.mxu0 0.0
        %4766 = vmatprep.subr.mxu0 0.0
        %4767 = vmatpush1.msra.mxu0 0.0
        %4768 = vmatprep.subr.mxu0 0.0
        %4769 = vmatpush1.msra.mxu0 0.0
        %4770 = vmatprep.subr.mxu0 0.0
        %4771 = vmatpush1.msra.mxu0 0.0
        %4772 = vmatprep.subr.mxu0 0.0
        %4773 = vmatpush1.msra.mxu0 0.0
        %4774 = vmatprep.subr.mxu0 0.0
        %4775 = vmatpush1.msra.mxu0 0.0
        %4776 = vmatprep.subr.mxu0 0.0
        %4777 = vmatpush1.msra.mxu0 0.0
        %4778 = vmatprep.subr.mxu0 0.0
        %4779 = vmatpush1.msra.mxu0 0.0
        %4780 = vmatprep.subr.mxu0 0.0
        %4781 = vmatpush1.msra.mxu0 0.0
        %4782 = vmatprep.subr.mxu0 0.0
        %4783 = vmatpush1.msra.mxu0 0.0
        %4784 = vmatprep.subr.mxu0 0.0
        %4785 = vmatpush1.msra.mxu0 0.0
        %4786 = vmatprep.subr.mxu0 0.0
        %4787 = vmatpush1.msra.mxu0 0.0
        %4788 = vmatprep.subr.mxu0 0.0
        %4789 = vmatpush1.msra.mxu0 0.0
        %4790 = vmatprep.subr.mxu0 0.0
        %4791 = vmatpush1.msra.mxu0 0.0
        %4792 = vmatprep.subr.mxu0 0.0
        %4793 = vmatpush1.msra.mxu0 0.0
        %4794 = vmatprep.subr.mxu0 0.0
        %4795 = vmatpush1.msra.mxu0 0.0
        %4796 = vmatprep.subr.mxu0 0.0
        %4797 = vmatpush1.msra.mxu0 0.0
        %4798 = vmatprep.subr.mxu0 0.0
        %4799 = vmatpush1.msra.mxu0 0.0
        %4800 = vmatprep.subr.mxu0 0.0
        %4801 = vmatpush1.msra.mxu0 0.0
        %4802 = vmatprep.subr.mxu0 0.0
        %4803 = vmatpush1.msra.mxu0 0.0
        %4804 = vmatprep.subr.mxu0 0.0
        %4805 = vmatpush1.msra.mxu0 0.0
        %4806 = vmatprep.subr.mxu0 0.0
        %4807 = vmatpush1.msra.mxu0 0.0
        %4808 = vmatprep.subr.mxu0 0.0
        %4809 = vmatpush1.msra.mxu0 0.0
        %4810 = vmatprep.subr.mxu0 0.0
        %4811 = vmatpush1.msra.mxu0 0.0
        %4812 = vmatprep.subr.mxu0 0.0
        %4813 = vmatpush1.msra.mxu0 0.0
        %4814 = vmatprep.subr.mxu0 0.0
        %4815 = vmatpush1.msra.mxu0 0.0
        %4816 = vmatprep.subr.mxu0 0.0
        %4817 = vmatpush1.msra.mxu0 0.0
        %4818 = vmatprep.subr.mxu0 0.0
        %4819 = vmatpush1.msra.mxu0 0.0
        %4820 = vmatprep.mubr.f32.mxu0 0.0
        %4821 = vmatmul.mubr.f32.gmra.mrb[0].mxu0 %v4394
        %v4822 = vpop.f32.mrb[0].mxu0
        %v4823 = vadd.f32 0.0, %v4822
        %v4824 = vpop.f32.mrb[0].mxu0
        %v4825 = vadd.f32 0.0, %v4824
        %4826 = vmatprep.mubr.f32.mxu0 0.0
        %4827 = vmatmul.mubr.f32.gmra.mrb[0].mxu0 %v4397
        %v4828 = vpop.f32.mrb[0].mxu0
        %v4829 = vadd.f32 0.0, %v4828
        %v4830 = vpop.f32.mrb[0].mxu0
        %v4831 = vadd.f32 0.0, %v4830
        %4832 = vmatprep.mubr.f32.mxu0 0.0
        %4833 = vmatmul.mubr.f32.gmra.mrb[0].mxu0 %v4400
        %v4834 = vpop.f32.mrb[0].mxu0
        %v4835 = vadd.f32 0.0, %v4834
        %v4836 = vpop.f32.mrb[0].mxu0
        %v4837 = vadd.f32 0.0, %v4836
        %4838 = vmatprep.mubr.f32.mxu0 0.0
        %4839 = vmatmul.mubr.f32.gmra.mrb[0].mxu0 %v4403
        %v4840 = vpop.f32.mrb[0].mxu0
        %v4841 = vadd.f32 0.0, %v4840
        %v4842 = vpop.f32.mrb[0].mxu0
        %v4843 = vadd.f32 0.0, %v4842
        %4844 = vmatprep.mubr.f32.mxu0 0.0
        %4845 = vmatmul.mubr.f32.gmra.mrb[0].mxu0 %v4406
        %v4846 = vpop.f32.mrb[0].mxu0
        %v4847 = vadd.f32 0.0, %v4846
        %v4848 = vpop.f32.mrb[0].mxu0
        %v4849 = vadd.f32 0.0, %v4848
        %4850 = vmatprep.mubr.f32.mxu0 0.0
        %4851 = vmatmul.mubr.f32.gmra.mrb[0].mxu0 %v4409
        %v4852 = vpop.f32.mrb[0].mxu0
        %v4853 = vadd.f32 0.0, %v4852
        %v4854 = vpop.f32.mrb[0].mxu0
        %v4855 = vadd.f32 0.0, %v4854
        %4856 = vmatprep.mubr.f32.mxu0 0.0
        %4857 = vmatmul.mubr.f32.gmra.mrb[0].mxu0 %v4412
        %v4858 = vpop.f32.mrb[0].mxu0
        %v4859 = vadd.f32 0.0, %v4858
        %v4860 = vpop.f32.mrb[0].mxu0
        %v4861 = vadd.f32 0.0, %v4860
        %4862 = vmatprep.mubr.f32.mxu0 0.0
        %4863 = vmatmul.mubr.f32.gmra.mrb[0].mxu0 %v4415
        %v4864 = vpop.f32.mrb[0].mxu0
        %v4865 = vadd.f32 0.0, %v4864
        %v4866 = vpop.f32.mrb[0].mxu0
        %v4867 = vadd.f32 0.0, %v4866
        %4868 = vdwg.mxu0
        %v4869 = vld [vmem:[%s581] sm:$0xff]
        %v4870 = vld [vmem:[%s581 + $0x8] sm:$0xff]
        %v4871 = vld [vmem:[%s581 + $0x10] sm:$0xff]
        %v4872 = vld [vmem:[%s581 + $0x18] sm:$0xff]
        %v4873 = vld [vmem:[%s581 + $0x20] sm:$0xff]
        %v4874 = vld [vmem:[%s581 + $0x28] sm:$0xff]
        %v4875 = vld [vmem:[%s581 + $0x30] sm:$0xff]
        %v4876 = vld [vmem:[%s581 + $0x38] sm:$0xff]
        %v4877 = vld [vmem:[%s581 + $0x40] sm:$0xff]
        %v4878 = vld [vmem:[%s581 + $0x48] sm:$0xff]
        %v4879 = vld [vmem:[%s581 + $0x50] sm:$0xff]
        %v4880 = vld [vmem:[%s581 + $0x58] sm:$0xff]
        %v4881 = vld [vmem:[%s581 + $0x60] sm:$0xff]
        %v4882 = vld [vmem:[%s581 + $0x68] sm:$0xff]
        %v4883 = vld [vmem:[%s581 + $0x70] sm:$0xff]
        %v4884 = vld [vmem:[%s581 + $0x78] sm:$0xff]
        %v4885 = vld [vmem:[%s581 + $0x80] sm:$0xff]
        %v4886 = vld [vmem:[%s581 + $0x88] sm:$0xff]
        %v4887 = vld [vmem:[%s581 + $0x90] sm:$0xff]
        %v4888 = vld [vmem:[%s581 + $0x98] sm:$0xff]
        %v4889 = vld [vmem:[%s581 + $0xa0] sm:$0xff]
        %v4890 = vld [vmem:[%s581 + $0xa8] sm:$0xff]
        %v4891 = vld [vmem:[%s581 + $0xb0] sm:$0xff]
        %v4892 = vld [vmem:[%s581 + $0xb8] sm:$0xff]
        %v4893 = vld [vmem:[%s581 + $0xc0] sm:$0xff]
        %v4894 = vld [vmem:[%s581 + $0xc8] sm:$0xff]
        %v4895 = vld [vmem:[%s581 + $0xd0] sm:$0xff]
        %v4896 = vld [vmem:[%s581 + $0xd8] sm:$0xff]
        %v4897 = vld [vmem:[%s581 + $0xe0] sm:$0xff]
        %v4898 = vld [vmem:[%s581 + $0xe8] sm:$0xff]
        %v4899 = vld [vmem:[%s581 + $0xf0] sm:$0xff]
        %v4900 = vld [vmem:[%s581 + $0xf8] sm:$0xff]
        %v4901 = vadd.f32 %v4484, 1.0
        %v4902 = vadd.f32 %v4486, 1.0
        %v4903 = vadd.f32 %v4597, 1.0
        %v4904 = vadd.f32 %v4599, 1.0
        %v4905 = vadd.f32 %v4490, 1.0
        %v4906 = vadd.f32 %v4492, 1.0
        %v4907 = vadd.f32 %v4603, 1.0
        %v4908 = vadd.f32 %v4605, 1.0
        %v4909 = vadd.f32 %v4496, 1.0
        %v4910 = vadd.f32 %v4498, 1.0
        %v4911 = vadd.f32 %v4609, 1.0
        %v4912 = vadd.f32 %v4611, 1.0
        %v4913 = vadd.f32 %v4502, 1.0
        %v4914 = vadd.f32 %v4504, 1.0
        %v4915 = vadd.f32 %v4615, 1.0
        %v4916 = vadd.f32 %v4617, 1.0
        %v4917 = vadd.f32 %v4508, 1.0
        %v4918 = vadd.f32 %v4510, 1.0
        %v4919 = vadd.f32 %v4621, 1.0
        %v4920 = vadd.f32 %v4623, 1.0
        %v4921 = vadd.f32 %v4514, 1.0
        %v4922 = vadd.f32 %v4516, 1.0
        %v4923 = vadd.f32 %v4627, 1.0
        %v4924 = vadd.f32 %v4629, 1.0
        %v4925 = vadd.f32 %v4520, 1.0
        %v4926 = vadd.f32 %v4522, 1.0
        %v4927 = vadd.f32 %v4633, 1.0
        %v4928 = vadd.f32 %v4635, 1.0
        %v4929 = vadd.f32 %v4526, 1.0
        %v4930 = vadd.f32 %v4528, 1.0
        %v4931 = vadd.f32 %v4639, 1.0
        %v4932 = vadd.f32 %v4641, 1.0
        %v4933 = vmul.f32 %v4869, %v4901
        %v4934 = vmul.f32 %v4870, %v4902
        %v4935 = vmul.f32 %v4871, %v4903
        %v4936 = vmul.f32 %v4872, %v4904
        %v4937 = vmul.f32 %v4873, %v4905
        %v4938 = vmul.f32 %v4874, %v4906
        %v4939 = vmul.f32 %v4875, %v4907
        %v4940 = vmul.f32 %v4876, %v4908
        %v4941 = vmul.f32 %v4877, %v4909
        %v4942 = vmul.f32 %v4878, %v4910
        %v4943 = vmul.f32 %v4879, %v4911
        %v4944 = vmul.f32 %v4880, %v4912
        %v4945 = vmul.f32 %v4881, %v4913
        %v4946 = vmul.f32 %v4882, %v4914
        %v4947 = vmul.f32 %v4883, %v4915
        %v4948 = vmul.f32 %v4884, %v4916
        %v4949 = vmul.f32 %v4885, %v4917
        %v4950 = vmul.f32 %v4886, %v4918
        %v4951 = vmul.f32 %v4887, %v4919
        %v4952 = vmul.f32 %v4888, %v4920
        %v4953 = vmul.f32 %v4889, %v4921
        %v4954 = vmul.f32 %v4890, %v4922
        %v4955 = vmul.f32 %v4891, %v4923
        %v4956 = vmul.f32 %v4892, %v4924
        %v4957 = vmul.f32 %v4893, %v4925
        %v4958 = vmul.f32 %v4894, %v4926
        %v4959 = vmul.f32 %v4895, %v4927
        %v4960 = vmul.f32 %v4896, %v4928
        %v4961 = vmul.f32 %v4897, %v4929
        %v4962 = vmul.f32 %v4898, %v4930
        %v4963 = vmul.f32 %v4899, %v4931
        %v4964 = vmul.f32 %v4900, %v4932
        %v4965 = vadd.f32 %v4933, %v4710
        %v4966 = vadd.f32 %v4934, %v4712
        %v4967 = vadd.f32 %v4935, %v4823
        %v4968 = vadd.f32 %v4936, %v4825
        %v4969 = vadd.f32 %v4937, %v4716
        %v4970 = vadd.f32 %v4938, %v4718
        %v4971 = vadd.f32 %v4939, %v4829
        %v4972 = vadd.f32 %v4940, %v4831
        %v4973 = vadd.f32 %v4941, %v4722
        %v4974 = vadd.f32 %v4942, %v4724
        %v4975 = vadd.f32 %v4943, %v4835
        %v4976 = vadd.f32 %v4944, %v4837
        %v4977 = vadd.f32 %v4945, %v4728
        %v4978 = vadd.f32 %v4946, %v4730
        %v4979 = vadd.f32 %v4947, %v4841
        %v4980 = vadd.f32 %v4948, %v4843
        %v4981 = vadd.f32 %v4949, %v4734
        %v4982 = vadd.f32 %v4950, %v4736
        %v4983 = vadd.f32 %v4951, %v4847
        %v4984 = vadd.f32 %v4952, %v4849
        %v4985 = vadd.f32 %v4953, %v4740
        %v4986 = vadd.f32 %v4954, %v4742
        %v4987 = vadd.f32 %v4955, %v4853
        %v4988 = vadd.f32 %v4956, %v4855
        %v4989 = vadd.f32 %v4957, %v4746
        %v4990 = vadd.f32 %v4958, %v4748
        %v4991 = vadd.f32 %v4959, %v4859
        %v4992 = vadd.f32 %v4960, %v4861
        %v4993 = vadd.f32 %v4961, %v4752
        %v4994 = vadd.f32 %v4962, %v4754
        %v4995 = vadd.f32 %v4963, %v4865
        %v4996 = vadd.f32 %v4964, %v4867
        %4997 = vst [vmem:[%s557] sm:$0xff] %v4965
        %4998 = vst [vmem:[%s557 + $0x8] sm:$0xff] %v4966
        %4999 = vst [vmem:[%s557 + $0x10] sm:$0xff] %v4967
        %5000 = vst [vmem:[%s557 + $0x18] sm:$0xff] %v4968
        %5001 = vst [vmem:[%s557 + $0x20] sm:$0xff] %v4969
        %5002 = vst [vmem:[%s557 + $0x28] sm:$0xff] %v4970
        %5003 = vst [vmem:[%s557 + $0x30] sm:$0xff] %v4971
        %5004 = vst [vmem:[%s557 + $0x38] sm:$0xff] %v4972
        %5005 = vst [vmem:[%s557 + $0x40] sm:$0xff] %v4973
        %5006 = vst [vmem:[%s557 + $0x48] sm:$0xff] %v4974
        %5007 = vst [vmem:[%s557 + $0x50] sm:$0xff] %v4975
        %5008 = vst [vmem:[%s557 + $0x58] sm:$0xff] %v4976
        %5009 = vst [vmem:[%s557 + $0x60] sm:$0xff] %v4977
        %5010 = vst [vmem:[%s557 + $0x68] sm:$0xff] %v4978
        %5011 = vst [vmem:[%s557 + $0x70] sm:$0xff] %v4979
        %5012 = vst [vmem:[%s557 + $0x78] sm:$0xff] %v4980
        %5013 = vst [vmem:[%s557 + $0x80] sm:$0xff] %v4981
        %5014 = vst [vmem:[%s557 + $0x88] sm:$0xff] %v4982
        %5015 = vst [vmem:[%s557 + $0x90] sm:$0xff] %v4983
        %5016 = vst [vmem:[%s557 + $0x98] sm:$0xff] %v4984
        %5017 = vst [vmem:[%s557 + $0xa0] sm:$0xff] %v4985
        %5018 = vst [vmem:[%s557 + $0xa8] sm:$0xff] %v4986
        %5019 = vst [vmem:[%s557 + $0xb0] sm:$0xff] %v4987
        %5020 = vst [vmem:[%s557 + $0xb8] sm:$0xff] %v4988
        %5021 = vst [vmem:[%s557 + $0xc0] sm:$0xff] %v4989
        %5022 = vst [vmem:[%s557 + $0xc8] sm:$0xff] %v4990
        %5023 = vst [vmem:[%s557 + $0xd0] sm:$0xff] %v4991
        %5024 = vst [vmem:[%s557 + $0xd8] sm:$0xff] %v4992
        %5025 = vst [vmem:[%s557 + $0xe0] sm:$0xff] %v4993
        %5026 = vst [vmem:[%s557 + $0xe8] sm:$0xff] %v4994
        %5027 = vst [vmem:[%s557 + $0xf0] sm:$0xff] %v4995
        %5028 = vst [vmem:[%s557 + $0xf8] sm:$0xff] %v4996
        %s5029 = sand.u32 %s365, 1
        %s5030 = scalar_lea.sflag [#allocation3], %s5029
        %s5031 = sand.u32 %s365, 1
        %s5032 = smul.addr %s5031, 256
        %s5033 = scalar_lea.vmem [#allocation2], %s5032
        %p5034 = scmp.lt.s32.totalorder %s32, 1
        %s5035 = scalar_select %p5034, %s32, 1
        %s5036 = smul.addr %s5035, 8
        %s5037 = smul.addr %s5036, 8
        %s5038 = scalar_lea.vmem %s16, %s5037
        %p5039 = scmp.lt.s32.totalorder %s32, 1
        %s5040 = scalar_select %p5039, %s32, 1
        %s5041 = smul.addr %s5040, 8
        %s5042 = smul.addr %s5041, 8
        %s5043 = scalar_lea.vmem %s17, %s5042
        // Predicated region
        $region81: #{forward.1} parent=79 // pred_check
          %p5044 = pneg %p375
        $region82: #{forward.1} parent=79 // pred_check_branch
          %5046 = sbr.rel (%p5044) target = $region84
        $region83: #{forward.1} parent=79 // pred_region
          %s5048 = ssub.s32 4096, 4096
          %5049 = vsyncadd %s5030, %s5048
          %s5050 = smul.addr %s32, 32
          %s5051 = smul.addr %s5050, 128
          %s5052 = scalar_lea.hbm %s15, %s5051
          %s5053 = sshll.u32 %s5033, 4
          %s5054 = int_to_ptr.vmem [resolvable:$true] %s5053
          %5059 = dma.vmem_to_hbm [thread:$0]  %s5054, 4096, %s5052, %s5030, 512, 512, 32
        $region84: #{forward.1} parent=79 // pred_fallthru
          _
        // Predicated region
        $region85: #{forward.1} parent=79 // pred_check
          %p5060 = pneg %p401
        $region86: #{forward.1} parent=79 // pred_check_branch
          %5062 = sbr.rel (%p5060) target = $region88
        $region87: #{forward.1} parent=79 // pred_region
          _
        $region88: #{forward.1} parent=79 // pred_fallthru
          _
        // Predicated region
        $region89: #{forward.1} parent=79 // pred_check
          %p5063 = pneg %p427
        $region90: #{forward.1} parent=79 // pred_check_branch
          %5065 = sbr.rel (%p5063) target = $region92
        $region91: #{forward.1} parent=79 // pred_region
          _
        $region92: #{forward.1} parent=79 // pred_fallthru
          _
      $region80: #{forward.1} parent=5 // pred_fallthru
        _
      %p5066 = scmp.le.s32.totalorder 2, %s27
      // Predicated region
      $region93: #{forward.1} parent=5 // pred_check
        %p5067 = pneg %p5066
      $region94: #{forward.1} parent=5 // pred_check_branch
        %5069 = sbr.rel (%p5067) target = $region96
      $region95: #{forward.1} parent=5 // pred_region
        %s5070 = ssub.s32 %s27, 2
        // Predicated region
        $region97: #{forward.1} parent=95 // pred_check
          %p5071 = pneg %p381
        $region98: #{forward.1} parent=95 // pred_check_branch
          %5073 = sbr.rel (%p5071) target = $region100
        $region99: #{forward.1} parent=95 // pred_region
          %s5074 = sand.u32 %s366, 1
          %s5075 = scalar_lea.sflag [#allocation3], %s5074
          %s5076 = sand.u32 %s366, 1
          %s5077 = smul.addr %s5076, 256
          %s5078 = scalar_lea.vmem [#allocation2], %s5077
          %5079 = dma.done %s5075, 4096
        $region100: #{forward.1} parent=95 // pred_fallthru
          _
        // Predicated region
        $region101: #{forward.1} parent=95 // pred_check
          %p5080 = pneg %p407
        $region102: #{forward.1} parent=95 // pred_check_branch
          %5082 = sbr.rel (%p5080) target = $region104
        $region103: #{forward.1} parent=95 // pred_region
          %p5083 = scmp.lt.s32.totalorder %s33, 1
          %s5084 = scalar_select %p5083, %s33, 1
          %s5085 = smul.addr %s5084, 8
          %s5086 = smul.addr %s5085, 8
          %s5087 = scalar_lea.vmem %s16, %s5086
        $region104: #{forward.1} parent=95 // pred_fallthru
          _
        // Predicated region
        $region105: #{forward.1} parent=95 // pred_check
          %p5088 = pneg %p433
        $region106: #{forward.1} parent=95 // pred_check_branch
          %5090 = sbr.rel (%p5088) target = $region108
        $region107: #{forward.1} parent=95 // pred_region
          %p5091 = scmp.lt.s32.totalorder %s33, 1
          %s5092 = scalar_select %p5091, %s33, 1
          %s5093 = smul.addr %s5092, 8
          %s5094 = smul.addr %s5093, 8
          %s5095 = scalar_lea.vmem %s17, %s5094
        $region108: #{forward.1} parent=95 // pred_fallthru
          _
      $region96: #{forward.1} parent=5 // pred_fallthru
        _
    $region6: #{forward.1} parent=1 // loop_footer
      %s31 = sadd.s32 1, %s27
    $region7: #{forward.1} parent=1 // loop_footer_branch
      %26 = sbr.rel target = $region3
    $region8: #{forward.1} parent=1 // loop_exit
      _
    %5096 = vsyncpa [#allocation3], 1
    %s5097 = scalar_lea.sflag [#allocation3], 1
    %5098 = vsyncpa %s5097, 1

</llo_original>
